<compile_context>
chip_gen: v7x
topology: tpu7x:2x2x1
jax: 0.10.0
libtpu: 0.0.40
codegen_flags: <defaults>
</compile_context>

<pallas_src>
import functools

import jax
import jax.numpy as jnp
from jax.experimental import pallas as pl
from jax.experimental.pallas import tpu as pltpu

# ----------------------- LFQ hyper-parameters -----------------------
DIM = 16
CODEBOOK_SIZE = 256
CODEBOOK_DIM = 8                    # log2(codebook_size)
CODEBOOK_SCALE = 1.0
ENTROPY_LOSS_WEIGHT = 0.1
DIVERSITY_GAMMA = 1.0
COMMITMENT_LOSS_WEIGHT = 0.0        # -> commit_loss == 0 (skipped, as in torch)
INV_TEMPERATURE = 100.0
LOG_EPS = 1e-5


# ----------------------------- kernel -------------------------------
def lfq_kernel(x_ref, win_ref, bin_ref, wout_ref, bout_ref, wf_ref, bf_ref,
               maskcol_ref, xout_ref, idx_ref, psum_ref, esum_ref, *,
               total_tokens, tile_t):
    i = pl.program_id(0)
    x = x_ref[...]                                            # (tile_t, DIM)

    # ---- sign / index / straight-through output path (exact project_in) ----
    z = jnp.dot(x, win_ref[...], preferred_element_type=jnp.float32) + bin_ref[...]
    pos = z > 0.0
    quantized = jnp.where(pos, CODEBOOK_SCALE, -CODEBOOK_SCALE).astype(jnp.float32)

    # code index as an MXU matvec against the bit-weight column (perf review)
    bits = pos.astype(jnp.float32)
    idx_col = jnp.dot(bits, maskcol_ref[...],
                      preferred_element_type=jnp.float32)     # (tile_t, 1)
    idx_ref[...] = idx_col.astype(jnp.int32)

    # straight-through forward value == quantized; then project_out
    xout_ref[...] = (jnp.dot(quantized, wout_ref[...],
                             preferred_element_type=jnp.float32) + bout_ref[...])

    # ---- entropy statistics (training path, frac_per_sample_entropy == 1.0) ----
    # logits already carry the 2*inv_temperature scale: wf/bf were pre-scaled
    # in the wrapper (wf = 2*inv_temp * w_in @ cb^T, bf = 2*inv_temp * b_in @ cb^T).
    logits = jnp.dot(x, wf_ref[...], preferred_element_type=jnp.float32) + bf_ref[...]

    # Closed-form row max: codebook entries are {+/-scale}^d, so
    #   max_c <z, c> = scale * sum_j |z_j|  ->  m = 2*inv_temp*scale*sum|z|.
    # shifted <= 0 (up to f32 rounding), and softmax/entropy are shift-invariant.
    m = (2.0 * INV_TEMPERATURE * CODEBOOK_SCALE) * jnp.sum(
        jnp.abs(z), axis=-1, keepdims=True)                    # (tile_t, 1)
    shifted = logits - m
    e = jnp.exp(shifted)                                       # (tile_t, CB) — EUP
    s = jnp.sum(e, axis=-1, keepdims=True)                     # (tile_t, 1)
    ses = jnp.sum(e * shifted, axis=-1, keepdims=True)         # (tile_t, 1)

    # exact reciprocal: approx=True risks the 1e-4 aux tolerance (peaked softmax)
    inv_s = pl.reciprocal(s)

    # ragged-last-tile mask folded into the narrow reciprocal, not the wide p
    row = jax.lax.broadcasted_iota(jnp.int32, (tile_t, 1), 0) + i * tile_t
    valid = (row < total_tokens).astype(jnp.float32)
    inv_s_m = inv_s * valid                                    # (tile_t, 1)

    # per-row entropy via the logsumexp identity (1 log per row):
    #   H = logsumexp(l) - sum(p*l) = log(s) - (1/s) * sum(e * (l - m))
    h = jnp.log(s) - inv_s * ses                               # (tile_t, 1)
    esum_ref[...] = jnp.sum(h * valid) * jnp.ones((1, 1, 1), jnp.float32)

    # padded rows have inv_s_m = 0 -> p = 0, so psum needs no extra masking.
    # TODO(synk): if bundles show VPU (not EUP) is the critical slot, replace
    # this with an MXU matvec psum = dot(inv_s_m^T, e) and drop p entirely.
    p = e * inv_s_m                                            # (tile_t, CB)
    psum_ref[...] = jnp.sum(p, axis=0, keepdims=True).reshape(
        1, 1, CODEBOOK_SIZE)


def lfq_pallas(tokens, w_in, b_in, w_out, b_out, w_fused, b_fused, mask_col,
               *, tile_t):
    assert tile_t % 8 == 0 and tile_t <= 4096     # v7x 64 MiB VMEM budget
    T = tokens.shape[0]
    nb = pl.cdiv(T, tile_t)
    Tp = nb * tile_t
    tokens_p = jnp.pad(tokens, ((0, Tp - T), (0, 0)))

    kernel = functools.partial(lfq_kernel, total_tokens=T, tile_t=tile_t)

    x_p, idx_p, psum, esum = pl.pallas_call(
        kernel,
        out_shape=(
            jax.ShapeDtypeStruct((Tp, DIM), jnp.float32),          # projected tokens
            jax.ShapeDtypeStruct((Tp, 1), jnp.int32),              # indices per token
            jax.ShapeDtypeStruct((nb, 1, CODEBOOK_SIZE), jnp.float32),  # sum_t p
            jax.ShapeDtypeStruct((nb, 1, 1), jnp.float32),         # sum_t H_t
        ),
        grid=(nb,),
        in_specs=[
            pl.BlockSpec((tile_t, DIM), lambda i: (i, 0)),
            # small weight / codebook blocks: constant index_map -> VMEM-resident
            pl.BlockSpec((DIM, CODEBOOK_DIM), lambda i: (0, 0)),
            pl.BlockSpec((1, CODEBOOK_DIM), lambda i: (0, 0)),
            pl.BlockSpec((CODEBOOK_DIM, DIM), lambda i: (0, 0)),
            pl.BlockSpec((1, DIM), lambda i: (0, 0)),
            pl.BlockSpec((DIM, CODEBOOK_SIZE), lambda i: (0, 0)),
            pl.BlockSpec((1, CODEBOOK_SIZE), lambda i: (0, 0)),
            pl.BlockSpec((CODEBOOK_DIM, 1), lambda i: (0, 0)),
        ],
        out_specs=(
            pl.BlockSpec((tile_t, DIM), lambda i: (i, 0)),
            pl.BlockSpec((tile_t, 1), lambda i: (i, 0)),
            pl.BlockSpec((1, 1, CODEBOOK_SIZE), lambda i: (i, 0, 0)),
            pl.BlockSpec((1, 1, 1), lambda i: (i, 0, 0)),
        ),
        compiler_params=pltpu.CompilerParams(
            dimension_semantics=("parallel",),      # no cross-step state -> megacore OK
            vmem_limit_bytes=32 * 1024 * 1024,      # safe on v5e/v6e/v7x for tile_t<=4096
        ),
        cost_estimate=pl.CostEstimate(
            flops=2 * Tp * (DIM * CODEBOOK_DIM
                            + CODEBOOK_DIM * DIM
                            + DIM * CODEBOOK_SIZE
                            + CODEBOOK_DIM),
            transcendentals=Tp * (CODEBOOK_SIZE + 2),        # exp + log + reciprocal
            bytes_accessed=Tp * (2 * DIM * 4 + 4) + 20 * 1024,
        ),
    )(tokens_p, w_in, b_in, w_out, b_out, w_fused, b_fused, mask_col)

    return x_p[:T], idx_p[:T], psum, esum


# ------------------------- wrapper (glue) ----------------------------
def build_codebook_buffers():
    codes = jnp.arange(CODEBOOK_SIZE, dtype=jnp.int32)
    mask = (2 ** jnp.arange(CODEBOOK_DIM - 1, -1, -1)).astype(jnp.int32)   # MSB first
    bits = ((codes[:, None] & mask[None, :]) != 0).astype(jnp.float32)
    codebook = bits * 2.0 * CODEBOOK_SCALE - CODEBOOK_SCALE                # (CB, CD)
    mask_col = mask.astype(jnp.float32)[:, None]                           # (CD, 1)
    return codebook, mask_col


def _pick_tile_t(total_tokens, tile_t):
    # v7x megacore: keep >= 2 grid steps so the parallel token axis can feed
    # both TensorCores; also bound tile_t for the 64 MiB v7x VMEM budget.
    half = max(8, ((-(-total_tokens // 2)) + 7) // 8 * 8)   # round_up(ceil(T/2), 8)
    return int(max(8, min(tile_t, half, 4096)))


@functools.partial(jax.jit, static_argnames=("tile_t",))
def lfq_forward(x_nchw, w_in, b_in, w_out, b_out, codebook, mask_col, *,
                tile_t=2048):
    B, C, H, W = x_nchw.shape
    T = B * H * W
    tokens = jnp.transpose(x_nchw, (0, 2, 3, 1)).reshape(T, C).astype(jnp.float32)

    # Fold project_in AND the 2*inv_temperature logit scale into the
    # codebook-distance matmul (entropy path only) — tiny one-time wrapper op.
    w_fused = (2.0 * INV_TEMPERATURE) * (w_in @ codebook.T)    # (DIM, CODEBOOK_SIZE)
    b_fused = (2.0 * INV_TEMPERATURE) * (b_in @ codebook.T)    # (1, CODEBOOK_SIZE)

    tile_eff = _pick_tile_t(T, tile_t)
    x_tok, idx_tok, psum, esum = lfq_pallas(
        tokens, w_in, b_in, w_out, b_out, w_fused, b_fused, mask_col,
        tile_t=tile_eff)

    # finalize the entropy aux loss from per-tile partial sums (tiny XLA reduce)
    per_sample_entropy = jnp.sum(esum) / T
    avg_prob = jnp.sum(psum, axis=(0, 1)) / T                              # (CB,)
    codebook_entropy = jnp.sum(-avg_prob * jnp.log(jnp.clip(avg_prob, LOG_EPS, None)))
    entropy_aux = per_sample_entropy - DIVERSITY_GAMMA * codebook_entropy
    aux = entropy_aux * ENTROPY_LOSS_WEIGHT + 0.0 * COMMITMENT_LOSS_WEIGHT

    x_out = jnp.transpose(x_tok.reshape(B, H, W, C), (0, 3, 1, 2))
    # keep_num_codebooks_dim = False -> drop the trailing codebook axis
    indices = idx_tok.reshape(B, H, W)
    return x_out, aux, indices


# ------------------------- pure-JAX reference ------------------------
def lfq_reference(x_nchw, w_in, b_in, w_out, b_out, codebook, mask_col):
    B, C, H, W = x_nchw.shape
    t = jnp.transpose(x_nchw, (0, 2, 3, 1)).reshape(B * H * W, C).astype(jnp.float32)
    z = t @ w_in + b_in
    pos = z > 0.0
    q = jnp.where(pos, CODEBOOK_SCALE, -CODEBOOK_SCALE).astype(jnp.float32)
    idx = jnp.sum(pos.astype(jnp.float32) * mask_col[:, 0][None, :],
                  axis=-1).astype(jnp.int32)
    x_out = q @ w_out + b_out
    logits = 2.0 * INV_TEMPERATURE * (z @ codebook.T)
    prob = jax.nn.softmax(logits, axis=-1)

    def ent(p):
        return jnp.sum(-p * jnp.log(jnp.clip(p, LOG_EPS, None)), axis=-1)

    pse = jnp.mean(ent(prob))
    ce = ent(jnp.mean(prob, axis=0))
    aux = (pse - DIVERSITY_GAMMA * ce) * ENTROPY_LOSS_WEIGHT
    return (jnp.transpose(x_out.reshape(B, H, W, C), (0, 3, 1, 2)),
            aux, idx.reshape(B, H, W))


# ------------------------------- main --------------------------------
if __name__ == "__main__":
    key = jax.random.PRNGKey(0)
    k1, k2, k3, k4, k5 = jax.random.split(key, 5)

    # deterministic synthetic parameters (nn.Linear-shaped, stored (in, out))
    w_in = 0.3 * jax.random.normal(k1, (DIM, CODEBOOK_DIM), jnp.float32)
    b_in = 0.1 * jax.random.normal(k2, (1, CODEBOOK_DIM), jnp.float32)
    w_out = 0.3 * jax.random.normal(k3, (CODEBOOK_DIM, DIM), jnp.float32)
    b_out = 0.1 * jax.random.normal(k4, (1, DIM), jnp.float32)
    codebook, mask_col = build_codebook_buffers()

    # NCHW input, channels == dim.  Spatial 18x18 -> T = 2*18*18 = 648 tokens,
    # which at tile_t=256 exercises multiple grid steps AND a ragged last tile.
    x = jax.random.normal(k5, (2, DIM, 18, 18), jnp.float32)

    x_out, aux_loss, indices = lfq_forward(x, w_in, b_in, w_out, b_out,
                                           codebook, mask_col, tile_t=256)
    jax.block_until_ready((x_out, aux_loss, indices))

    x_ref, aux_ref, idx_ref = lfq_reference(x, w_in, b_in, w_out, b_out,
                                            codebook, mask_col)
    assert x_out.shape == x.shape and indices.shape == (2, 18, 18)
    assert jnp.allclose(x_out, x_ref, atol=1e-5, rtol=1e-5)
    assert jnp.array_equal(indices, idx_ref)
    assert jnp.allclose(aux_loss, aux_ref, atol=1e-4, rtol=1e-4)

    # TODO(synk): frac_per_sample_entropy < 1 (random token subsampling), the
    # optional distributed all-reduce of avg_prob, eval-mode (zero-loss) branch
    # and straight-through gradient semantics are training/backward-only
    # details not expressed in this forward kernel; bf16 exp (v6e/v7x) and the
    # MXU-matvec psum are deferred pending bundle confirmation of the critical
    # slot and the 1e-4 aux tolerance.
    print("KERNEL_OK")
</pallas_src>

<mosaic_0001>
module attributes {stable_mosaic.version = 11 : i64} {
  func.func @lfq_kernel(%arg0: i32, %arg1: memref<256x16xf32, #tpu.memory_space<vmem>>, %arg2: memref<16x8xf32, #tpu.memory_space<vmem>>, %arg3: memref<1x8xf32, #tpu.memory_space<vmem>>, %arg4: memref<8x16xf32, #tpu.memory_space<vmem>>, %arg5: memref<1x16xf32, #tpu.memory_space<vmem>>, %arg6: memref<16x256xf32, #tpu.memory_space<vmem>>, %arg7: memref<1x256xf32, #tpu.memory_space<vmem>>, %arg8: memref<8x1xf32, #tpu.memory_space<vmem>>, %arg9: memref<256x16xf32, #tpu.memory_space<vmem>>, %arg10: memref<256x1xi32, #tpu.memory_space<vmem>>, %arg11: memref<1x1x256xf32, #tpu.memory_space<vmem>>, %arg12: memref<1x1x1xf32, #tpu.memory_space<vmem>>) attributes {dimension_semantics = [#tpu.dimension_semantics<parallel>], iteration_bounds = array<i64: 3>, scalar_prefetch = 0 : i64, scratch_operands = 0 : i64, tpu.core_type = #tpu.core_type<tc>, window_params = [{transform_indices = @transform_0, window_bounds = array<i64: 256, 16>}, {pipeline_mode = #tpu.pipeline_mode<synchronous>, transform_indices = @transform_1, window_bounds = array<i64: 16, 8>}, {pipeline_mode = #tpu.pipeline_mode<synchronous>, transform_indices = @transform_2, window_bounds = array<i64: 1, 8>}, {pipeline_mode = #tpu.pipeline_mode<synchronous>, transform_indices = @transform_3, window_bounds = array<i64: 8, 16>}, {pipeline_mode = #tpu.pipeline_mode<synchronous>, transform_indices = @transform_4, window_bounds = array<i64: 1, 16>}, {pipeline_mode = #tpu.pipeline_mode<synchronous>, transform_indices = @transform_5, window_bounds = array<i64: 16, 256>}, {pipeline_mode = #tpu.pipeline_mode<synchronous>, transform_indices = @transform_6, window_bounds = array<i64: 1, 256>}, {pipeline_mode = #tpu.pipeline_mode<synchronous>, transform_indices = @transform_7, window_bounds = array<i64: 8, 1>}, {transform_indices = @transform_8, window_bounds = array<i64: 256, 16>}, {transform_indices = @transform_9, window_bounds = array<i64: 256, 1>}, {transform_indices = @transform_10, window_bounds = array<i64: 1, 1, 256>}, {transform_indices = @transform_11, window_bounds = array<i64: 1, 1, 1>}]} {
    %c0 = arith.constant 0 : index
    %c0_0 = arith.constant 0 : index
    %0 = vector.load %arg1[%c0, %c0_0] : memref<256x16xf32, #tpu.memory_space<vmem>>, vector<256x16xf32>
    %c0_1 = arith.constant 0 : index
    %c0_2 = arith.constant 0 : index
    %1 = vector.load %arg2[%c0_1, %c0_2] : memref<16x8xf32, #tpu.memory_space<vmem>>, vector<16x8xf32>
    %cst = arith.constant dense<0.000000e+00> : vector<256x8xf32>
    %2 = tpu.matmul %0, %1, %cst {dimension_numbers = #tpu.dot_dimension_numbers<[1], [0], [0], [1], [0, 0, 1, 1], [], []>} : vector<256x16xf32>, vector<16x8xf32>, vector<256x8xf32> -> vector<256x8xf32>
    %c0_3 = arith.constant 0 : index
    %c0_4 = arith.constant 0 : index
    %3 = vector.load %arg3[%c0_3, %c0_4] : memref<1x8xf32, #tpu.memory_space<vmem>>, vector<1x8xf32>
    %4 = vector.broadcast %3 : vector<1x8xf32> to vector<256x8xf32>
    %5 = arith.addf %2, %4 : vector<256x8xf32>
    %cst_5 = arith.constant 0.000000e+00 : f32
    %6 = vector.broadcast %cst_5 : f32 to vector<256x8xf32>
    %7 = arith.cmpf ogt, %5, %6 : vector<256x8xf32>
    %cst_6 = arith.constant 1.000000e+00 : f32
    %cst_7 = arith.constant -1.000000e+00 : f32
    %8 = vector.broadcast %cst_6 : f32 to vector<256x8xf32>
    %9 = vector.broadcast %cst_7 : f32 to vector<256x8xf32>
    %10 = arith.select %7, %8, %9 : vector<256x8xi1>, vector<256x8xf32>
    %11 = arith.extui %7 : vector<256x8xi1> to vector<256x8xi32>
    %12 = arith.sitofp %11 : vector<256x8xi32> to vector<256x8xf32>
    %c0_8 = arith.constant 0 : index
    %c0_9 = arith.constant 0 : index
    %13 = vector.load %arg8[%c0_8, %c0_9] : memref<8x1xf32, #tpu.memory_space<vmem>>, vector<8x1xf32>
    %cst_10 = arith.constant dense<0.000000e+00> : vector<256x1xf32>
    %14 = tpu.matmul %12, %13, %cst_10 {dimension_numbers = #tpu.dot_dimension_numbers<[1], [0], [0], [1], [0, 0, 1, 1], [], []>} : vector<256x8xf32>, vector<8x1xf32>, vector<256x1xf32> -> vector<256x1xf32>
    %15 = arith.fptosi %14 : vector<256x1xf32> to vector<256x1xi32>
    %c0_11 = arith.constant 0 : index
    %c0_12 = arith.constant 0 : index
    %16 = vector.load %arg10[%c0_11, %c0_12] : memref<256x1xi32, #tpu.memory_space<vmem>>, vector<256x1xi32>
    tpu.vector_store %arg10[%c0_11, %c0_12], %15 {strides = array<i32>} : memref<256x1xi32, #tpu.memory_space<vmem>>, vector<256x1xi32>,
    %c0_13 = arith.constant 0 : index
    %c0_14 = arith.constant 0 : index
    %17 = vector.load %arg4[%c0_13, %c0_14] : memref<8x16xf32, #tpu.memory_space<vmem>>, vector<8x16xf32>
    %cst_15 = arith.constant dense<0.000000e+00> : vector<256x16xf32>
    %18 = tpu.matmul %10, %17, %cst_15 {dimension_numbers = #tpu.dot_dimension_numbers<[1], [0], [0], [1], [0, 0, 1, 1], [], []>} : vector<256x8xf32>, vector<8x16xf32>, vector<256x16xf32> -> vector<256x16xf32>
    %c0_16 = arith.constant 0 : index
    %c0_17 = arith.constant 0 : index
    %19 = vector.load %arg5[%c0_16, %c0_17] : memref<1x16xf32, #tpu.memory_space<vmem>>, vector<1x16xf32>
    %20 = vector.broadcast %19 : vector<1x16xf32> to vector<256x16xf32>
    %21 = arith.addf %18, %20 : vector<256x16xf32>
    %c0_18 = arith.constant 0 : index
    %c0_19 = arith.constant 0 : index
    %22 = vector.load %arg9[%c0_18, %c0_19] : memref<256x16xf32, #tpu.memory_space<vmem>>, vector<256x16xf32>
    tpu.vector_store %arg9[%c0_18, %c0_19], %21 {strides = array<i32>} : memref<256x16xf32, #tpu.memory_space<vmem>>, vector<256x16xf32>,
    %c0_20 = arith.constant 0 : index
    %c0_21 = arith.constant 0 : index
    %23 = vector.load %arg6[%c0_20, %c0_21] : memref<16x256xf32, #tpu.memory_space<vmem>>, vector<16x256xf32>
    %cst_22 = arith.constant dense<0.000000e+00> : vector<256x256xf32>
    %24 = tpu.matmul %0, %23, %cst_22 {dimension_numbers = #tpu.dot_dimension_numbers<[1], [0], [0], [1], [0, 0, 1, 1], [], []>} : vector<256x16xf32>, vector<16x256xf32>, vector<256x256xf32> -> vector<256x256xf32>
    %c0_23 = arith.constant 0 : index
    %c0_24 = arith.constant 0 : index
    %25 = vector.load %arg7[%c0_23, %c0_24] : memref<1x256xf32, #tpu.memory_space<vmem>>, vector<1x256xf32>
    %26 = vector.broadcast %25 : vector<1x256xf32> to vector<256x256xf32>
    %27 = arith.addf %24, %26 : vector<256x256xf32>
    %28 = math.absf %5 : vector<256x8xf32>
    %cst_25 = arith.constant dense<0.000000e+00> : vector<256xf32>
    %29 = vector.multi_reduction <add>, %28, %cst_25 [1] : vector<256x8xf32> to vector<256xf32>
    %30 = vector.shape_cast %29 : vector<256xf32> to vector<256x1xf32>
    %cst_26 = arith.constant 2.000000e+02 : f32
    %31 = vector.broadcast %cst_26 : f32 to vector<256x1xf32>
    %32 = arith.mulf %31, %30 : vector<256x1xf32>
    %33 = vector.broadcast %32 : vector<256x1xf32> to vector<256x256xf32>
    %34 = arith.subf %27, %33 : vector<256x256xf32>
    %35 = math.exp %34 : vector<256x256xf32>
    %cst_27 = arith.constant dense<0.000000e+00> : vector<256xf32>
    %36 = vector.multi_reduction <add>, %35, %cst_27 [1] : vector<256x256xf32> to vector<256xf32>
    %37 = vector.shape_cast %36 : vector<256xf32> to vector<256x1xf32>
    %38 = arith.mulf %35, %34 : vector<256x256xf32>
    %cst_28 = arith.constant dense<0.000000e+00> : vector<256xf32>
    %39 = vector.multi_reduction <add>, %38, %cst_28 [1] : vector<256x256xf32> to vector<256xf32>
    %40 = vector.shape_cast %39 : vector<256xf32> to vector<256x1xf32>
    %41 = tpu.reciprocal %37 : vector<256x1xf32> -> vector<256x1xf32>
    %42 = tpu.iota {dimensions = array<i32: 0>} : vector<256x1xi32>
    %c256_i32 = arith.constant 256 : i32
    %43 = arith.muli %arg0, %c256_i32 : i32
    %44 = vector.broadcast %43 : i32 to vector<256x1xi32>
    %45 = arith.addi %42, %44 : vector<256x1xi32>
    %c648_i32 = arith.constant 648 : i32
    %46 = vector.broadcast %c648_i32 : i32 to vector<256x1xi32>
    %47 = arith.cmpi slt, %45, %46 : vector<256x1xi32>
    %48 = arith.extui %47 : vector<256x1xi1> to vector<256x1xi32>
    %49 = arith.sitofp %48 : vector<256x1xi32> to vector<256x1xf32>
    %50 = arith.mulf %41, %49 : vector<256x1xf32>
    %51 = math.log %37 : vector<256x1xf32>
    %52 = arith.mulf %41, %40 : vector<256x1xf32>
    %53 = arith.subf %51, %52 : vector<256x1xf32>
    %54 = arith.mulf %53, %49 : vector<256x1xf32>
    %55 = vector.shape_cast %54 : vector<256x1xf32> to vector<1x256x1xf32>
    %cst_29 = arith.constant dense<0.000000e+00> : vector<1xf32>
    %56 = vector.multi_reduction <add>, %55, %cst_29 [1, 2] : vector<1x256x1xf32> to vector<1xf32>
    %57 = vector.shape_cast %56 : vector<1xf32> to vector<1x1x1xf32>
    %58 = vector.extract %57[0, 0, 0] : f32 from vector<1x1x1xf32>
    %cst_30 = arith.constant 1.000000e+00 : f32
    %59 = vector.broadcast %cst_30 : f32 to vector<1x1x1xf32>
    %60 = vector.broadcast %58 : f32 to vector<1x1x1xf32>
    %61 = arith.mulf %60, %59 : vector<1x1x1xf32>
    %c0_31 = arith.constant 0 : index
    %c0_32 = arith.constant 0 : index
    %c0_33 = arith.constant 0 : index
    %62 = vector.load %arg12[%c0_31, %c0_32, %c0_33] : memref<1x1x1xf32, #tpu.memory_space<vmem>>, vector<1x1x1xf32>
    tpu.vector_store %arg12[%c0_31, %c0_32, %c0_33], %61 {strides = array<i32>} : memref<1x1x1xf32, #tpu.memory_space<vmem>>, vector<1x1x1xf32>,
    %63 = vector.broadcast %50 : vector<256x1xf32> to vector<256x256xf32>
    %64 = arith.mulf %35, %63 : vector<256x256xf32>
    %cst_34 = arith.constant dense<0.000000e+00> : vector<256xf32>
    %65 = vector.multi_reduction <add>, %64, %cst_34 [0] : vector<256x256xf32> to vector<256xf32>
    %66 = vector.shape_cast %65 : vector<256xf32> to vector<1x256xf32>
    %67 = vector.shape_cast %66 : vector<1x256xf32> to vector<1x1x256xf32>
    %c0_35 = arith.constant 0 : index
    %c0_36 = arith.constant 0 : index
    %c0_37 = arith.constant 0 : index
    %68 = vector.load %arg11[%c0_35, %c0_36, %c0_37] : memref<1x1x256xf32, #tpu.memory_space<vmem>>, vector<1x1x256xf32>
    tpu.vector_store %arg11[%c0_35, %c0_36, %c0_37], %67 {strides = array<i32>} : memref<1x1x256xf32, #tpu.memory_space<vmem>>, vector<1x1x256xf32>,
    return
  }
  func.func @transform_0(%arg0: i32) -> (i32, i32) {
    %c0_i32 = arith.constant 0 : i32
    %c0_i32_0 = arith.constant 0 : i32
    return %arg0, %c0_i32 : i32, i32
  }
  func.func @transform_1(%arg0: i32) -> (i32, i32) {
    %c0_i32 = arith.constant 0 : i32
    %c0_i32_0 = arith.constant 0 : i32
    %c0_i32_1 = arith.constant 0 : i32
    return %c0_i32, %c0_i32_0 : i32, i32
  }
  func.func @transform_2(%arg0: i32) -> (i32, i32) {
    %c0_i32 = arith.constant 0 : i32
    %c0_i32_0 = arith.constant 0 : i32
    %c0_i32_1 = arith.constant 0 : i32
    return %c0_i32, %c0_i32_0 : i32, i32
  }
  func.func @transform_3(%arg0: i32) -> (i32, i32) {
    %c0_i32 = arith.constant 0 : i32
    %c0_i32_0 = arith.constant 0 : i32
    %c0_i32_1 = arith.constant 0 : i32
    return %c0_i32, %c0_i32_0 : i32, i32
  }
  func.func @transform_4(%arg0: i32) -> (i32, i32) {
    %c0_i32 = arith.constant 0 : i32
    %c0_i32_0 = arith.constant 0 : i32
    %c0_i32_1 = arith.constant 0 : i32
    return %c0_i32, %c0_i32_0 : i32, i32
  }
  func.func @transform_5(%arg0: i32) -> (i32, i32) {
    %c0_i32 = arith.constant 0 : i32
    %c0_i32_0 = arith.constant 0 : i32
    %c0_i32_1 = arith.constant 0 : i32
    return %c0_i32, %c0_i32_0 : i32, i32
  }
  func.func @transform_6(%arg0: i32) -> (i32, i32) {
    %c0_i32 = arith.constant 0 : i32
    %c0_i32_0 = arith.constant 0 : i32
    %c0_i32_1 = arith.constant 0 : i32
    return %c0_i32, %c0_i32_0 : i32, i32
  }
  func.func @transform_7(%arg0: i32) -> (i32, i32) {
    %c0_i32 = arith.constant 0 : i32
    %c0_i32_0 = arith.constant 0 : i32
    %c0_i32_1 = arith.constant 0 : i32
    return %c0_i32, %c0_i32_0 : i32, i32
  }
  func.func @transform_8(%arg0: i32) -> (i32, i32) {
    %c0_i32 = arith.constant 0 : i32
    %c0_i32_0 = arith.constant 0 : i32
    return %arg0, %c0_i32 : i32, i32
  }
  func.func @transform_9(%arg0: i32) -> (i32, i32) {
    %c0_i32 = arith.constant 0 : i32
    %c0_i32_0 = arith.constant 0 : i32
    return %arg0, %c0_i32 : i32, i32
  }
  func.func @transform_10(%arg0: i32) -> (i32, i32, i32) {
    %c0_i32 = arith.constant 0 : i32
    %c0_i32_0 = arith.constant 0 : i32
    %c0_i32_1 = arith.constant 0 : i32
    return %arg0, %c0_i32, %c0_i32_0 : i32, i32, i32
  }
  func.func @transform_11(%arg0: i32) -> (i32, i32, i32) {
    %c0_i32 = arith.constant 0 : i32
    %c0_i32_0 = arith.constant 0 : i32
    %c0_i32_1 = arith.constant 0 : i32
    return %arg0, %c0_i32, %c0_i32_0 : i32, i32, i32
  }
}

</mosaic_0001>

<llo_original>
// kernel: lfq_forward.1
$region0: #{lfq_forward.1}
  #allocation0 [shape = 'u32[]', space=smem, size = 0x4, offset = 0x4, fixed_abs, tag = 'smem constant byte address 0x4 - core index']
  #allocation1 [shape = 'u32[144,128]{1,0:T(1,128)}', space=vmem, size = 0x12000, scoped, tag = 'internal scratch']
  %s0 = inlined_call_operand.vmem [shape: f32[768,16], index: 0, kind: input, shape index: {}]
  %s1 = inlined_call_operand.vmem [shape: f32[16,8], index: 1, kind: input, shape index: {}]
  %s2 = inlined_call_operand.vmem [shape: f32[1,8], index: 2, kind: input, shape index: {}]
  %s3 = inlined_call_operand.vmem [shape: f32[8,16], index: 3, kind: input, shape index: {}]
  %s4 = inlined_call_operand.vmem [shape: f32[1,16], index: 4, kind: input, shape index: {}]
  %s5 = inlined_call_operand.vmem [shape: f32[16,256], index: 5, kind: input, shape index: {}]
  %s6 = inlined_call_operand.vmem [shape: f32[1,256], index: 6, kind: input, shape index: {}]
  %s7 = inlined_call_operand.vmem [shape: f32[8,1], index: 7, kind: input, shape index: {}]
  %s8 = inlined_call_operand.vmem [shape: f32[768,16], index: 8, kind: output, shape index: {0}]
  %s9 = inlined_call_operand.vmem [shape: s32[768,1], index: 9, kind: output, shape index: {1}]
  %s10 = inlined_call_operand.vmem [shape: f32[3,1,256], index: 10, kind: output, shape index: {2}]
  %s11 = inlined_call_operand.vmem [shape: f32[3,1,1], index: 11, kind: output, shape index: {3}]
  %12 = xla_tuple %s8, %s9, %s10, %s11
  %s13 = sld [smem:[#allocation0]]
  $region89: #{lfq_forward.1} parent=0
    _
  %s15 = ssub.s32 1, %s13
  %s16 = scalar_select 0, %s15, %s13
  loop: start=0, step=1, limit=5
  $region2: #{lfq_forward.1} parent=0 // loop_pre_header
    _
  $region3: #{lfq_forward.1} parent=0 // loop_header
    %s18 = sphi 0, %s22
    %p19 = scmp.ge.s32.totalorder %s18, 5
    %s28 = sphi 0, %s30
    %s31 = sphi 0, %s28
    %s32 = sphi 0, %s31
    %s48 = sphi 0, %s32
    %s52 = sphi 0, %s52
    %s54 = sphi 0, %s52
    %s55 = sphi 0, %s54
    %s69 = sphi 0, %s55
    %s73 = sphi 0, %s73
    %s75 = sphi 0, %s73
    %s76 = sphi 0, %s75
    %s90 = sphi 0, %s76
    %s94 = sphi 0, %s94
    %s96 = sphi 0, %s94
    %s97 = sphi 0, %s96
    %s111 = sphi 0, %s97
    %s115 = sphi 0, %s115
    %s117 = sphi 0, %s115
    %s118 = sphi 0, %s117
    %s132 = sphi 0, %s118
    %s136 = sphi 0, %s136
    %s138 = sphi 0, %s136
    %s139 = sphi 0, %s138
    %s153 = sphi 0, %s139
    %s157 = sphi 0, %s157
    %s159 = sphi 0, %s157
    %s160 = sphi 0, %s159
    %s174 = sphi 0, %s160
    %s178 = sphi 0, %s178
    %s180 = sphi 0, %s178
    %s181 = sphi 0, %s180
    %s195 = sphi 0, %s181
    %s201 = sphi 0, %s203
    %s204 = sphi 0, %s201
    %s205 = sphi 0, %s204
    %s221 = sphi 0, %s205
    %s227 = sphi 0, %s229
    %s230 = sphi 0, %s227
    %s231 = sphi 0, %s230
    %s247 = sphi 0, %s231
    %s253 = sphi 0, %s255
    %s256 = sphi 0, %s253
    %s257 = sphi 0, %s256
    %s273 = sphi 0, %s257
    %s279 = sphi 0, %s281
    %s282 = sphi 0, %s279
    %s283 = sphi 0, %s282
    %s299 = sphi 0, %s283
  $region4: #{lfq_forward.1} parent=0 // loop_header_branch
    %21 = sbr.rel (%p19) target = $region8
  $region5: #{lfq_forward.1} parent=0 // loop_body
    %s23 = ssub.s32 %s18, 1
    %s24 = ssub.s32 %s18, 2
    %s25 = sadd.s32 %s18, 1
    %s26 = ssub.s32 %s18, %s25
    %p27 = scmp.eq.s32.totalorder %s26, 0
    %s29 = sadd.s32 %s28, 1
    %s30 = scalar_select %p27, %s28, %s29
    %p33 = pneg %p27
    %p34 = scmp.eq.s32.totalorder %s18, 2
    %p35 = por %p33, %p34
    %p36 = scmp.ne.s32.totalorder %s28, %s31
    %p37 = scmp.eq.s32.totalorder %s18, 0
    %p38 = por %p36, %p37
    %p39 = scmp.ne.s32.totalorder %s28, %s31
    %p40 = scmp.eq.s32.totalorder %s23, 2
    %p41 = por %p39, %p40
    %p42 = scmp.ne.s32.totalorder %s31, %s32
    %p43 = scmp.eq.s32.totalorder %s23, 0
    %p44 = por %p42, %p43
    %p45 = scmp.ne.s32.totalorder %s31, %s32
    %p46 = scmp.eq.s32.totalorder %s24, 2
    %p47 = por %p45, %p46
    %p49 = scmp.ne.s32.totalorder %s32, %s48
    %p50 = scmp.eq.s32.totalorder %s24, 0
    %p51 = por %p49, %p50
    %s53 = sadd.s32 %s52, 1
    %p56 = scmp.eq.s32.totalorder %s18, 2
    %p57 = scmp.ne.s32.totalorder %s52, %s54
    %p58 = scmp.eq.s32.totalorder %s18, 0
    %p59 = por %p57, %p58
    %p60 = scmp.ne.s32.totalorder %s52, %s54
    %p61 = scmp.eq.s32.totalorder %s23, 2
    %p62 = por %p60, %p61
    %p63 = scmp.ne.s32.totalorder %s54, %s55
    %p64 = scmp.eq.s32.totalorder %s23, 0
    %p65 = por %p63, %p64
    %p66 = scmp.ne.s32.totalorder %s54, %s55
    %p67 = scmp.eq.s32.totalorder %s24, 2
    %p68 = por %p66, %p67
    %p70 = scmp.ne.s32.totalorder %s55, %s69
    %p71 = scmp.eq.s32.totalorder %s24, 0
    %p72 = por %p70, %p71
    %s74 = sadd.s32 %s73, 1
    %p77 = scmp.eq.s32.totalorder %s18, 2
    %p78 = scmp.ne.s32.totalorder %s73, %s75
    %p79 = scmp.eq.s32.totalorder %s18, 0
    %p80 = por %p78, %p79
    %p81 = scmp.ne.s32.totalorder %s73, %s75
    %p82 = scmp.eq.s32.totalorder %s23, 2
    %p83 = por %p81, %p82
    %p84 = scmp.ne.s32.totalorder %s75, %s76
    %p85 = scmp.eq.s32.totalorder %s23, 0
    %p86 = por %p84, %p85
    %p87 = scmp.ne.s32.totalorder %s75, %s76
    %p88 = scmp.eq.s32.totalorder %s24, 2
    %p89 = por %p87, %p88
    %p91 = scmp.ne.s32.totalorder %s76, %s90
    %p92 = scmp.eq.s32.totalorder %s24, 0
    %p93 = por %p91, %p92
    %s95 = sadd.s32 %s94, 1
    %p98 = scmp.eq.s32.totalorder %s18, 2
    %p99 = scmp.ne.s32.totalorder %s94, %s96
    %p100 = scmp.eq.s32.totalorder %s18, 0
    %p101 = por %p99, %p100
    %p102 = scmp.ne.s32.totalorder %s94, %s96
    %p103 = scmp.eq.s32.totalorder %s23, 2
    %p104 = por %p102, %p103
    %p105 = scmp.ne.s32.totalorder %s96, %s97
    %p106 = scmp.eq.s32.totalorder %s23, 0
    %p107 = por %p105, %p106
    %p108 = scmp.ne.s32.totalorder %s96, %s97
    %p109 = scmp.eq.s32.totalorder %s24, 2
    %p110 = por %p108, %p109
    %p112 = scmp.ne.s32.totalorder %s97, %s111
    %p113 = scmp.eq.s32.totalorder %s24, 0
    %p114 = por %p112, %p113
    %s116 = sadd.s32 %s115, 1
    %p119 = scmp.eq.s32.totalorder %s18, 2
    %p120 = scmp.ne.s32.totalorder %s115, %s117
    %p121 = scmp.eq.s32.totalorder %s18, 0
    %p122 = por %p120, %p121
    %p123 = scmp.ne.s32.totalorder %s115, %s117
    %p124 = scmp.eq.s32.totalorder %s23, 2
    %p125 = por %p123, %p124
    %p126 = scmp.ne.s32.totalorder %s117, %s118
    %p127 = scmp.eq.s32.totalorder %s23, 0
    %p128 = por %p126, %p127
    %p129 = scmp.ne.s32.totalorder %s117, %s118
    %p130 = scmp.eq.s32.totalorder %s24, 2
    %p131 = por %p129, %p130
    %p133 = scmp.ne.s32.totalorder %s118, %s132
    %p134 = scmp.eq.s32.totalorder %s24, 0
    %p135 = por %p133, %p134
    %s137 = sadd.s32 %s136, 1
    %p140 = scmp.eq.s32.totalorder %s18, 2
    %p141 = scmp.ne.s32.totalorder %s136, %s138
    %p142 = scmp.eq.s32.totalorder %s18, 0
    %p143 = por %p141, %p142
    %p144 = scmp.ne.s32.totalorder %s136, %s138
    %p145 = scmp.eq.s32.totalorder %s23, 2
    %p146 = por %p144, %p145
    %p147 = scmp.ne.s32.totalorder %s138, %s139
    %p148 = scmp.eq.s32.totalorder %s23, 0
    %p149 = por %p147, %p148
    %p150 = scmp.ne.s32.totalorder %s138, %s139
    %p151 = scmp.eq.s32.totalorder %s24, 2
    %p152 = por %p150, %p151
    %p154 = scmp.ne.s32.totalorder %s139, %s153
    %p155 = scmp.eq.s32.totalorder %s24, 0
    %p156 = por %p154, %p155
    %s158 = sadd.s32 %s157, 1
    %p161 = scmp.eq.s32.totalorder %s18, 2
    %p162 = scmp.ne.s32.totalorder %s157, %s159
    %p163 = scmp.eq.s32.totalorder %s18, 0
    %p164 = por %p162, %p163
    %p165 = scmp.ne.s32.totalorder %s157, %s159
    %p166 = scmp.eq.s32.totalorder %s23, 2
    %p167 = por %p165, %p166
    %p168 = scmp.ne.s32.totalorder %s159, %s160
    %p169 = scmp.eq.s32.totalorder %s23, 0
    %p170 = por %p168, %p169
    %p171 = scmp.ne.s32.totalorder %s159, %s160
    %p172 = scmp.eq.s32.totalorder %s24, 2
    %p173 = por %p171, %p172
    %p175 = scmp.ne.s32.totalorder %s160, %s174
    %p176 = scmp.eq.s32.totalorder %s24, 0
    %p177 = por %p175, %p176
    %s179 = sadd.s32 %s178, 1
    %p182 = scmp.eq.s32.totalorder %s18, 2
    %p183 = scmp.ne.s32.totalorder %s178, %s180
    %p184 = scmp.eq.s32.totalorder %s18, 0
    %p185 = por %p183, %p184
    %p186 = scmp.ne.s32.totalorder %s178, %s180
    %p187 = scmp.eq.s32.totalorder %s23, 2
    %p188 = por %p186, %p187
    %p189 = scmp.ne.s32.totalorder %s180, %s181
    %p190 = scmp.eq.s32.totalorder %s23, 0
    %p191 = por %p189, %p190
    %p192 = scmp.ne.s32.totalorder %s180, %s181
    %p193 = scmp.eq.s32.totalorder %s24, 2
    %p194 = por %p192, %p193
    %p196 = scmp.ne.s32.totalorder %s181, %s195
    %p197 = scmp.eq.s32.totalorder %s24, 0
    %p198 = por %p196, %p197
    %s199 = ssub.s32 %s18, %s25
    %p200 = scmp.eq.s32.totalorder %s199, 0
    %s202 = sadd.s32 %s201, 1
    %s203 = scalar_select %p200, %s201, %s202
    %p206 = pneg %p200
    %p207 = scmp.eq.s32.totalorder %s18, 2
    %p208 = por %p206, %p207
    %p209 = scmp.ne.s32.totalorder %s201, %s204
    %p210 = scmp.eq.s32.totalorder %s18, 0
    %p211 = por %p209, %p210
    %p212 = scmp.ne.s32.totalorder %s201, %s204
    %p213 = scmp.eq.s32.totalorder %s23, 2
    %p214 = por %p212, %p213
    %p215 = scmp.ne.s32.totalorder %s204, %s205
    %p216 = scmp.eq.s32.totalorder %s23, 0
    %p217 = por %p215, %p216
    %p218 = scmp.ne.s32.totalorder %s204, %s205
    %p219 = scmp.eq.s32.totalorder %s24, 2
    %p220 = por %p218, %p219
    %p222 = scmp.ne.s32.totalorder %s205, %s221
    %p223 = scmp.eq.s32.totalorder %s24, 0
    %p224 = por %p222, %p223
    %s225 = ssub.s32 %s18, %s25
    %p226 = scmp.eq.s32.totalorder %s225, 0
    %s228 = sadd.s32 %s227, 1
    %s229 = scalar_select %p226, %s227, %s228
    %p232 = pneg %p226
    %p233 = scmp.eq.s32.totalorder %s18, 2
    %p234 = por %p232, %p233
    %p235 = scmp.ne.s32.totalorder %s227, %s230
    %p236 = scmp.eq.s32.totalorder %s18, 0
    %p237 = por %p235, %p236
    %p238 = scmp.ne.s32.totalorder %s227, %s230
    %p239 = scmp.eq.s32.totalorder %s23, 2
    %p240 = por %p238, %p239
    %p241 = scmp.ne.s32.totalorder %s230, %s231
    %p242 = scmp.eq.s32.totalorder %s23, 0
    %p243 = por %p241, %p242
    %p244 = scmp.ne.s32.totalorder %s230, %s231
    %p245 = scmp.eq.s32.totalorder %s24, 2
    %p246 = por %p244, %p245
    %p248 = scmp.ne.s32.totalorder %s231, %s247
    %p249 = scmp.eq.s32.totalorder %s24, 0
    %p250 = por %p248, %p249
    %s251 = ssub.s32 %s18, %s25
    %p252 = scmp.eq.s32.totalorder %s251, 0
    %s254 = sadd.s32 %s253, 1
    %s255 = scalar_select %p252, %s253, %s254
    %p258 = pneg %p252
    %p259 = scmp.eq.s32.totalorder %s18, 2
    %p260 = por %p258, %p259
    %p261 = scmp.ne.s32.totalorder %s253, %s256
    %p262 = scmp.eq.s32.totalorder %s18, 0
    %p263 = por %p261, %p262
    %p264 = scmp.ne.s32.totalorder %s253, %s256
    %p265 = scmp.eq.s32.totalorder %s23, 2
    %p266 = por %p264, %p265
    %p267 = scmp.ne.s32.totalorder %s256, %s257
    %p268 = scmp.eq.s32.totalorder %s23, 0
    %p269 = por %p267, %p268
    %p270 = scmp.ne.s32.totalorder %s256, %s257
    %p271 = scmp.eq.s32.totalorder %s24, 2
    %p272 = por %p270, %p271
    %p274 = scmp.ne.s32.totalorder %s257, %s273
    %p275 = scmp.eq.s32.totalorder %s24, 0
    %p276 = por %p274, %p275
    %s277 = ssub.s32 %s18, %s25
    %p278 = scmp.eq.s32.totalorder %s277, 0
    %s280 = sadd.s32 %s279, 1
    %s281 = scalar_select %p278, %s279, %s280
    %p284 = pneg %p278
    %p285 = scmp.eq.s32.totalorder %s18, 2
    %p286 = por %p284, %p285
    %p287 = scmp.ne.s32.totalorder %s279, %s282
    %p288 = scmp.eq.s32.totalorder %s18, 0
    %p289 = por %p287, %p288
    %p290 = scmp.ne.s32.totalorder %s279, %s282
    %p291 = scmp.eq.s32.totalorder %s23, 2
    %p292 = por %p290, %p291
    %p293 = scmp.ne.s32.totalorder %s282, %s283
    %p294 = scmp.eq.s32.totalorder %s23, 0
    %p295 = por %p293, %p294
    %p296 = scmp.ne.s32.totalorder %s282, %s283
    %p297 = scmp.eq.s32.totalorder %s24, 2
    %p298 = por %p296, %p297
    %p300 = scmp.ne.s32.totalorder %s283, %s299
    %p301 = scmp.eq.s32.totalorder %s24, 0
    %p302 = por %p300, %p301
    %p303 = scmp.le.s32.totalorder 1, %s18
    %p304 = scmp.lt.s32.totalorder %s18, 4
    %p305 = pnand %p303, %p304
    %p306 = pneg %p305
    // Predicated region
    $region9: #{lfq_forward.1} parent=5 // pred_check
      _
    $region10: #{lfq_forward.1} parent=5 // pred_check_branch
      %308 = sbr.rel (%p305) target = $region12
    $region11: #{lfq_forward.1} parent=5 // pred_region
      %s309 = ssub.s32 %s18, 1
      // Predicated region
      $region13: #{lfq_forward.1} parent=11 // pred_check
        %p310 = pneg %p65
      $region14: #{lfq_forward.1} parent=11 // pred_check_branch
        %312 = sbr.rel (%p310) target = $region16
      $region15: #{lfq_forward.1} parent=11 // pred_region
        _
      $region16: #{lfq_forward.1} parent=11 // pred_fallthru
        _
      // Predicated region
      $region17: #{lfq_forward.1} parent=11 // pred_check
        %p313 = pneg %p86
      $region18: #{lfq_forward.1} parent=11 // pred_check_branch
        %315 = sbr.rel (%p313) target = $region20
      $region19: #{lfq_forward.1} parent=11 // pred_region
        _
      $region20: #{lfq_forward.1} parent=11 // pred_fallthru
        _
      // Predicated region
      $region21: #{lfq_forward.1} parent=11 // pred_check
        %p316 = pneg %p107
      $region22: #{lfq_forward.1} parent=11 // pred_check_branch
        %318 = sbr.rel (%p316) target = $region24
      $region23: #{lfq_forward.1} parent=11 // pred_region
        _
      $region24: #{lfq_forward.1} parent=11 // pred_fallthru
        _
      // Predicated region
      $region25: #{lfq_forward.1} parent=11 // pred_check
        %p319 = pneg %p128
      $region26: #{lfq_forward.1} parent=11 // pred_check_branch
        %321 = sbr.rel (%p319) target = $region28
      $region27: #{lfq_forward.1} parent=11 // pred_region
        _
      $region28: #{lfq_forward.1} parent=11 // pred_fallthru
        _
      // Predicated region
      $region29: #{lfq_forward.1} parent=11 // pred_check
        %p322 = pneg %p149
      $region30: #{lfq_forward.1} parent=11 // pred_check_branch
        %324 = sbr.rel (%p322) target = $region32
      $region31: #{lfq_forward.1} parent=11 // pred_region
        _
      $region32: #{lfq_forward.1} parent=11 // pred_fallthru
        _
      // Predicated region
      $region33: #{lfq_forward.1} parent=11 // pred_check
        %p325 = pneg %p170
      $region34: #{lfq_forward.1} parent=11 // pred_check_branch
        %327 = sbr.rel (%p325) target = $region36
      $region35: #{lfq_forward.1} parent=11 // pred_region
        _
      $region36: #{lfq_forward.1} parent=11 // pred_fallthru
        _
      // Predicated region
      $region37: #{lfq_forward.1} parent=11 // pred_check
        %p328 = pneg %p191
      $region38: #{lfq_forward.1} parent=11 // pred_check_branch
        %330 = sbr.rel (%p328) target = $region40
      $region39: #{lfq_forward.1} parent=11 // pred_region
        _
      $region40: #{lfq_forward.1} parent=11 // pred_fallthru
        _
    $region12: #{lfq_forward.1} parent=5 // pred_fallthru
      _
    %p331 = scmp.lt.s32.totalorder %s18, 3
    // Predicated region
    $region41: #{lfq_forward.1} parent=5 // pred_check
      %p332 = pneg %p331
    $region42: #{lfq_forward.1} parent=5 // pred_check_branch
      %334 = sbr.rel (%p332) target = $region44
    $region43: #{lfq_forward.1} parent=5 // pred_region
      // Predicated region
      $region45: #{lfq_forward.1} parent=43 // pred_check
        %p335 = pneg %p38
      $region46: #{lfq_forward.1} parent=43 // pred_check_branch
        %337 = sbr.rel (%p335) target = $region48
      $region47: #{lfq_forward.1} parent=43 // pred_region
        %s338 = smul.u32 32, %s18
        %p339 = scmp.lt.s32.totalorder %s338, 95
        %s340 = scalar_select %p339, %s338, 95
        %s341 = smul.addr %s340, 8
        %s342 = scalar_lea.vmem %s0, %s341
        %s343 = smul.u32 32, %s18
      $region48: #{lfq_forward.1} parent=43 // pred_fallthru
        _
    $region44: #{lfq_forward.1} parent=5 // pred_fallthru
      _
    %p344 = scmp.le.s32.totalorder 1, %s18
    %p345 = scmp.lt.s32.totalorder %s18, 4
    %p346 = pnand %p344, %p345
    %p347 = pneg %p346
    // Predicated region
    $region49: #{lfq_forward.1} parent=5 // pred_check
      _
    $region50: #{lfq_forward.1} parent=5 // pred_check_branch
      %349 = sbr.rel (%p346) target = $region52
    $region51: #{lfq_forward.1} parent=5 // pred_region
      %s350 = ssub.s32 %s18, 1
      %s351 = smul.u32 32, %s23
      %p352 = scmp.lt.s32.totalorder %s351, 95
      %s353 = scalar_select %p352, %s351, 95
      %s354 = smul.addr %s353, 8
      %s355 = scalar_lea.vmem %s0, %s354
      %p356 = pneg %p44
      %p357 = pneg %p41
      %p358 = pneg %p65
      %p359 = pneg %p62
      %p360 = pneg %p86
      %p361 = pneg %p83
      %p362 = pneg %p107
      %p363 = pneg %p104
      %p364 = pneg %p128
      %p365 = pneg %p125
      %p366 = pneg %p149
      %p367 = pneg %p146
      %p368 = pneg %p170
      %p369 = pneg %p167
      %p370 = pneg %p191
      %p371 = pneg %p188
      %p372 = pneg %p217
      %p373 = pneg %p214
      %s374 = smul.u32 32, %s23
      %p375 = scmp.lt.s32.totalorder %s374, 95
      %s376 = scalar_select %p375, %s374, 95
      %s377 = smul.addr %s376, 8
      %s378 = scalar_lea.vmem %s8, %s377
      %p379 = pneg %p243
      %p380 = pneg %p240
      %s381 = smul.u32 32, %s23
      %p382 = scmp.lt.s32.totalorder %s381, 95
      %s383 = scalar_select %p382, %s381, 95
      %s384 = smul.addr %s383, 8
      %s385 = scalar_lea.vmem %s9, %s384
      %p386 = pneg %p269
      %p387 = pneg %p266
      %p388 = scmp.lt.s32.totalorder %s23, 2
      %s389 = scalar_select %p388, %s23, 2
      %s390 = smul.addr %s389, 2
      %s391 = scalar_lea.vmem %s10, %s390
      %p392 = pneg %p295
      %p393 = pneg %p292
      %p394 = scmp.lt.s32.totalorder %s23, 2
      %s395 = scalar_select %p394, %s23, 2
      %s396 = scalar_lea.vmem %s11, %s395
      %s397 = smul.u32 32, %s23
      %p398 = scmp.lt.s32.totalorder %s397, 95
      %s399 = scalar_select %p398, %s397, 95
      %s400 = smul.addr %s399, 8
      %s401 = scalar_lea.vmem %s0, %s400
      %s402 = smul.u32 32, %s23
      %s403 = smul.u32 32, %s23
      %p404 = scmp.lt.s32.totalorder %s403, 95
      %s405 = scalar_select %p404, %s403, 95
      %s406 = smul.addr %s405, 8
      %s407 = scalar_lea.vmem %s8, %s406
      %s408 = smul.u32 32, %s23
      %s409 = smul.u32 32, %s23
      %p410 = scmp.lt.s32.totalorder %s409, 95
      %s411 = scalar_select %p410, %s409, 95
      %s412 = smul.addr %s411, 8
      %s413 = scalar_lea.vmem %s9, %s412
      %s414 = smul.u32 32, %s23
      %p415 = scmp.lt.s32.totalorder %s23, 2
      %s416 = scalar_select %p415, %s23, 2
      %s417 = smul.addr %s416, 2
      %s418 = scalar_lea.vmem %s10, %s417
      %p419 = scmp.lt.s32.totalorder %s23, 2
      %s420 = scalar_select %p419, %s23, 2
      %s421 = scalar_lea.vmem %s11, %s420
      %v422 = vld [vmem:[%s401] sm:$0xff]
      %v423 = vld [vmem:[%s401 + $0x8] sm:$0xff]
      %v424 = vld [vmem:[%s401 + $0x10] sm:$0xff]
      %v425 = vld [vmem:[%s401 + $0x18] sm:$0xff]
      %v426 = vld [vmem:[%s401 + $0x20] sm:$0xff]
      %v427 = vld [vmem:[%s401 + $0x28] sm:$0xff]
      %v428 = vld [vmem:[%s401 + $0x30] sm:$0xff]
      %v429 = vld [vmem:[%s401 + $0x38] sm:$0xff]
      %v430 = vld [vmem:[%s401 + $0x40] sm:$0xff]
      %v431 = vld [vmem:[%s401 + $0x48] sm:$0xff]
      %v432 = vld [vmem:[%s401 + $0x50] sm:$0xff]
      %v433 = vld [vmem:[%s401 + $0x58] sm:$0xff]
      %v434 = vld [vmem:[%s401 + $0x60] sm:$0xff]
      %v435 = vld [vmem:[%s401 + $0x68] sm:$0xff]
      %v436 = vld [vmem:[%s401 + $0x70] sm:$0xff]
      %v437 = vld [vmem:[%s401 + $0x78] sm:$0xff]
      %v438 = vld [vmem:[%s401 + $0x80] sm:$0xff]
      %v439 = vld [vmem:[%s401 + $0x88] sm:$0xff]
      %v440 = vld [vmem:[%s401 + $0x90] sm:$0xff]
      %v441 = vld [vmem:[%s401 + $0x98] sm:$0xff]
      %v442 = vld [vmem:[%s401 + $0xa0] sm:$0xff]
      %v443 = vld [vmem:[%s401 + $0xa8] sm:$0xff]
      %v444 = vld [vmem:[%s401 + $0xb0] sm:$0xff]
      %v445 = vld [vmem:[%s401 + $0xb8] sm:$0xff]
      %v446 = vld [vmem:[%s401 + $0xc0] sm:$0xff]
      %v447 = vld [vmem:[%s401 + $0xc8] sm:$0xff]
      %v448 = vld [vmem:[%s401 + $0xd0] sm:$0xff]
      %v449 = vld [vmem:[%s401 + $0xd8] sm:$0xff]
      %v450 = vld [vmem:[%s401 + $0xe0] sm:$0xff]
      %v451 = vld [vmem:[%s401 + $0xe8] sm:$0xff]
      %v452 = vld [vmem:[%s401 + $0xf0] sm:$0xff]
      %v453 = vld [vmem:[%s401 + $0xf8] sm:$0xff]
      %v454 = vld [vmem:[%s1] sm:$0xff]
      %v455 = vld [vmem:[%s1 + $0x8] sm:$0xff]
      %v456 = vld [vmem:[%s2] sm:$0x1]
      %v458 = vlaneseq
      %v459 = vshrl.u32 %v458, 7
      %v460 = vsub.s32 0, %v459
      %v461 = vrot.slane %v456, %v460
      %vm463 = vcmask 130048
      %v465 = vsel %vm463, %v422, 0
      %v468 = vsel %vm463, %v423, 0
      %v471 = vsel %vm463, %v424, 0
      %v474 = vsel %vm463, %v425, 0
      %v477 = vsel %vm463, %v426, 0
      %v480 = vsel %vm463, %v427, 0
      %v483 = vsel %vm463, %v428, 0
      %v486 = vsel %vm463, %v429, 0
      %v489 = vsel %vm463, %v430, 0
      %v492 = vsel %vm463, %v431, 0
      %v495 = vsel %vm463, %v432, 0
      %v498 = vsel %vm463, %v433, 0
      %v501 = vsel %vm463, %v434, 0
      %v504 = vsel %vm463, %v435, 0
      %v507 = vsel %vm463, %v436, 0
      %v510 = vsel %vm463, %v437, 0
      %v513 = vsel %vm463, %v438, 0
      %v516 = vsel %vm463, %v439, 0
      %v519 = vsel %vm463, %v440, 0
      %v522 = vsel %vm463, %v441, 0
      %v525 = vsel %vm463, %v442, 0
      %v528 = vsel %vm463, %v443, 0
      %v531 = vsel %vm463, %v444, 0
      %v534 = vsel %vm463, %v445, 0
      %v537 = vsel %vm463, %v446, 0
      %v540 = vsel %vm463, %v447, 0
      %v543 = vsel %vm463, %v448, 0
      %v546 = vsel %vm463, %v449, 0
      %v549 = vsel %vm463, %v450, 0
      %v552 = vsel %vm463, %v451, 0
      %v555 = vsel %vm463, %v452, 0
      %v558 = vsel %vm463, %v453, 0
      %560 = vmatprep.subr.mxu0 0.0
      %561 = vmatpush1.msra.mxu0 %v454
      %562 = vmatprep.subr.mxu0 0.0
      %563 = vmatpush1.msra.mxu0 %v455
      %564 = vmatprep.subr.mxu0 0.0
      %565 = vmatpush1.msra.mxu0 0.0
      %566 = vmatprep.subr.mxu0 0.0
      %567 = vmatpush1.msra.mxu0 0.0
      %568 = vmatprep.subr.mxu0 0.0
      %569 = vmatpush1.msra.mxu0 0.0
      %570 = vmatprep.subr.mxu0 0.0
      %571 = vmatpush1.msra.mxu0 0.0
      %572 = vmatprep.subr.mxu0 0.0
      %573 = vmatpush1.msra.mxu0 0.0
      %574 = vmatprep.subr.mxu0 0.0
      %575 = vmatpush1.msra.mxu0 0.0
      %576 = vmatprep.subr.mxu0 0.0
      %577 = vmatpush1.msra.mxu0 0.0
      %578 = vmatprep.subr.mxu0 0.0
      %579 = vmatpush1.msra.mxu0 0.0
      %580 = vmatprep.subr.mxu0 0.0
      %581 = vmatpush1.msra.mxu0 0.0
      %582 = vmatprep.subr.mxu0 0.0
      %583 = vmatpush1.msra.mxu0 0.0
      %584 = vmatprep.subr.mxu0 0.0
      %585 = vmatpush1.msra.mxu0 0.0
      %586 = vmatprep.subr.mxu0 0.0
      %587 = vmatpush1.msra.mxu0 0.0
      %588 = vmatprep.subr.mxu0 0.0
      %589 = vmatpush1.msra.mxu0 0.0
      %590 = vmatprep.subr.mxu0 0.0
      %591 = vmatpush1.msra.mxu0 0.0
      %592 = vmatprep.subr.mxu0 0.0
      %593 = vmatpush1.msra.mxu0 0.0
      %594 = vmatprep.subr.mxu0 0.0
      %595 = vmatpush1.msra.mxu0 0.0
      %596 = vmatprep.subr.mxu0 0.0
      %597 = vmatpush1.msra.mxu0 0.0
      %598 = vmatprep.subr.mxu0 0.0
      %599 = vmatpush1.msra.mxu0 0.0
      %600 = vmatprep.subr.mxu0 0.0
      %601 = vmatpush1.msra.mxu0 0.0
      %602 = vmatprep.subr.mxu0 0.0
      %603 = vmatpush1.msra.mxu0 0.0
      %604 = vmatprep.subr.mxu0 0.0
      %605 = vmatpush1.msra.mxu0 0.0
      %606 = vmatprep.subr.mxu0 0.0
      %607 = vmatpush1.msra.mxu0 0.0
      %608 = vmatprep.subr.mxu0 0.0
      %609 = vmatpush1.msra.mxu0 0.0
      %610 = vmatprep.subr.mxu0 0.0
      %611 = vmatpush1.msra.mxu0 0.0
      %612 = vmatprep.subr.mxu0 0.0
      %613 = vmatpush1.msra.mxu0 0.0
      %614 = vmatprep.subr.mxu0 0.0
      %615 = vmatpush1.msra.mxu0 0.0
      %616 = vmatprep.subr.mxu0 0.0
      %617 = vmatpush1.msra.mxu0 0.0
      %618 = vmatprep.subr.mxu0 0.0
      %619 = vmatpush1.msra.mxu0 0.0
      %620 = vmatprep.subr.mxu0 0.0
      %621 = vmatpush1.msra.mxu0 0.0
      %622 = vmatprep.subr.mxu0 0.0
      %623 = vmatpush1.msra.mxu0 0.0
      %624 = vmatprep.mubr.f32.mxu0 0.0
      %625 = vmatmul.mubr.f32.gmra.mrb[0].mxu0 %v465
      %v626 = vpop.f32.mrb[0].mxu0
      %v627 = vadd.f32 %v461, %v626
      %v628 = vpop.f32.mrb[0].mxu0
      %629 = vmatprep.mubr.f32.mxu0 0.0
      %630 = vmatmul.mubr.f32.gmra.mrb[0].mxu0 %v468
      %v631 = vpop.f32.mrb[0].mxu0
      %v632 = vadd.f32 %v461, %v631
      %v633 = vpop.f32.mrb[0].mxu0
      %634 = vmatprep.mubr.f32.mxu0 0.0
      %635 = vmatmul.mubr.f32.gmra.mrb[0].mxu0 %v471
      %v636 = vpop.f32.mrb[0].mxu0
      %v637 = vadd.f32 %v461, %v636
      %v638 = vpop.f32.mrb[0].mxu0
      %639 = vmatprep.mubr.f32.mxu0 0.0
      %640 = vmatmul.mubr.f32.gmra.mrb[0].mxu0 %v474
      %v641 = vpop.f32.mrb[0].mxu0
      %v642 = vadd.f32 %v461, %v641
      %v643 = vpop.f32.mrb[0].mxu0
      %644 = vmatprep.mubr.f32.mxu0 0.0
      %645 = vmatmul.mubr.f32.gmra.mrb[0].mxu0 %v477
      %v646 = vpop.f32.mrb[0].mxu0
      %v647 = vadd.f32 %v461, %v646
      %v648 = vpop.f32.mrb[0].mxu0
      %649 = vmatprep.mubr.f32.mxu0 0.0
      %650 = vmatmul.mubr.f32.gmra.mrb[0].mxu0 %v480
      %v651 = vpop.f32.mrb[0].mxu0
      %v652 = vadd.f32 %v461, %v651
      %v653 = vpop.f32.mrb[0].mxu0
      %654 = vmatprep.mubr.f32.mxu0 0.0
      %655 = vmatmul.mubr.f32.gmra.mrb[0].mxu0 %v483
      %v656 = vpop.f32.mrb[0].mxu0
      %v657 = vadd.f32 %v461, %v656
      %v658 = vpop.f32.mrb[0].mxu0
      %659 = vmatprep.mubr.f32.mxu0 0.0
      %660 = vmatmul.mubr.f32.gmra.mrb[0].mxu0 %v486
      %v661 = vpop.f32.mrb[0].mxu0
      %v662 = vadd.f32 %v461, %v661
      %v663 = vpop.f32.mrb[0].mxu0
      %664 = vmatprep.mubr.f32.mxu0 0.0
      %665 = vmatmul.mubr.f32.gmra.mrb[0].mxu0 %v489
      %v666 = vpop.f32.mrb[0].mxu0
      %v667 = vadd.f32 %v461, %v666
      %v668 = vpop.f32.mrb[0].mxu0
      %669 = vmatprep.mubr.f32.mxu0 0.0
      %670 = vmatmul.mubr.f32.gmra.mrb[0].mxu0 %v492
      %v671 = vpop.f32.mrb[0].mxu0
      %v672 = vadd.f32 %v461, %v671
      %v673 = vpop.f32.mrb[0].mxu0
      %674 = vmatprep.mubr.f32.mxu0 0.0
      %675 = vmatmul.mubr.f32.gmra.mrb[0].mxu0 %v495
      %v676 = vpop.f32.mrb[0].mxu0
      %v677 = vadd.f32 %v461, %v676
      %v678 = vpop.f32.mrb[0].mxu0
      %679 = vmatprep.mubr.f32.mxu0 0.0
      %680 = vmatmul.mubr.f32.gmra.mrb[0].mxu0 %v498
      %v681 = vpop.f32.mrb[0].mxu0
      %v682 = vadd.f32 %v461, %v681
      %v683 = vpop.f32.mrb[0].mxu0
      %684 = vmatprep.mubr.f32.mxu0 0.0
      %685 = vmatmul.mubr.f32.gmra.mrb[0].mxu0 %v501
      %v686 = vpop.f32.mrb[0].mxu0
      %v687 = vadd.f32 %v461, %v686
      %v688 = vpop.f32.mrb[0].mxu0
      %689 = vmatprep.mubr.f32.mxu0 0.0
      %690 = vmatmul.mubr.f32.gmra.mrb[0].mxu0 %v504
      %v691 = vpop.f32.mrb[0].mxu0
      %v692 = vadd.f32 %v461, %v691
      %v693 = vpop.f32.mrb[0].mxu0
      %694 = vmatprep.mubr.f32.mxu0 0.0
      %695 = vmatmul.mubr.f32.gmra.mrb[0].mxu0 %v507
      %v696 = vpop.f32.mrb[0].mxu0
      %v697 = vadd.f32 %v461, %v696
      %v698 = vpop.f32.mrb[0].mxu0
      %699 = vmatprep.mubr.f32.mxu0 0.0
      %700 = vmatmul.mubr.f32.gmra.mrb[0].mxu0 %v510
      %v701 = vpop.f32.mrb[0].mxu0
      %v702 = vadd.f32 %v461, %v701
      %v703 = vpop.f32.mrb[0].mxu0
      %704 = vmatprep.mubr.f32.mxu0 0.0
      %705 = vmatmul.mubr.f32.gmra.mrb[0].mxu0 %v513
      %v706 = vpop.f32.mrb[0].mxu0
      %v707 = vadd.f32 %v461, %v706
      %v708 = vpop.f32.mrb[0].mxu0
      %709 = vmatprep.mubr.f32.mxu0 0.0
      %710 = vmatmul.mubr.f32.gmra.mrb[0].mxu0 %v516
      %v711 = vpop.f32.mrb[0].mxu0
      %v712 = vadd.f32 %v461, %v711
      %v713 = vpop.f32.mrb[0].mxu0
      %714 = vmatprep.mubr.f32.mxu0 0.0
      %715 = vmatmul.mubr.f32.gmra.mrb[0].mxu0 %v519
      %v716 = vpop.f32.mrb[0].mxu0
      %v717 = vadd.f32 %v461, %v716
      %v718 = vpop.f32.mrb[0].mxu0
      %719 = vmatprep.mubr.f32.mxu0 0.0
      %720 = vmatmul.mubr.f32.gmra.mrb[0].mxu0 %v522
      %v721 = vpop.f32.mrb[0].mxu0
      %v722 = vadd.f32 %v461, %v721
      %v723 = vpop.f32.mrb[0].mxu0
      %724 = vmatprep.mubr.f32.mxu0 0.0
      %725 = vmatmul.mubr.f32.gmra.mrb[0].mxu0 %v525
      %v726 = vpop.f32.mrb[0].mxu0
      %v727 = vadd.f32 %v461, %v726
      %v728 = vpop.f32.mrb[0].mxu0
      %729 = vmatprep.mubr.f32.mxu0 0.0
      %730 = vmatmul.mubr.f32.gmra.mrb[0].mxu0 %v528
      %v731 = vpop.f32.mrb[0].mxu0
      %v732 = vadd.f32 %v461, %v731
      %v733 = vpop.f32.mrb[0].mxu0
      %734 = vmatprep.mubr.f32.mxu0 0.0
      %735 = vmatmul.mubr.f32.gmra.mrb[0].mxu0 %v531
      %v736 = vpop.f32.mrb[0].mxu0
      %v737 = vadd.f32 %v461, %v736
      %v738 = vpop.f32.mrb[0].mxu0
      %739 = vmatprep.mubr.f32.mxu0 0.0
      %740 = vmatmul.mubr.f32.gmra.mrb[0].mxu0 %v534
      %v741 = vpop.f32.mrb[0].mxu0
      %v742 = vadd.f32 %v461, %v741
      %v743 = vpop.f32.mrb[0].mxu0
      %744 = vmatprep.mubr.f32.mxu0 0.0
      %745 = vmatmul.mubr.f32.gmra.mrb[0].mxu0 %v537
      %v746 = vpop.f32.mrb[0].mxu0
      %v747 = vadd.f32 %v461, %v746
      %v748 = vpop.f32.mrb[0].mxu0
      %749 = vmatprep.mubr.f32.mxu0 0.0
      %750 = vmatmul.mubr.f32.gmra.mrb[0].mxu0 %v540
      %v751 = vpop.f32.mrb[0].mxu0
      %v752 = vadd.f32 %v461, %v751
      %v753 = vpop.f32.mrb[0].mxu0
      %754 = vmatprep.mubr.f32.mxu0 0.0
      %755 = vmatmul.mubr.f32.gmra.mrb[0].mxu0 %v543
      %v756 = vpop.f32.mrb[0].mxu0
      %v757 = vadd.f32 %v461, %v756
      %v758 = vpop.f32.mrb[0].mxu0
      %759 = vmatprep.mubr.f32.mxu0 0.0
      %760 = vmatmul.mubr.f32.gmra.mrb[0].mxu0 %v546
      %v761 = vpop.f32.mrb[0].mxu0
      %v762 = vadd.f32 %v461, %v761
      %v763 = vpop.f32.mrb[0].mxu0
      %764 = vmatprep.mubr.f32.mxu0 0.0
      %765 = vmatmul.mubr.f32.gmra.mrb[0].mxu0 %v549
      %v766 = vpop.f32.mrb[0].mxu0
      %v767 = vadd.f32 %v461, %v766
      %v768 = vpop.f32.mrb[0].mxu0
      %769 = vmatprep.mubr.f32.mxu0 0.0
      %770 = vmatmul.mubr.f32.gmra.mrb[0].mxu0 %v552
      %v771 = vpop.f32.mrb[0].mxu0
      %v772 = vadd.f32 %v461, %v771
      %v773 = vpop.f32.mrb[0].mxu0
      %774 = vmatprep.mubr.f32.mxu0 0.0
      %775 = vmatmul.mubr.f32.gmra.mrb[0].mxu0 %v555
      %v776 = vpop.f32.mrb[0].mxu0
      %v777 = vadd.f32 %v461, %v776
      %v778 = vpop.f32.mrb[0].mxu0
      %779 = vmatprep.mubr.f32.mxu0 0.0
      %780 = vmatmul.mubr.f32.gmra.mrb[0].mxu0 %v558
      %v781 = vpop.f32.mrb[0].mxu0
      %v782 = vadd.f32 %v461, %v781
      %v783 = vpop.f32.mrb[0].mxu0
      %784 = vdwg.mxu0
      %vm785 = vcmp.gt.f32.partialorder %v627, 0.0
      %vm786 = vcmp.gt.f32.partialorder %v632, 0.0
      %vm787 = vcmp.gt.f32.partialorder %v637, 0.0
      %vm788 = vcmp.gt.f32.partialorder %v642, 0.0
      %vm789 = vcmp.gt.f32.partialorder %v647, 0.0
      %vm790 = vcmp.gt.f32.partialorder %v652, 0.0
      %vm791 = vcmp.gt.f32.partialorder %v657, 0.0
      %vm792 = vcmp.gt.f32.partialorder %v662, 0.0
      %vm793 = vcmp.gt.f32.partialorder %v667, 0.0
      %vm794 = vcmp.gt.f32.partialorder %v672, 0.0
      %vm795 = vcmp.gt.f32.partialorder %v677, 0.0
      %vm796 = vcmp.gt.f32.partialorder %v682, 0.0
      %vm797 = vcmp.gt.f32.partialorder %v687, 0.0
      %vm798 = vcmp.gt.f32.partialorder %v692, 0.0
      %vm799 = vcmp.gt.f32.partialorder %v697, 0.0
      %vm800 = vcmp.gt.f32.partialorder %v702, 0.0
      %vm801 = vcmp.gt.f32.partialorder %v707, 0.0
      %vm802 = vcmp.gt.f32.partialorder %v712, 0.0
      %vm803 = vcmp.gt.f32.partialorder %v717, 0.0
      %vm804 = vcmp.gt.f32.partialorder %v722, 0.0
      %vm805 = vcmp.gt.f32.partialorder %v727, 0.0
      %vm806 = vcmp.gt.f32.partialorder %v732, 0.0
      %vm807 = vcmp.gt.f32.partialorder %v737, 0.0
      %vm808 = vcmp.gt.f32.partialorder %v742, 0.0
      %vm809 = vcmp.gt.f32.partialorder %v747, 0.0
      %vm810 = vcmp.gt.f32.partialorder %v752, 0.0
      %vm811 = vcmp.gt.f32.partialorder %v757, 0.0
      %vm812 = vcmp.gt.f32.partialorder %v762, 0.0
      %vm813 = vcmp.gt.f32.partialorder %v767, 0.0
      %vm814 = vcmp.gt.f32.partialorder %v772, 0.0
      %vm815 = vcmp.gt.f32.partialorder %v777, 0.0
      %vm816 = vcmp.gt.f32.partialorder %v782, 0.0
      %v817 = vsel %vm785, 1.0, -1.0
      %v818 = vsel %vm786, 1.0, -1.0
      %v819 = vsel %vm787, 1.0, -1.0
      %v820 = vsel %vm788, 1.0, -1.0
      %v821 = vsel %vm789, 1.0, -1.0
      %v822 = vsel %vm790, 1.0, -1.0
      %v823 = vsel %vm791, 1.0, -1.0
      %v824 = vsel %vm792, 1.0, -1.0
      %v825 = vsel %vm793, 1.0, -1.0
      %v826 = vsel %vm794, 1.0, -1.0
      %v827 = vsel %vm795, 1.0, -1.0
      %v828 = vsel %vm796, 1.0, -1.0
      %v829 = vsel %vm797, 1.0, -1.0
      %v830 = vsel %vm798, 1.0, -1.0
      %v831 = vsel %vm799, 1.0, -1.0
      %v832 = vsel %vm800, 1.0, -1.0
      %v833 = vsel %vm801, 1.0, -1.0
      %v834 = vsel %vm802, 1.0, -1.0
      %v835 = vsel %vm803, 1.0, -1.0
      %v836 = vsel %vm804, 1.0, -1.0
      %v837 = vsel %vm805, 1.0, -1.0
      %v838 = vsel %vm806, 1.0, -1.0
      %v839 = vsel %vm807, 1.0, -1.0
      %v840 = vsel %vm808, 1.0, -1.0
      %v841 = vsel %vm809, 1.0, -1.0
      %v842 = vsel %vm810, 1.0, -1.0
      %v843 = vsel %vm811, 1.0, -1.0
      %v844 = vsel %vm812, 1.0, -1.0
      %v845 = vsel %vm813, 1.0, -1.0
      %v846 = vsel %vm814, 1.0, -1.0
      %v847 = vsel %vm815, 1.0, -1.0
      %v848 = vsel %vm816, 1.0, -1.0
      %v849 = vsel %vm785, 1, 0
      %v850 = vsel %vm786, 1, 0
      %v851 = vsel %vm787, 1, 0
      %v852 = vsel %vm788, 1, 0
      %v853 = vsel %vm789, 1, 0
      %v854 = vsel %vm790, 1, 0
      %v855 = vsel %vm791, 1, 0
      %v856 = vsel %vm792, 1, 0
      %v857 = vsel %vm793, 1, 0
      %v858 = vsel %vm794, 1, 0
      %v859 = vsel %vm795, 1, 0
      %v860 = vsel %vm796, 1, 0
      %v861 = vsel %vm797, 1, 0
      %v862 = vsel %vm798, 1, 0
      %v863 = vsel %vm799, 1, 0
      %v864 = vsel %vm800, 1, 0
      %v865 = vsel %vm801, 1, 0
      %v866 = vsel %vm802, 1, 0
      %v867 = vsel %vm803, 1, 0
      %v868 = vsel %vm804, 1, 0
      %v869 = vsel %vm805, 1, 0
      %v870 = vsel %vm806, 1, 0
      %v871 = vsel %vm807, 1, 0
      %v872 = vsel %vm808, 1, 0
      %v873 = vsel %vm809, 1, 0
      %v874 = vsel %vm810, 1, 0
      %v875 = vsel %vm811, 1, 0
      %v876 = vsel %vm812, 1, 0
      %v877 = vsel %vm813, 1, 0
      %v878 = vsel %vm814, 1, 0
      %v879 = vsel %vm815, 1, 0
      %v880 = vsel %vm816, 1, 0
      %v881 = vcvt.s32.f32 %v849
      %v882 = vcvt.s32.f32 %v850
      %v883 = vcvt.s32.f32 %v851
      %v884 = vcvt.s32.f32 %v852
      %v885 = vcvt.s32.f32 %v853
      %v886 = vcvt.s32.f32 %v854
      %v887 = vcvt.s32.f32 %v855
      %v888 = vcvt.s32.f32 %v856
      %v889 = vcvt.s32.f32 %v857
      %v890 = vcvt.s32.f32 %v858
      %v891 = vcvt.s32.f32 %v859
      %v892 = vcvt.s32.f32 %v860
      %v893 = vcvt.s32.f32 %v861
      %v894 = vcvt.s32.f32 %v862
      %v895 = vcvt.s32.f32 %v863
      %v896 = vcvt.s32.f32 %v864
      %v897 = vcvt.s32.f32 %v865
      %v898 = vcvt.s32.f32 %v866
      %v899 = vcvt.s32.f32 %v867
      %v900 = vcvt.s32.f32 %v868
      %v901 = vcvt.s32.f32 %v869
      %v902 = vcvt.s32.f32 %v870
      %v903 = vcvt.s32.f32 %v871
      %v904 = vcvt.s32.f32 %v872
      %v905 = vcvt.s32.f32 %v873
      %v906 = vcvt.s32.f32 %v874
      %v907 = vcvt.s32.f32 %v875
      %v908 = vcvt.s32.f32 %v876
      %v909 = vcvt.s32.f32 %v877
      %v910 = vcvt.s32.f32 %v878
      %v911 = vcvt.s32.f32 %v879
      %v912 = vcvt.s32.f32 %v880
      %v913 = vld [vmem:[%s7] sm:$0xff]
      %vm914 = vcmask 64512
      %v916 = vsel %vm914, %v881, 0
      %v919 = vsel %vm914, %v882, 0
      %v922 = vsel %vm914, %v883, 0
      %v925 = vsel %vm914, %v884, 0
      %v928 = vsel %vm914, %v885, 0
      %v931 = vsel %vm914, %v886, 0
      %v934 = vsel %vm914, %v887, 0
      %v937 = vsel %vm914, %v888, 0
      %v940 = vsel %vm914, %v889, 0
      %v943 = vsel %vm914, %v890, 0
      %v946 = vsel %vm914, %v891, 0
      %v949 = vsel %vm914, %v892, 0
      %v952 = vsel %vm914, %v893, 0
      %v955 = vsel %vm914, %v894, 0
      %v958 = vsel %vm914, %v895, 0
      %v961 = vsel %vm914, %v896, 0
      %v964 = vsel %vm914, %v897, 0
      %v967 = vsel %vm914, %v898, 0
      %v970 = vsel %vm914, %v899, 0
      %v973 = vsel %vm914, %v900, 0
      %v976 = vsel %vm914, %v901, 0
      %v979 = vsel %vm914, %v902, 0
      %v982 = vsel %vm914, %v903, 0
      %v985 = vsel %vm914, %v904, 0
      %v988 = vsel %vm914, %v905, 0
      %v991 = vsel %vm914, %v906, 0
      %v994 = vsel %vm914, %v907, 0
      %v997 = vsel %vm914, %v908, 0
      %v1000 = vsel %vm914, %v909, 0
      %v1003 = vsel %vm914, %v910, 0
      %v1006 = vsel %vm914, %v911, 0
      %v1009 = vsel %vm914, %v912, 0
      %1011 = vmatprep.subr.mxu0 0.0
      %1012 = vmatpush1.msra.mxu0 %v913
      %1013 = vmatprep.subr.mxu0 0.0
      %1014 = vmatpush1.msra.mxu0 0.0
      %1015 = vmatprep.subr.mxu0 0.0
      %1016 = vmatpush1.msra.mxu0 0.0
      %1017 = vmatprep.subr.mxu0 0.0
      %1018 = vmatpush1.msra.mxu0 0.0
      %1019 = vmatprep.subr.mxu0 0.0
      %1020 = vmatpush1.msra.mxu0 0.0
      %1021 = vmatprep.subr.mxu0 0.0
      %1022 = vmatpush1.msra.mxu0 0.0
      %1023 = vmatprep.subr.mxu0 0.0
      %1024 = vmatpush1.msra.mxu0 0.0
      %1025 = vmatprep.subr.mxu0 0.0
      %1026 = vmatpush1.msra.mxu0 0.0
      %1027 = vmatprep.subr.mxu0 0.0
      %1028 = vmatpush1.msra.mxu0 0.0
      %1029 = vmatprep.subr.mxu0 0.0
      %1030 = vmatpush1.msra.mxu0 0.0
      %1031 = vmatprep.subr.mxu0 0.0
      %1032 = vmatpush1.msra.mxu0 0.0
      %1033 = vmatprep.subr.mxu0 0.0
      %1034 = vmatpush1.msra.mxu0 0.0
      %1035 = vmatprep.subr.mxu0 0.0
      %1036 = vmatpush1.msra.mxu0 0.0
      %1037 = vmatprep.subr.mxu0 0.0
      %1038 = vmatpush1.msra.mxu0 0.0
      %1039 = vmatprep.subr.mxu0 0.0
      %1040 = vmatpush1.msra.mxu0 0.0
      %1041 = vmatprep.subr.mxu0 0.0
      %1042 = vmatpush1.msra.mxu0 0.0
      %1043 = vmatprep.subr.mxu0 0.0
      %1044 = vmatpush1.msra.mxu0 0.0
      %1045 = vmatprep.subr.mxu0 0.0
      %1046 = vmatpush1.msra.mxu0 0.0
      %1047 = vmatprep.subr.mxu0 0.0
      %1048 = vmatpush1.msra.mxu0 0.0
      %1049 = vmatprep.subr.mxu0 0.0
      %1050 = vmatpush1.msra.mxu0 0.0
      %1051 = vmatprep.subr.mxu0 0.0
      %1052 = vmatpush1.msra.mxu0 0.0
      %1053 = vmatprep.subr.mxu0 0.0
      %1054 = vmatpush1.msra.mxu0 0.0
      %1055 = vmatprep.subr.mxu0 0.0
      %1056 = vmatpush1.msra.mxu0 0.0
      %1057 = vmatprep.subr.mxu0 0.0
      %1058 = vmatpush1.msra.mxu0 0.0
      %1059 = vmatprep.subr.mxu0 0.0
      %1060 = vmatpush1.msra.mxu0 0.0
      %1061 = vmatprep.subr.mxu0 0.0
      %1062 = vmatpush1.msra.mxu0 0.0
      %1063 = vmatprep.subr.mxu0 0.0
      %1064 = vmatpush1.msra.mxu0 0.0
      %1065 = vmatprep.subr.mxu0 0.0
      %1066 = vmatpush1.msra.mxu0 0.0
      %1067 = vmatprep.subr.mxu0 0.0
      %1068 = vmatpush1.msra.mxu0 0.0
      %1069 = vmatprep.subr.mxu0 0.0
      %1070 = vmatpush1.msra.mxu0 0.0
      %1071 = vmatprep.subr.mxu0 0.0
      %1072 = vmatpush1.msra.mxu0 0.0
      %1073 = vmatprep.subr.mxu0 0.0
      %1074 = vmatpush1.msra.mxu0 0.0
      %1075 = vmatprep.mubr.f32.mxu0 0.0
      %1076 = vmatmul.mubr.f32.gmra.mrb[0].mxu0 %v916
      %v1077 = vpop.f32.mrb[0].mxu0
      %v1078 = vadd.f32 0.0, %v1077
      %v1079 = vpop.f32.mrb[0].mxu0
      %1080 = vmatprep.mubr.f32.mxu0 0.0
      %1081 = vmatmul.mubr.f32.gmra.mrb[0].mxu0 %v919
      %v1082 = vpop.f32.mrb[0].mxu0
      %v1083 = vadd.f32 0.0, %v1082
      %v1084 = vpop.f32.mrb[0].mxu0
      %1085 = vmatprep.mubr.f32.mxu0 0.0
      %1086 = vmatmul.mubr.f32.gmra.mrb[0].mxu0 %v922
      %v1087 = vpop.f32.mrb[0].mxu0
      %v1088 = vadd.f32 0.0, %v1087
      %v1089 = vpop.f32.mrb[0].mxu0
      %1090 = vmatprep.mubr.f32.mxu0 0.0
      %1091 = vmatmul.mubr.f32.gmra.mrb[0].mxu0 %v925
      %v1092 = vpop.f32.mrb[0].mxu0
      %v1093 = vadd.f32 0.0, %v1092
      %v1094 = vpop.f32.mrb[0].mxu0
      %1095 = vmatprep.mubr.f32.mxu0 0.0
      %1096 = vmatmul.mubr.f32.gmra.mrb[0].mxu0 %v928
      %v1097 = vpop.f32.mrb[0].mxu0
      %v1098 = vadd.f32 0.0, %v1097
      %v1099 = vpop.f32.mrb[0].mxu0
      %1100 = vmatprep.mubr.f32.mxu0 0.0
      %1101 = vmatmul.mubr.f32.gmra.mrb[0].mxu0 %v931
      %v1102 = vpop.f32.mrb[0].mxu0
      %v1103 = vadd.f32 0.0, %v1102
      %v1104 = vpop.f32.mrb[0].mxu0
      %1105 = vmatprep.mubr.f32.mxu0 0.0
      %1106 = vmatmul.mubr.f32.gmra.mrb[0].mxu0 %v934
      %v1107 = vpop.f32.mrb[0].mxu0
      %v1108 = vadd.f32 0.0, %v1107
      %v1109 = vpop.f32.mrb[0].mxu0
      %1110 = vmatprep.mubr.f32.mxu0 0.0
      %1111 = vmatmul.mubr.f32.gmra.mrb[0].mxu0 %v937
      %v1112 = vpop.f32.mrb[0].mxu0
      %v1113 = vadd.f32 0.0, %v1112
      %v1114 = vpop.f32.mrb[0].mxu0
      %1115 = vmatprep.mubr.f32.mxu0 0.0
      %1116 = vmatmul.mubr.f32.gmra.mrb[0].mxu0 %v940
      %v1117 = vpop.f32.mrb[0].mxu0
      %v1118 = vadd.f32 0.0, %v1117
      %v1119 = vpop.f32.mrb[0].mxu0
      %1120 = vmatprep.mubr.f32.mxu0 0.0
      %1121 = vmatmul.mubr.f32.gmra.mrb[0].mxu0 %v943
      %v1122 = vpop.f32.mrb[0].mxu0
      %v1123 = vadd.f32 0.0, %v1122
      %v1124 = vpop.f32.mrb[0].mxu0
      %1125 = vmatprep.mubr.f32.mxu0 0.0
      %1126 = vmatmul.mubr.f32.gmra.mrb[0].mxu0 %v946
      %v1127 = vpop.f32.mrb[0].mxu0
      %v1128 = vadd.f32 0.0, %v1127
      %v1129 = vpop.f32.mrb[0].mxu0
      %1130 = vmatprep.mubr.f32.mxu0 0.0
      %1131 = vmatmul.mubr.f32.gmra.mrb[0].mxu0 %v949
      %v1132 = vpop.f32.mrb[0].mxu0
      %v1133 = vadd.f32 0.0, %v1132
      %v1134 = vpop.f32.mrb[0].mxu0
      %1135 = vmatprep.mubr.f32.mxu0 0.0
      %1136 = vmatmul.mubr.f32.gmra.mrb[0].mxu0 %v952
      %v1137 = vpop.f32.mrb[0].mxu0
      %v1138 = vadd.f32 0.0, %v1137
      %v1139 = vpop.f32.mrb[0].mxu0
      %1140 = vmatprep.mubr.f32.mxu0 0.0
      %1141 = vmatmul.mubr.f32.gmra.mrb[0].mxu0 %v955
      %v1142 = vpop.f32.mrb[0].mxu0
      %v1143 = vadd.f32 0.0, %v1142
      %v1144 = vpop.f32.mrb[0].mxu0
      %1145 = vmatprep.mubr.f32.mxu0 0.0
      %1146 = vmatmul.mubr.f32.gmra.mrb[0].mxu0 %v958
      %v1147 = vpop.f32.mrb[0].mxu0
      %v1148 = vadd.f32 0.0, %v1147
      %v1149 = vpop.f32.mrb[0].mxu0
      %1150 = vmatprep.mubr.f32.mxu0 0.0
      %1151 = vmatmul.mubr.f32.gmra.mrb[0].mxu0 %v961
      %v1152 = vpop.f32.mrb[0].mxu0
      %v1153 = vadd.f32 0.0, %v1152
      %v1154 = vpop.f32.mrb[0].mxu0
      %1155 = vmatprep.mubr.f32.mxu0 0.0
      %1156 = vmatmul.mubr.f32.gmra.mrb[0].mxu0 %v964
      %v1157 = vpop.f32.mrb[0].mxu0
      %v1158 = vadd.f32 0.0, %v1157
      %v1159 = vpop.f32.mrb[0].mxu0
      %1160 = vmatprep.mubr.f32.mxu0 0.0
      %1161 = vmatmul.mubr.f32.gmra.mrb[0].mxu0 %v967
      %v1162 = vpop.f32.mrb[0].mxu0
      %v1163 = vadd.f32 0.0, %v1162
      %v1164 = vpop.f32.mrb[0].mxu0
      %1165 = vmatprep.mubr.f32.mxu0 0.0
      %1166 = vmatmul.mubr.f32.gmra.mrb[0].mxu0 %v970
      %v1167 = vpop.f32.mrb[0].mxu0
      %v1168 = vadd.f32 0.0, %v1167
      %v1169 = vpop.f32.mrb[0].mxu0
      %1170 = vmatprep.mubr.f32.mxu0 0.0
      %1171 = vmatmul.mubr.f32.gmra.mrb[0].mxu0 %v973
      %v1172 = vpop.f32.mrb[0].mxu0
      %v1173 = vadd.f32 0.0, %v1172
      %v1174 = vpop.f32.mrb[0].mxu0
      %1175 = vmatprep.mubr.f32.mxu0 0.0
      %1176 = vmatmul.mubr.f32.gmra.mrb[0].mxu0 %v976
      %v1177 = vpop.f32.mrb[0].mxu0
      %v1178 = vadd.f32 0.0, %v1177
      %v1179 = vpop.f32.mrb[0].mxu0
      %1180 = vmatprep.mubr.f32.mxu0 0.0
      %1181 = vmatmul.mubr.f32.gmra.mrb[0].mxu0 %v979
      %v1182 = vpop.f32.mrb[0].mxu0
      %v1183 = vadd.f32 0.0, %v1182
      %v1184 = vpop.f32.mrb[0].mxu0
      %1185 = vmatprep.mubr.f32.mxu0 0.0
      %1186 = vmatmul.mubr.f32.gmra.mrb[0].mxu0 %v982
      %v1187 = vpop.f32.mrb[0].mxu0
      %v1188 = vadd.f32 0.0, %v1187
      %v1189 = vpop.f32.mrb[0].mxu0
      %1190 = vmatprep.mubr.f32.mxu0 0.0
      %1191 = vmatmul.mubr.f32.gmra.mrb[0].mxu0 %v985
      %v1192 = vpop.f32.mrb[0].mxu0
      %v1193 = vadd.f32 0.0, %v1192
      %v1194 = vpop.f32.mrb[0].mxu0
      %1195 = vmatprep.mubr.f32.mxu0 0.0
      %1196 = vmatmul.mubr.f32.gmra.mrb[0].mxu0 %v988
      %v1197 = vpop.f32.mrb[0].mxu0
      %v1198 = vadd.f32 0.0, %v1197
      %v1199 = vpop.f32.mrb[0].mxu0
      %1200 = vmatprep.mubr.f32.mxu0 0.0
      %1201 = vmatmul.mubr.f32.gmra.mrb[0].mxu0 %v991
      %v1202 = vpop.f32.mrb[0].mxu0
      %v1203 = vadd.f32 0.0, %v1202
      %v1204 = vpop.f32.mrb[0].mxu0
      %1205 = vmatprep.mubr.f32.mxu0 0.0
      %1206 = vmatmul.mubr.f32.gmra.mrb[0].mxu0 %v994
      %v1207 = vpop.f32.mrb[0].mxu0
      %v1208 = vadd.f32 0.0, %v1207
      %v1209 = vpop.f32.mrb[0].mxu0
      %1210 = vmatprep.mubr.f32.mxu0 0.0
      %1211 = vmatmul.mubr.f32.gmra.mrb[0].mxu0 %v997
      %v1212 = vpop.f32.mrb[0].mxu0
      %v1213 = vadd.f32 0.0, %v1212
      %v1214 = vpop.f32.mrb[0].mxu0
      %1215 = vmatprep.mubr.f32.mxu0 0.0
      %1216 = vmatmul.mubr.f32.gmra.mrb[0].mxu0 %v1000
      %v1217 = vpop.f32.mrb[0].mxu0
      %v1218 = vadd.f32 0.0, %v1217
      %v1219 = vpop.f32.mrb[0].mxu0
      %1220 = vmatprep.mubr.f32.mxu0 0.0
      %1221 = vmatmul.mubr.f32.gmra.mrb[0].mxu0 %v1003
      %v1222 = vpop.f32.mrb[0].mxu0
      %v1223 = vadd.f32 0.0, %v1222
      %v1224 = vpop.f32.mrb[0].mxu0
      %1225 = vmatprep.mubr.f32.mxu0 0.0
      %1226 = vmatmul.mubr.f32.gmra.mrb[0].mxu0 %v1006
      %v1227 = vpop.f32.mrb[0].mxu0
      %v1228 = vadd.f32 0.0, %v1227
      %v1229 = vpop.f32.mrb[0].mxu0
      %1230 = vmatprep.mubr.f32.mxu0 0.0
      %1231 = vmatmul.mubr.f32.gmra.mrb[0].mxu0 %v1009
      %v1232 = vpop.f32.mrb[0].mxu0
      %v1233 = vadd.f32 0.0, %v1232
      %v1234 = vpop.f32.mrb[0].mxu0
      %1235 = vdwg.mxu0
      %v1236 = vcvt.f32.s32.to.zero.pseudo %v1078
      %v1237 = vcvt.f32.s32.to.zero.pseudo %v1083
      %v1238 = vcvt.f32.s32.to.zero.pseudo %v1088
      %v1239 = vcvt.f32.s32.to.zero.pseudo %v1093
      %v1240 = vcvt.f32.s32.to.zero.pseudo %v1098
      %v1241 = vcvt.f32.s32.to.zero.pseudo %v1103
      %v1242 = vcvt.f32.s32.to.zero.pseudo %v1108
      %v1243 = vcvt.f32.s32.to.zero.pseudo %v1113
      %v1244 = vcvt.f32.s32.to.zero.pseudo %v1118
      %v1245 = vcvt.f32.s32.to.zero.pseudo %v1123
      %v1246 = vcvt.f32.s32.to.zero.pseudo %v1128
      %v1247 = vcvt.f32.s32.to.zero.pseudo %v1133
      %v1248 = vcvt.f32.s32.to.zero.pseudo %v1138
      %v1249 = vcvt.f32.s32.to.zero.pseudo %v1143
      %v1250 = vcvt.f32.s32.to.zero.pseudo %v1148
      %v1251 = vcvt.f32.s32.to.zero.pseudo %v1153
      %v1252 = vcvt.f32.s32.to.zero.pseudo %v1158
      %v1253 = vcvt.f32.s32.to.zero.pseudo %v1163
      %v1254 = vcvt.f32.s32.to.zero.pseudo %v1168
      %v1255 = vcvt.f32.s32.to.zero.pseudo %v1173
      %v1256 = vcvt.f32.s32.to.zero.pseudo %v1178
      %v1257 = vcvt.f32.s32.to.zero.pseudo %v1183
      %v1258 = vcvt.f32.s32.to.zero.pseudo %v1188
      %v1259 = vcvt.f32.s32.to.zero.pseudo %v1193
      %v1260 = vcvt.f32.s32.to.zero.pseudo %v1198
      %v1261 = vcvt.f32.s32.to.zero.pseudo %v1203
      %v1262 = vcvt.f32.s32.to.zero.pseudo %v1208
      %v1263 = vcvt.f32.s32.to.zero.pseudo %v1213
      %v1264 = vcvt.f32.s32.to.zero.pseudo %v1218
      %v1265 = vcvt.f32.s32.to.zero.pseudo %v1223
      %v1266 = vcvt.f32.s32.to.zero.pseudo %v1228
      %v1267 = vcvt.f32.s32.to.zero.pseudo %v1233
      %vm1268 = vcmask 7168
      %1269 = vst.msk [vmem:[%s413] sm:$0xff] %vm1268, %v1236
      %1270 = vst.msk [vmem:[%s413 + $0x8] sm:$0xff] %vm1268, %v1237
      %1271 = vst.msk [vmem:[%s413 + $0x10] sm:$0xff] %vm1268, %v1238
      %1272 = vst.msk [vmem:[%s413 + $0x18] sm:$0xff] %vm1268, %v1239
      %1273 = vst.msk [vmem:[%s413 + $0x20] sm:$0xff] %vm1268, %v1240
      %1274 = vst.msk [vmem:[%s413 + $0x28] sm:$0xff] %vm1268, %v1241
      %1275 = vst.msk [vmem:[%s413 + $0x30] sm:$0xff] %vm1268, %v1242
      %1276 = vst.msk [vmem:[%s413 + $0x38] sm:$0xff] %vm1268, %v1243
      %1277 = vst.msk [vmem:[%s413 + $0x40] sm:$0xff] %vm1268, %v1244
      %1278 = vst.msk [vmem:[%s413 + $0x48] sm:$0xff] %vm1268, %v1245
      %1279 = vst.msk [vmem:[%s413 + $0x50] sm:$0xff] %vm1268, %v1246
      %1280 = vst.msk [vmem:[%s413 + $0x58] sm:$0xff] %vm1268, %v1247
      %1281 = vst.msk [vmem:[%s413 + $0x60] sm:$0xff] %vm1268, %v1248
      %1282 = vst.msk [vmem:[%s413 + $0x68] sm:$0xff] %vm1268, %v1249
      %1283 = vst.msk [vmem:[%s413 + $0x70] sm:$0xff] %vm1268, %v1250
      %1284 = vst.msk [vmem:[%s413 + $0x78] sm:$0xff] %vm1268, %v1251
      %1285 = vst.msk [vmem:[%s413 + $0x80] sm:$0xff] %vm1268, %v1252
      %1286 = vst.msk [vmem:[%s413 + $0x88] sm:$0xff] %vm1268, %v1253
      %1287 = vst.msk [vmem:[%s413 + $0x90] sm:$0xff] %vm1268, %v1254
      %1288 = vst.msk [vmem:[%s413 + $0x98] sm:$0xff] %vm1268, %v1255
      %1289 = vst.msk [vmem:[%s413 + $0xa0] sm:$0xff] %vm1268, %v1256
      %1290 = vst.msk [vmem:[%s413 + $0xa8] sm:$0xff] %vm1268, %v1257
      %1291 = vst.msk [vmem:[%s413 + $0xb0] sm:$0xff] %vm1268, %v1258
      %1292 = vst.msk [vmem:[%s413 + $0xb8] sm:$0xff] %vm1268, %v1259
      %1293 = vst.msk [vmem:[%s413 + $0xc0] sm:$0xff] %vm1268, %v1260
      %1294 = vst.msk [vmem:[%s413 + $0xc8] sm:$0xff] %vm1268, %v1261
      %1295 = vst.msk [vmem:[%s413 + $0xd0] sm:$0xff] %vm1268, %v1262
      %1296 = vst.msk [vmem:[%s413 + $0xd8] sm:$0xff] %vm1268, %v1263
      %1297 = vst.msk [vmem:[%s413 + $0xe0] sm:$0xff] %vm1268, %v1264
      %1298 = vst.msk [vmem:[%s413 + $0xe8] sm:$0xff] %vm1268, %v1265
      %1299 = vst.msk [vmem:[%s413 + $0xf0] sm:$0xff] %vm1268, %v1266
      %1300 = vst.msk [vmem:[%s413 + $0xf8] sm:$0xff] %vm1268, %v1267
      %v1301 = vld [vmem:[%s3] sm:$0xff]
      %v1302 = vld [vmem:[%s4] sm:$0x1]
      %v1304 = vlaneseq
      %v1305 = vshrl.u32 %v1304, 7
      %v1306 = vsub.s32 0, %v1305
      %v1307 = vrot.slane %v1302, %v1306
      %v1310 = vsel %vm914, %v817, 0
      %v1313 = vsel %vm914, %v818, 0
      %v1316 = vsel %vm914, %v819, 0
      %v1319 = vsel %vm914, %v820, 0
      %v1322 = vsel %vm914, %v821, 0
      %v1325 = vsel %vm914, %v822, 0
      %v1328 = vsel %vm914, %v823, 0
      %v1331 = vsel %vm914, %v824, 0
      %v1334 = vsel %vm914, %v825, 0
      %v1337 = vsel %vm914, %v826, 0
      %v1340 = vsel %vm914, %v827, 0
      %v1343 = vsel %vm914, %v828, 0
      %v1346 = vsel %vm914, %v829, 0
      %v1349 = vsel %vm914, %v830, 0
      %v1352 = vsel %vm914, %v831, 0
      %v1355 = vsel %vm914, %v832, 0
      %v1358 = vsel %vm914, %v833, 0
      %v1361 = vsel %vm914, %v834, 0
      %v1364 = vsel %vm914, %v835, 0
      %v1367 = vsel %vm914, %v836, 0
      %v1370 = vsel %vm914, %v837, 0
      %v1373 = vsel %vm914, %v838, 0
      %v1376 = vsel %vm914, %v839, 0
      %v1379 = vsel %vm914, %v840, 0
      %v1382 = vsel %vm914, %v841, 0
      %v1385 = vsel %vm914, %v842, 0
      %v1388 = vsel %vm914, %v843, 0
      %v1391 = vsel %vm914, %v844, 0
      %v1394 = vsel %vm914, %v845, 0
      %v1397 = vsel %vm914, %v846, 0
      %v1400 = vsel %vm914, %v847, 0
      %v1403 = vsel %vm914, %v848, 0
      %1405 = vmatprep.subr.mxu0 0.0
      %1406 = vmatpush1.msra.mxu0 %v1301
      %1407 = vmatprep.subr.mxu0 0.0
      %1408 = vmatpush1.msra.mxu0 0.0
      %1409 = vmatprep.subr.mxu0 0.0
      %1410 = vmatpush1.msra.mxu0 0.0
      %1411 = vmatprep.subr.mxu0 0.0
      %1412 = vmatpush1.msra.mxu0 0.0
      %1413 = vmatprep.subr.mxu0 0.0
      %1414 = vmatpush1.msra.mxu0 0.0
      %1415 = vmatprep.subr.mxu0 0.0
      %1416 = vmatpush1.msra.mxu0 0.0
      %1417 = vmatprep.subr.mxu0 0.0
      %1418 = vmatpush1.msra.mxu0 0.0
      %1419 = vmatprep.subr.mxu0 0.0
      %1420 = vmatpush1.msra.mxu0 0.0
      %1421 = vmatprep.subr.mxu0 0.0
      %1422 = vmatpush1.msra.mxu0 0.0
      %1423 = vmatprep.subr.mxu0 0.0
      %1424 = vmatpush1.msra.mxu0 0.0
      %1425 = vmatprep.subr.mxu0 0.0
      %1426 = vmatpush1.msra.mxu0 0.0
      %1427 = vmatprep.subr.mxu0 0.0
      %1428 = vmatpush1.msra.mxu0 0.0
      %1429 = vmatprep.subr.mxu0 0.0
      %1430 = vmatpush1.msra.mxu0 0.0
      %1431 = vmatprep.subr.mxu0 0.0
      %1432 = vmatpush1.msra.mxu0 0.0
      %1433 = vmatprep.subr.mxu0 0.0
      %1434 = vmatpush1.msra.mxu0 0.0
      %1435 = vmatprep.subr.mxu0 0.0
      %1436 = vmatpush1.msra.mxu0 0.0
      %1437 = vmatprep.subr.mxu0 0.0
      %1438 = vmatpush1.msra.mxu0 0.0
      %1439 = vmatprep.subr.mxu0 0.0
      %1440 = vmatpush1.msra.mxu0 0.0
      %1441 = vmatprep.subr.mxu0 0.0
      %1442 = vmatpush1.msra.mxu0 0.0
      %1443 = vmatprep.subr.mxu0 0.0
      %1444 = vmatpush1.msra.mxu0 0.0
      %1445 = vmatprep.subr.mxu0 0.0
      %1446 = vmatpush1.msra.mxu0 0.0
      %1447 = vmatprep.subr.mxu0 0.0
      %1448 = vmatpush1.msra.mxu0 0.0
      %1449 = vmatprep.subr.mxu0 0.0
      %1450 = vmatpush1.msra.mxu0 0.0
      %1451 = vmatprep.subr.mxu0 0.0
      %1452 = vmatpush1.msra.mxu0 0.0
      %1453 = vmatprep.subr.mxu0 0.0
      %1454 = vmatpush1.msra.mxu0 0.0
      %1455 = vmatprep.subr.mxu0 0.0
      %1456 = vmatpush1.msra.mxu0 0.0
      %1457 = vmatprep.subr.mxu0 0.0
      %1458 = vmatpush1.msra.mxu0 0.0
      %1459 = vmatprep.subr.mxu0 0.0
      %1460 = vmatpush1.msra.mxu0 0.0
      %1461 = vmatprep.subr.mxu0 0.0
      %1462 = vmatpush1.msra.mxu0 0.0
      %1463 = vmatprep.subr.mxu0 0.0
      %1464 = vmatpush1.msra.mxu0 0.0
      %1465 = vmatprep.subr.mxu0 0.0
      %1466 = vmatpush1.msra.mxu0 0.0
      %1467 = vmatprep.subr.mxu0 0.0
      %1468 = vmatpush1.msra.mxu0 0.0
      %1469 = vmatprep.mubr.f32.mxu0 0.0
      %1470 = vmatmul.mubr.f32.gmra.mrb[0].mxu0 %v1310
      %v1471 = vpop.f32.mrb[0].mxu0
      %v1472 = vadd.f32 %v1307, %v1471
      %v1473 = vpop.f32.mrb[0].mxu0
      %1474 = vmatprep.mubr.f32.mxu0 0.0
      %1475 = vmatmul.mubr.f32.gmra.mrb[0].mxu0 %v1313
      %v1476 = vpop.f32.mrb[0].mxu0
      %v1477 = vadd.f32 %v1307, %v1476
      %v1478 = vpop.f32.mrb[0].mxu0
      %1479 = vmatprep.mubr.f32.mxu0 0.0
      %1480 = vmatmul.mubr.f32.gmra.mrb[0].mxu0 %v1316
      %v1481 = vpop.f32.mrb[0].mxu0
      %v1482 = vadd.f32 %v1307, %v1481
      %v1483 = vpop.f32.mrb[0].mxu0
      %1484 = vmatprep.mubr.f32.mxu0 0.0
      %1485 = vmatmul.mubr.f32.gmra.mrb[0].mxu0 %v1319
      %v1486 = vpop.f32.mrb[0].mxu0
      %v1487 = vadd.f32 %v1307, %v1486
      %v1488 = vpop.f32.mrb[0].mxu0
      %1489 = vmatprep.mubr.f32.mxu0 0.0
      %1490 = vmatmul.mubr.f32.gmra.mrb[0].mxu0 %v1322
      %v1491 = vpop.f32.mrb[0].mxu0
      %v1492 = vadd.f32 %v1307, %v1491
      %v1493 = vpop.f32.mrb[0].mxu0
      %1494 = vmatprep.mubr.f32.mxu0 0.0
      %1495 = vmatmul.mubr.f32.gmra.mrb[0].mxu0 %v1325
      %v1496 = vpop.f32.mrb[0].mxu0
      %v1497 = vadd.f32 %v1307, %v1496
      %v1498 = vpop.f32.mrb[0].mxu0
      %1499 = vmatprep.mubr.f32.mxu0 0.0
      %1500 = vmatmul.mubr.f32.gmra.mrb[0].mxu0 %v1328
      %v1501 = vpop.f32.mrb[0].mxu0
      %v1502 = vadd.f32 %v1307, %v1501
      %v1503 = vpop.f32.mrb[0].mxu0
      %1504 = vmatprep.mubr.f32.mxu0 0.0
      %1505 = vmatmul.mubr.f32.gmra.mrb[0].mxu0 %v1331
      %v1506 = vpop.f32.mrb[0].mxu0
      %v1507 = vadd.f32 %v1307, %v1506
      %v1508 = vpop.f32.mrb[0].mxu0
      %1509 = vmatprep.mubr.f32.mxu0 0.0
      %1510 = vmatmul.mubr.f32.gmra.mrb[0].mxu0 %v1334
      %v1511 = vpop.f32.mrb[0].mxu0
      %v1512 = vadd.f32 %v1307, %v1511
      %v1513 = vpop.f32.mrb[0].mxu0
      %1514 = vmatprep.mubr.f32.mxu0 0.0
      %1515 = vmatmul.mubr.f32.gmra.mrb[0].mxu0 %v1337
      %v1516 = vpop.f32.mrb[0].mxu0
      %v1517 = vadd.f32 %v1307, %v1516
      %v1518 = vpop.f32.mrb[0].mxu0
      %1519 = vmatprep.mubr.f32.mxu0 0.0
      %1520 = vmatmul.mubr.f32.gmra.mrb[0].mxu0 %v1340
      %v1521 = vpop.f32.mrb[0].mxu0
      %v1522 = vadd.f32 %v1307, %v1521
      %v1523 = vpop.f32.mrb[0].mxu0
      %1524 = vmatprep.mubr.f32.mxu0 0.0
      %1525 = vmatmul.mubr.f32.gmra.mrb[0].mxu0 %v1343
      %v1526 = vpop.f32.mrb[0].mxu0
      %v1527 = vadd.f32 %v1307, %v1526
      %v1528 = vpop.f32.mrb[0].mxu0
      %1529 = vmatprep.mubr.f32.mxu0 0.0
      %1530 = vmatmul.mubr.f32.gmra.mrb[0].mxu0 %v1346
      %v1531 = vpop.f32.mrb[0].mxu0
      %v1532 = vadd.f32 %v1307, %v1531
      %v1533 = vpop.f32.mrb[0].mxu0
      %1534 = vmatprep.mubr.f32.mxu0 0.0
      %1535 = vmatmul.mubr.f32.gmra.mrb[0].mxu0 %v1349
      %v1536 = vpop.f32.mrb[0].mxu0
      %v1537 = vadd.f32 %v1307, %v1536
      %v1538 = vpop.f32.mrb[0].mxu0
      %1539 = vmatprep.mubr.f32.mxu0 0.0
      %1540 = vmatmul.mubr.f32.gmra.mrb[0].mxu0 %v1352
      %v1541 = vpop.f32.mrb[0].mxu0
      %v1542 = vadd.f32 %v1307, %v1541
      %v1543 = vpop.f32.mrb[0].mxu0
      %1544 = vmatprep.mubr.f32.mxu0 0.0
      %1545 = vmatmul.mubr.f32.gmra.mrb[0].mxu0 %v1355
      %v1546 = vpop.f32.mrb[0].mxu0
      %v1547 = vadd.f32 %v1307, %v1546
      %v1548 = vpop.f32.mrb[0].mxu0
      %1549 = vmatprep.mubr.f32.mxu0 0.0
      %1550 = vmatmul.mubr.f32.gmra.mrb[0].mxu0 %v1358
      %v1551 = vpop.f32.mrb[0].mxu0
      %v1552 = vadd.f32 %v1307, %v1551
      %v1553 = vpop.f32.mrb[0].mxu0
      %1554 = vmatprep.mubr.f32.mxu0 0.0
      %1555 = vmatmul.mubr.f32.gmra.mrb[0].mxu0 %v1361
      %v1556 = vpop.f32.mrb[0].mxu0
      %v1557 = vadd.f32 %v1307, %v1556
      %v1558 = vpop.f32.mrb[0].mxu0
      %1559 = vmatprep.mubr.f32.mxu0 0.0
      %1560 = vmatmul.mubr.f32.gmra.mrb[0].mxu0 %v1364
      %v1561 = vpop.f32.mrb[0].mxu0
      %v1562 = vadd.f32 %v1307, %v1561
      %v1563 = vpop.f32.mrb[0].mxu0
      %1564 = vmatprep.mubr.f32.mxu0 0.0
      %1565 = vmatmul.mubr.f32.gmra.mrb[0].mxu0 %v1367
      %v1566 = vpop.f32.mrb[0].mxu0
      %v1567 = vadd.f32 %v1307, %v1566
      %v1568 = vpop.f32.mrb[0].mxu0
      %1569 = vmatprep.mubr.f32.mxu0 0.0
      %1570 = vmatmul.mubr.f32.gmra.mrb[0].mxu0 %v1370
      %v1571 = vpop.f32.mrb[0].mxu0
      %v1572 = vadd.f32 %v1307, %v1571
      %v1573 = vpop.f32.mrb[0].mxu0
      %1574 = vmatprep.mubr.f32.mxu0 0.0
      %1575 = vmatmul.mubr.f32.gmra.mrb[0].mxu0 %v1373
      %v1576 = vpop.f32.mrb[0].mxu0
      %v1577 = vadd.f32 %v1307, %v1576
      %v1578 = vpop.f32.mrb[0].mxu0
      %1579 = vmatprep.mubr.f32.mxu0 0.0
      %1580 = vmatmul.mubr.f32.gmra.mrb[0].mxu0 %v1376
      %v1581 = vpop.f32.mrb[0].mxu0
      %v1582 = vadd.f32 %v1307, %v1581
      %v1583 = vpop.f32.mrb[0].mxu0
      %1584 = vmatprep.mubr.f32.mxu0 0.0
      %1585 = vmatmul.mubr.f32.gmra.mrb[0].mxu0 %v1379
      %v1586 = vpop.f32.mrb[0].mxu0
      %v1587 = vadd.f32 %v1307, %v1586
      %v1588 = vpop.f32.mrb[0].mxu0
      %1589 = vmatprep.mubr.f32.mxu0 0.0
      %1590 = vmatmul.mubr.f32.gmra.mrb[0].mxu0 %v1382
      %v1591 = vpop.f32.mrb[0].mxu0
      %v1592 = vadd.f32 %v1307, %v1591
      %v1593 = vpop.f32.mrb[0].mxu0
      %1594 = vmatprep.mubr.f32.mxu0 0.0
      %1595 = vmatmul.mubr.f32.gmra.mrb[0].mxu0 %v1385
      %v1596 = vpop.f32.mrb[0].mxu0
      %v1597 = vadd.f32 %v1307, %v1596
      %v1598 = vpop.f32.mrb[0].mxu0
      %1599 = vmatprep.mubr.f32.mxu0 0.0
      %1600 = vmatmul.mubr.f32.gmra.mrb[0].mxu0 %v1388
      %v1601 = vpop.f32.mrb[0].mxu0
      %v1602 = vadd.f32 %v1307, %v1601
      %v1603 = vpop.f32.mrb[0].mxu0
      %1604 = vmatprep.mubr.f32.mxu0 0.0
      %1605 = vmatmul.mubr.f32.gmra.mrb[0].mxu0 %v1391
      %v1606 = vpop.f32.mrb[0].mxu0
      %v1607 = vadd.f32 %v1307, %v1606
      %v1608 = vpop.f32.mrb[0].mxu0
      %1609 = vmatprep.mubr.f32.mxu0 0.0
      %1610 = vmatmul.mubr.f32.gmra.mrb[0].mxu0 %v1394
      %v1611 = vpop.f32.mrb[0].mxu0
      %v1612 = vadd.f32 %v1307, %v1611
      %v1613 = vpop.f32.mrb[0].mxu0
      %1614 = vmatprep.mubr.f32.mxu0 0.0
      %1615 = vmatmul.mubr.f32.gmra.mrb[0].mxu0 %v1397
      %v1616 = vpop.f32.mrb[0].mxu0
      %v1617 = vadd.f32 %v1307, %v1616
      %v1618 = vpop.f32.mrb[0].mxu0
      %1619 = vmatprep.mubr.f32.mxu0 0.0
      %1620 = vmatmul.mubr.f32.gmra.mrb[0].mxu0 %v1400
      %v1621 = vpop.f32.mrb[0].mxu0
      %v1622 = vadd.f32 %v1307, %v1621
      %v1623 = vpop.f32.mrb[0].mxu0
      %1624 = vmatprep.mubr.f32.mxu0 0.0
      %1625 = vmatmul.mubr.f32.gmra.mrb[0].mxu0 %v1403
      %v1626 = vpop.f32.mrb[0].mxu0
      %v1627 = vadd.f32 %v1307, %v1626
      %v1628 = vpop.f32.mrb[0].mxu0
      %1629 = vdwg.mxu0
      %1630 = vst.msk [vmem:[%s407] sm:$0xff] %vm463, %v1472
      %1631 = vst.msk [vmem:[%s407 + $0x8] sm:$0xff] %vm463, %v1477
      %1632 = vst.msk [vmem:[%s407 + $0x10] sm:$0xff] %vm463, %v1482
      %1633 = vst.msk [vmem:[%s407 + $0x18] sm:$0xff] %vm463, %v1487
      %1634 = vst.msk [vmem:[%s407 + $0x20] sm:$0xff] %vm463, %v1492
      %1635 = vst.msk [vmem:[%s407 + $0x28] sm:$0xff] %vm463, %v1497
      %1636 = vst.msk [vmem:[%s407 + $0x30] sm:$0xff] %vm463, %v1502
      %1637 = vst.msk [vmem:[%s407 + $0x38] sm:$0xff] %vm463, %v1507
      %1638 = vst.msk [vmem:[%s407 + $0x40] sm:$0xff] %vm463, %v1512
      %1639 = vst.msk [vmem:[%s407 + $0x48] sm:$0xff] %vm463, %v1517
      %1640 = vst.msk [vmem:[%s407 + $0x50] sm:$0xff] %vm463, %v1522
      %1641 = vst.msk [vmem:[%s407 + $0x58] sm:$0xff] %vm463, %v1527
      %1642 = vst.msk [vmem:[%s407 + $0x60] sm:$0xff] %vm463, %v1532
      %1643 = vst.msk [vmem:[%s407 + $0x68] sm:$0xff] %vm463, %v1537
      %1644 = vst.msk [vmem:[%s407 + $0x70] sm:$0xff] %vm463, %v1542
      %1645 = vst.msk [vmem:[%s407 + $0x78] sm:$0xff] %vm463, %v1547
      %1646 = vst.msk [vmem:[%s407 + $0x80] sm:$0xff] %vm463, %v1552
      %1647 = vst.msk [vmem:[%s407 + $0x88] sm:$0xff] %vm463, %v1557
      %1648 = vst.msk [vmem:[%s407 + $0x90] sm:$0xff] %vm463, %v1562
      %1649 = vst.msk [vmem:[%s407 + $0x98] sm:$0xff] %vm463, %v1567
      %1650 = vst.msk [vmem:[%s407 + $0xa0] sm:$0xff] %vm463, %v1572
      %1651 = vst.msk [vmem:[%s407 + $0xa8] sm:$0xff] %vm463, %v1577
      %1652 = vst.msk [vmem:[%s407 + $0xb0] sm:$0xff] %vm463, %v1582
      %1653 = vst.msk [vmem:[%s407 + $0xb8] sm:$0xff] %vm463, %v1587
      %1654 = vst.msk [vmem:[%s407 + $0xc0] sm:$0xff] %vm463, %v1592
      %1655 = vst.msk [vmem:[%s407 + $0xc8] sm:$0xff] %vm463, %v1597
      %1656 = vst.msk [vmem:[%s407 + $0xd0] sm:$0xff] %vm463, %v1602
      %1657 = vst.msk [vmem:[%s407 + $0xd8] sm:$0xff] %vm463, %v1607
      %1658 = vst.msk [vmem:[%s407 + $0xe0] sm:$0xff] %vm463, %v1612
      %1659 = vst.msk [vmem:[%s407 + $0xe8] sm:$0xff] %vm463, %v1617
      %1660 = vst.msk [vmem:[%s407 + $0xf0] sm:$0xff] %vm463, %v1622
      %1661 = vst.msk [vmem:[%s407 + $0xf8] sm:$0xff] %vm463, %v1627
      %v1662 = vld [vmem:[%s5] sm:$0xff]
      %v1663 = vld [vmem:[%s5 + $0x8] sm:$0xff]
      %v1664 = vld [vmem:[%s5 + $0x10] sm:$0xff]
      %v1665 = vld [vmem:[%s5 + $0x18] sm:$0xff]
      %v1666 = vld [vmem:[%s6] sm:$0x3]
      %v1668 = vlaneseq
      %v1669 = vshrl.u32 %v1668, 7
      %v1670 = vsub.s32 0, %v1669
      %v1671 = vrot.slane %v1666, %v1670
      %v1672 = vlaneseq
      %v1673 = vshrl.u32 %v1672, 7
      %v1674 = vsub.s32 1, %v1673
      %v1675 = vrot.slane %v1666, %v1674
      %1678 = vmatprep.subr.mxu0 %v1663
      %1679 = vmatpush1.msra.mxu0 %v1662
      %1680 = vmatprep.subr.mxu0 %v1665
      %1681 = vmatpush1.msra.mxu0 %v1664
      %1682 = vmatprep.subr.mxu0 0.0
      %1683 = vmatpush1.msra.mxu0 0.0
      %1684 = vmatprep.subr.mxu0 0.0
      %1685 = vmatpush1.msra.mxu0 0.0
      %1686 = vmatprep.subr.mxu0 0.0
      %1687 = vmatpush1.msra.mxu0 0.0
      %1688 = vmatprep.subr.mxu0 0.0
      %1689 = vmatpush1.msra.mxu0 0.0
      %1690 = vmatprep.subr.mxu0 0.0
      %1691 = vmatpush1.msra.mxu0 0.0
      %1692 = vmatprep.subr.mxu0 0.0
      %1693 = vmatpush1.msra.mxu0 0.0
      %1694 = vmatprep.subr.mxu0 0.0
      %1695 = vmatpush1.msra.mxu0 0.0
      %1696 = vmatprep.subr.mxu0 0.0
      %1697 = vmatpush1.msra.mxu0 0.0
      %1698 = vmatprep.subr.mxu0 0.0
      %1699 = vmatpush1.msra.mxu0 0.0
      %1700 = vmatprep.subr.mxu0 0.0
      %1701 = vmatpush1.msra.mxu0 0.0
      %1702 = vmatprep.subr.mxu0 0.0
      %1703 = vmatpush1.msra.mxu0 0.0
      %1704 = vmatprep.subr.mxu0 0.0
      %1705 = vmatpush1.msra.mxu0 0.0
      %1706 = vmatprep.subr.mxu0 0.0
      %1707 = vmatpush1.msra.mxu0 0.0
      %1708 = vmatprep.subr.mxu0 0.0
      %1709 = vmatpush1.msra.mxu0 0.0
      %1710 = vmatprep.subr.mxu0 0.0
      %1711 = vmatpush1.msra.mxu0 0.0
      %1712 = vmatprep.subr.mxu0 0.0
      %1713 = vmatpush1.msra.mxu0 0.0
      %1714 = vmatprep.subr.mxu0 0.0
      %1715 = vmatpush1.msra.mxu0 0.0
      %1716 = vmatprep.subr.mxu0 0.0
      %1717 = vmatpush1.msra.mxu0 0.0
      %1718 = vmatprep.subr.mxu0 0.0
      %1719 = vmatpush1.msra.mxu0 0.0
      %1720 = vmatprep.subr.mxu0 0.0
      %1721 = vmatpush1.msra.mxu0 0.0
      %1722 = vmatprep.subr.mxu0 0.0
      %1723 = vmatpush1.msra.mxu0 0.0
      %1724 = vmatprep.subr.mxu0 0.0
      %1725 = vmatpush1.msra.mxu0 0.0
      %1726 = vmatprep.subr.mxu0 0.0
      %1727 = vmatpush1.msra.mxu0 0.0
      %1728 = vmatprep.subr.mxu0 0.0
      %1729 = vmatpush1.msra.mxu0 0.0
      %1730 = vmatprep.subr.mxu0 0.0
      %1731 = vmatpush1.msra.mxu0 0.0
      %1732 = vmatprep.subr.mxu0 0.0
      %1733 = vmatpush1.msra.mxu0 0.0
      %1734 = vmatprep.subr.mxu0 0.0
      %1735 = vmatpush1.msra.mxu0 0.0
      %1736 = vmatprep.subr.mxu0 0.0
      %1737 = vmatpush1.msra.mxu0 0.0
      %1738 = vmatprep.subr.mxu0 0.0
      %1739 = vmatpush1.msra.mxu0 0.0
      %1740 = vmatprep.subr.mxu0 0.0
      %1741 = vmatpush1.msra.mxu0 0.0
      %1742 = vmatprep.mubr.f32.mxu0 0.0
      %1743 = vmatmul.mubr.f32.gmra.mrb[0].mxu0 %v465
      %v1744 = vpop.f32.mrb[0].mxu0
      %v1745 = vadd.f32 %v1671, %v1744
      %v1746 = vpop.f32.mrb[0].mxu0
      %v1747 = vadd.f32 %v1675, %v1746
      %1748 = vmatprep.mubr.f32.mxu0 0.0
      %1749 = vmatmul.mubr.f32.gmra.mrb[0].mxu0 %v468
      %v1750 = vpop.f32.mrb[0].mxu0
      %v1751 = vadd.f32 %v1671, %v1750
      %v1752 = vpop.f32.mrb[0].mxu0
      %v1753 = vadd.f32 %v1675, %v1752
      %1754 = vmatprep.mubr.f32.mxu0 0.0
      %1755 = vmatmul.mubr.f32.gmra.mrb[0].mxu0 %v471
      %v1756 = vpop.f32.mrb[0].mxu0
      %v1757 = vadd.f32 %v1671, %v1756
      %v1758 = vpop.f32.mrb[0].mxu0
      %v1759 = vadd.f32 %v1675, %v1758
      %1760 = vmatprep.mubr.f32.mxu0 0.0
      %1761 = vmatmul.mubr.f32.gmra.mrb[0].mxu0 %v474
      %v1762 = vpop.f32.mrb[0].mxu0
      %v1763 = vadd.f32 %v1671, %v1762
      %v1764 = vpop.f32.mrb[0].mxu0
      %v1765 = vadd.f32 %v1675, %v1764
      %1766 = vmatprep.mubr.f32.mxu0 0.0
      %1767 = vmatmul.mubr.f32.gmra.mrb[0].mxu0 %v477
      %v1768 = vpop.f32.mrb[0].mxu0
      %v1769 = vadd.f32 %v1671, %v1768
      %v1770 = vpop.f32.mrb[0].mxu0
      %v1771 = vadd.f32 %v1675, %v1770
      %1772 = vmatprep.mubr.f32.mxu0 0.0
      %1773 = vmatmul.mubr.f32.gmra.mrb[0].mxu0 %v480
      %v1774 = vpop.f32.mrb[0].mxu0
      %v1775 = vadd.f32 %v1671, %v1774
      %v1776 = vpop.f32.mrb[0].mxu0
      %v1777 = vadd.f32 %v1675, %v1776
      %1778 = vmatprep.mubr.f32.mxu0 0.0
      %1779 = vmatmul.mubr.f32.gmra.mrb[0].mxu0 %v483
      %v1780 = vpop.f32.mrb[0].mxu0
      %v1781 = vadd.f32 %v1671, %v1780
      %v1782 = vpop.f32.mrb[0].mxu0
      %v1783 = vadd.f32 %v1675, %v1782
      %1784 = vmatprep.mubr.f32.mxu0 0.0
      %1785 = vmatmul.mubr.f32.gmra.mrb[0].mxu0 %v486
      %v1786 = vpop.f32.mrb[0].mxu0
      %v1787 = vadd.f32 %v1671, %v1786
      %v1788 = vpop.f32.mrb[0].mxu0
      %v1789 = vadd.f32 %v1675, %v1788
      %1790 = vmatprep.mubr.f32.mxu0 0.0
      %1791 = vmatmul.mubr.f32.gmra.mrb[0].mxu0 %v489
      %v1792 = vpop.f32.mrb[0].mxu0
      %v1793 = vadd.f32 %v1671, %v1792
      %v1794 = vpop.f32.mrb[0].mxu0
      %v1795 = vadd.f32 %v1675, %v1794
      %1796 = vmatprep.mubr.f32.mxu0 0.0
      %1797 = vmatmul.mubr.f32.gmra.mrb[0].mxu0 %v492
      %v1798 = vpop.f32.mrb[0].mxu0
      %v1799 = vadd.f32 %v1671, %v1798
      %v1800 = vpop.f32.mrb[0].mxu0
      %v1801 = vadd.f32 %v1675, %v1800
      %1802 = vmatprep.mubr.f32.mxu0 0.0
      %1803 = vmatmul.mubr.f32.gmra.mrb[0].mxu0 %v495
      %v1804 = vpop.f32.mrb[0].mxu0
      %v1805 = vadd.f32 %v1671, %v1804
      %v1806 = vpop.f32.mrb[0].mxu0
      %v1807 = vadd.f32 %v1675, %v1806
      %1808 = vmatprep.mubr.f32.mxu0 0.0
      %1809 = vmatmul.mubr.f32.gmra.mrb[0].mxu0 %v498
      %v1810 = vpop.f32.mrb[0].mxu0
      %v1811 = vadd.f32 %v1671, %v1810
      %v1812 = vpop.f32.mrb[0].mxu0
      %v1813 = vadd.f32 %v1675, %v1812
      %1814 = vmatprep.mubr.f32.mxu0 0.0
      %1815 = vmatmul.mubr.f32.gmra.mrb[0].mxu0 %v501
      %v1816 = vpop.f32.mrb[0].mxu0
      %v1817 = vadd.f32 %v1671, %v1816
      %v1818 = vpop.f32.mrb[0].mxu0
      %v1819 = vadd.f32 %v1675, %v1818
      %1820 = vmatprep.mubr.f32.mxu0 0.0
      %1821 = vmatmul.mubr.f32.gmra.mrb[0].mxu0 %v504
      %v1822 = vpop.f32.mrb[0].mxu0
      %v1823 = vadd.f32 %v1671, %v1822
      %v1824 = vpop.f32.mrb[0].mxu0
      %v1825 = vadd.f32 %v1675, %v1824
      %1826 = vmatprep.mubr.f32.mxu0 0.0
      %1827 = vmatmul.mubr.f32.gmra.mrb[0].mxu0 %v507
      %v1828 = vpop.f32.mrb[0].mxu0
      %v1829 = vadd.f32 %v1671, %v1828
      %v1830 = vpop.f32.mrb[0].mxu0
      %v1831 = vadd.f32 %v1675, %v1830
      %1832 = vmatprep.mubr.f32.mxu0 0.0
      %1833 = vmatmul.mubr.f32.gmra.mrb[0].mxu0 %v510
      %v1834 = vpop.f32.mrb[0].mxu0
      %v1835 = vadd.f32 %v1671, %v1834
      %v1836 = vpop.f32.mrb[0].mxu0
      %v1837 = vadd.f32 %v1675, %v1836
      %1838 = vmatprep.mubr.f32.mxu0 0.0
      %1839 = vmatmul.mubr.f32.gmra.mrb[0].mxu0 %v513
      %v1840 = vpop.f32.mrb[0].mxu0
      %v1841 = vadd.f32 %v1671, %v1840
      %v1842 = vpop.f32.mrb[0].mxu0
      %v1843 = vadd.f32 %v1675, %v1842
      %1844 = vmatprep.mubr.f32.mxu0 0.0
      %1845 = vmatmul.mubr.f32.gmra.mrb[0].mxu0 %v516
      %v1846 = vpop.f32.mrb[0].mxu0
      %v1847 = vadd.f32 %v1671, %v1846
      %v1848 = vpop.f32.mrb[0].mxu0
      %v1849 = vadd.f32 %v1675, %v1848
      %1850 = vmatprep.mubr.f32.mxu0 0.0
      %1851 = vmatmul.mubr.f32.gmra.mrb[0].mxu0 %v519
      %v1852 = vpop.f32.mrb[0].mxu0
      %v1853 = vadd.f32 %v1671, %v1852
      %v1854 = vpop.f32.mrb[0].mxu0
      %v1855 = vadd.f32 %v1675, %v1854
      %1856 = vmatprep.mubr.f32.mxu0 0.0
      %1857 = vmatmul.mubr.f32.gmra.mrb[0].mxu0 %v522
      %v1858 = vpop.f32.mrb[0].mxu0
      %v1859 = vadd.f32 %v1671, %v1858
      %v1860 = vpop.f32.mrb[0].mxu0
      %v1861 = vadd.f32 %v1675, %v1860
      %1862 = vmatprep.mubr.f32.mxu0 0.0
      %1863 = vmatmul.mubr.f32.gmra.mrb[0].mxu0 %v525
      %v1864 = vpop.f32.mrb[0].mxu0
      %v1865 = vadd.f32 %v1671, %v1864
      %v1866 = vpop.f32.mrb[0].mxu0
      %v1867 = vadd.f32 %v1675, %v1866
      %1868 = vmatprep.mubr.f32.mxu0 0.0
      %1869 = vmatmul.mubr.f32.gmra.mrb[0].mxu0 %v528
      %v1870 = vpop.f32.mrb[0].mxu0
      %v1871 = vadd.f32 %v1671, %v1870
      %v1872 = vpop.f32.mrb[0].mxu0
      %v1873 = vadd.f32 %v1675, %v1872
      %1874 = vmatprep.mubr.f32.mxu0 0.0
      %1875 = vmatmul.mubr.f32.gmra.mrb[0].mxu0 %v531
      %v1876 = vpop.f32.mrb[0].mxu0
      %v1877 = vadd.f32 %v1671, %v1876
      %v1878 = vpop.f32.mrb[0].mxu0
      %v1879 = vadd.f32 %v1675, %v1878
      %1880 = vmatprep.mubr.f32.mxu0 0.0
      %1881 = vmatmul.mubr.f32.gmra.mrb[0].mxu0 %v534
      %v1882 = vpop.f32.mrb[0].mxu0
      %v1883 = vadd.f32 %v1671, %v1882
      %v1884 = vpop.f32.mrb[0].mxu0
      %v1885 = vadd.f32 %v1675, %v1884
      %1886 = vmatprep.mubr.f32.mxu0 0.0
      %1887 = vmatmul.mubr.f32.gmra.mrb[0].mxu0 %v537
      %v1888 = vpop.f32.mrb[0].mxu0
      %v1889 = vadd.f32 %v1671, %v1888
      %v1890 = vpop.f32.mrb[0].mxu0
      %v1891 = vadd.f32 %v1675, %v1890
      %1892 = vmatprep.mubr.f32.mxu0 0.0
      %1893 = vmatmul.mubr.f32.gmra.mrb[0].mxu0 %v540
      %v1894 = vpop.f32.mrb[0].mxu0
      %v1895 = vadd.f32 %v1671, %v1894
      %v1896 = vpop.f32.mrb[0].mxu0
      %v1897 = vadd.f32 %v1675, %v1896
      %1898 = vmatprep.mubr.f32.mxu0 0.0
      %1899 = vmatmul.mubr.f32.gmra.mrb[0].mxu0 %v543
      %v1900 = vpop.f32.mrb[0].mxu0
      %v1901 = vadd.f32 %v1671, %v1900
      %v1902 = vpop.f32.mrb[0].mxu0
      %v1903 = vadd.f32 %v1675, %v1902
      %1904 = vmatprep.mubr.f32.mxu0 0.0
      %1905 = vmatmul.mubr.f32.gmra.mrb[0].mxu0 %v546
      %v1906 = vpop.f32.mrb[0].mxu0
      %v1907 = vadd.f32 %v1671, %v1906
      %v1908 = vpop.f32.mrb[0].mxu0
      %v1909 = vadd.f32 %v1675, %v1908
      %1910 = vmatprep.mubr.f32.mxu0 0.0
      %1911 = vmatmul.mubr.f32.gmra.mrb[0].mxu0 %v549
      %v1912 = vpop.f32.mrb[0].mxu0
      %v1913 = vadd.f32 %v1671, %v1912
      %v1914 = vpop.f32.mrb[0].mxu0
      %v1915 = vadd.f32 %v1675, %v1914
      %1916 = vmatprep.mubr.f32.mxu0 0.0
      %1917 = vmatmul.mubr.f32.gmra.mrb[0].mxu0 %v552
      %v1918 = vpop.f32.mrb[0].mxu0
      %v1919 = vadd.f32 %v1671, %v1918
      %v1920 = vpop.f32.mrb[0].mxu0
      %v1921 = vadd.f32 %v1675, %v1920
      %1922 = vmatprep.mubr.f32.mxu0 0.0
      %1923 = vmatmul.mubr.f32.gmra.mrb[0].mxu0 %v555
      %v1924 = vpop.f32.mrb[0].mxu0
      %v1925 = vadd.f32 %v1671, %v1924
      %v1926 = vpop.f32.mrb[0].mxu0
      %v1927 = vadd.f32 %v1675, %v1926
      %1928 = vmatprep.mubr.f32.mxu0 0.0
      %1929 = vmatmul.mubr.f32.gmra.mrb[0].mxu0 %v558
      %v1930 = vpop.f32.mrb[0].mxu0
      %v1931 = vadd.f32 %v1671, %v1930
      %v1932 = vpop.f32.mrb[0].mxu0
      %v1933 = vadd.f32 %v1675, %v1932
      %1934 = vdwg.mxu0
      %v1935 = vand.u32 2147483647, %v627
      %v1936 = vand.u32 2147483647, %v632
      %v1937 = vand.u32 2147483647, %v637
      %v1938 = vand.u32 2147483647, %v642
      %v1939 = vand.u32 2147483647, %v647
      %v1940 = vand.u32 2147483647, %v652
      %v1941 = vand.u32 2147483647, %v657
      %v1942 = vand.u32 2147483647, %v662
      %v1943 = vand.u32 2147483647, %v667
      %v1944 = vand.u32 2147483647, %v672
      %v1945 = vand.u32 2147483647, %v677
      %v1946 = vand.u32 2147483647, %v682
      %v1947 = vand.u32 2147483647, %v687
      %v1948 = vand.u32 2147483647, %v692
      %v1949 = vand.u32 2147483647, %v697
      %v1950 = vand.u32 2147483647, %v702
      %v1951 = vand.u32 2147483647, %v707
      %v1952 = vand.u32 2147483647, %v712
      %v1953 = vand.u32 2147483647, %v717
      %v1954 = vand.u32 2147483647, %v722
      %v1955 = vand.u32 2147483647, %v727
      %v1956 = vand.u32 2147483647, %v732
      %v1957 = vand.u32 2147483647, %v737
      %v1958 = vand.u32 2147483647, %v742
      %v1959 = vand.u32 2147483647, %v747
      %v1960 = vand.u32 2147483647, %v752
      %v1961 = vand.u32 2147483647, %v757
      %v1962 = vand.u32 2147483647, %v762
      %v1963 = vand.u32 2147483647, %v767
      %v1964 = vand.u32 2147483647, %v772
      %v1965 = vand.u32 2147483647, %v777
      %v1966 = vand.u32 2147483647, %v782
      %v1967 = vsel %vm914, %v1935, 0.0
      %1968 = vadd.xlane.f32.xlu0 %v1967
      %v1969 = vpop.xlane.xlu0 %1968
      %v1970 = vsel %vm914, %v1936, 0.0
      %1971 = vadd.xlane.f32.xlu0 %v1970
      %v1972 = vpop.xlane.xlu0 %1971
      %v1973 = vsel %vm914, %v1937, 0.0
      %1974 = vadd.xlane.f32.xlu0 %v1973
      %v1975 = vpop.xlane.xlu0 %1974
      %v1976 = vsel %vm914, %v1938, 0.0
      %1977 = vadd.xlane.f32.xlu0 %v1976
      %v1978 = vpop.xlane.xlu0 %1977
      %v1979 = vsel %vm914, %v1939, 0.0
      %1980 = vadd.xlane.f32.xlu0 %v1979
      %v1981 = vpop.xlane.xlu0 %1980
      %v1982 = vsel %vm914, %v1940, 0.0
      %1983 = vadd.xlane.f32.xlu0 %v1982
      %v1984 = vpop.xlane.xlu0 %1983
      %v1985 = vsel %vm914, %v1941, 0.0
      %1986 = vadd.xlane.f32.xlu0 %v1985
      %v1987 = vpop.xlane.xlu0 %1986
      %v1988 = vsel %vm914, %v1942, 0.0
      %1989 = vadd.xlane.f32.xlu0 %v1988
      %v1990 = vpop.xlane.xlu0 %1989
      %v1991 = vsel %vm914, %v1943, 0.0
      %1992 = vadd.xlane.f32.xlu0 %v1991
      %v1993 = vpop.xlane.xlu0 %1992
      %v1994 = vsel %vm914, %v1944, 0.0
      %1995 = vadd.xlane.f32.xlu0 %v1994
      %v1996 = vpop.xlane.xlu0 %1995
      %v1997 = vsel %vm914, %v1945, 0.0
      %1998 = vadd.xlane.f32.xlu0 %v1997
      %v1999 = vpop.xlane.xlu0 %1998
      %v2000 = vsel %vm914, %v1946, 0.0
      %2001 = vadd.xlane.f32.xlu0 %v2000
      %v2002 = vpop.xlane.xlu0 %2001
      %v2003 = vsel %vm914, %v1947, 0.0
      %2004 = vadd.xlane.f32.xlu0 %v2003
      %v2005 = vpop.xlane.xlu0 %2004
      %v2006 = vsel %vm914, %v1948, 0.0
      %2007 = vadd.xlane.f32.xlu0 %v2006
      %v2008 = vpop.xlane.xlu0 %2007
      %v2009 = vsel %vm914, %v1949, 0.0
      %2010 = vadd.xlane.f32.xlu0 %v2009
      %v2011 = vpop.xlane.xlu0 %2010
      %v2012 = vsel %vm914, %v1950, 0.0
      %2013 = vadd.xlane.f32.xlu0 %v2012
      %v2014 = vpop.xlane.xlu0 %2013
      %v2015 = vsel %vm914, %v1951, 0.0
      %2016 = vadd.xlane.f32.xlu0 %v2015
      %v2017 = vpop.xlane.xlu0 %2016
      %v2018 = vsel %vm914, %v1952, 0.0
      %2019 = vadd.xlane.f32.xlu0 %v2018
      %v2020 = vpop.xlane.xlu0 %2019
      %v2021 = vsel %vm914, %v1953, 0.0
      %2022 = vadd.xlane.f32.xlu0 %v2021
      %v2023 = vpop.xlane.xlu0 %2022
      %v2024 = vsel %vm914, %v1954, 0.0
      %2025 = vadd.xlane.f32.xlu0 %v2024
      %v2026 = vpop.xlane.xlu0 %2025
      %v2027 = vsel %vm914, %v1955, 0.0
      %2028 = vadd.xlane.f32.xlu0 %v2027
      %v2029 = vpop.xlane.xlu0 %2028
      %v2030 = vsel %vm914, %v1956, 0.0
      %2031 = vadd.xlane.f32.xlu0 %v2030
      %v2032 = vpop.xlane.xlu0 %2031
      %v2033 = vsel %vm914, %v1957, 0.0
      %2034 = vadd.xlane.f32.xlu0 %v2033
      %v2035 = vpop.xlane.xlu0 %2034
      %v2036 = vsel %vm914, %v1958, 0.0
      %2037 = vadd.xlane.f32.xlu0 %v2036
      %v2038 = vpop.xlane.xlu0 %2037
      %v2039 = vsel %vm914, %v1959, 0.0
      %2040 = vadd.xlane.f32.xlu0 %v2039
      %v2041 = vpop.xlane.xlu0 %2040
      %v2042 = vsel %vm914, %v1960, 0.0
      %2043 = vadd.xlane.f32.xlu0 %v2042
      %v2044 = vpop.xlane.xlu0 %2043
      %v2045 = vsel %vm914, %v1961, 0.0
      %2046 = vadd.xlane.f32.xlu0 %v2045
      %v2047 = vpop.xlane.xlu0 %2046
      %v2048 = vsel %vm914, %v1962, 0.0
      %2049 = vadd.xlane.f32.xlu0 %v2048
      %v2050 = vpop.xlane.xlu0 %2049
      %v2051 = vsel %vm914, %v1963, 0.0
      %2052 = vadd.xlane.f32.xlu0 %v2051
      %v2053 = vpop.xlane.xlu0 %2052
      %v2054 = vsel %vm914, %v1964, 0.0
      %2055 = vadd.xlane.f32.xlu0 %v2054
      %v2056 = vpop.xlane.xlu0 %2055
      %v2057 = vsel %vm914, %v1965, 0.0
      %2058 = vadd.xlane.f32.xlu0 %v2057
      %v2059 = vpop.xlane.xlu0 %2058
      %v2060 = vsel %vm914, %v1966, 0.0
      %2061 = vadd.xlane.f32.xlu0 %v2060
      %v2062 = vpop.xlane.xlu0 %2061
      %v2063 = vmul.f32 %v1969, 200.0
      %v2064 = vmul.f32 %v1972, 200.0
      %v2065 = vmul.f32 %v1975, 200.0
      %v2066 = vmul.f32 %v1978, 200.0
      %v2067 = vmul.f32 %v1981, 200.0
      %v2068 = vmul.f32 %v1984, 200.0
      %v2069 = vmul.f32 %v1987, 200.0
      %v2070 = vmul.f32 %v1990, 200.0
      %v2071 = vmul.f32 %v1993, 200.0
      %v2072 = vmul.f32 %v1996, 200.0
      %v2073 = vmul.f32 %v1999, 200.0
      %v2074 = vmul.f32 %v2002, 200.0
      %v2075 = vmul.f32 %v2005, 200.0
      %v2076 = vmul.f32 %v2008, 200.0
      %v2077 = vmul.f32 %v2011, 200.0
      %v2078 = vmul.f32 %v2014, 200.0
      %v2079 = vmul.f32 %v2017, 200.0
      %v2080 = vmul.f32 %v2020, 200.0
      %v2081 = vmul.f32 %v2023, 200.0
      %v2082 = vmul.f32 %v2026, 200.0
      %v2083 = vmul.f32 %v2029, 200.0
      %v2084 = vmul.f32 %v2032, 200.0
      %v2085 = vmul.f32 %v2035, 200.0
      %v2086 = vmul.f32 %v2038, 200.0
      %v2087 = vmul.f32 %v2041, 200.0
      %v2088 = vmul.f32 %v2044, 200.0
      %v2089 = vmul.f32 %v2047, 200.0
      %v2090 = vmul.f32 %v2050, 200.0
      %v2091 = vmul.f32 %v2053, 200.0
      %v2092 = vmul.f32 %v2056, 200.0
      %v2093 = vmul.f32 %v2059, 200.0
      %v2094 = vmul.f32 %v2062, 200.0
      %v2095 = vsub.f32 %v1745, %v2063
      %v2096 = vsub.f32 %v1747, %v2063
      %v2097 = vsub.f32 %v1751, %v2064
      %v2098 = vsub.f32 %v1753, %v2064
      %v2099 = vsub.f32 %v1757, %v2065
      %v2100 = vsub.f32 %v1759, %v2065
      %v2101 = vsub.f32 %v1763, %v2066
      %v2102 = vsub.f32 %v1765, %v2066
      %v2103 = vsub.f32 %v1769, %v2067
      %v2104 = vsub.f32 %v1771, %v2067
      %v2105 = vsub.f32 %v1775, %v2068
      %v2106 = vsub.f32 %v1777, %v2068
      %v2107 = vsub.f32 %v1781, %v2069
      %v2108 = vsub.f32 %v1783, %v2069
      %v2109 = vsub.f32 %v1787, %v2070
      %v2110 = vsub.f32 %v1789, %v2070
      %v2111 = vsub.f32 %v1793, %v2071
      %v2112 = vsub.f32 %v1795, %v2071
      %v2113 = vsub.f32 %v1799, %v2072
      %v2114 = vsub.f32 %v1801, %v2072
      %v2115 = vsub.f32 %v1805, %v2073
      %v2116 = vsub.f32 %v1807, %v2073
      %v2117 = vsub.f32 %v1811, %v2074
      %v2118 = vsub.f32 %v1813, %v2074
      %v2119 = vsub.f32 %v1817, %v2075
      %v2120 = vsub.f32 %v1819, %v2075
      %v2121 = vsub.f32 %v1823, %v2076
      %v2122 = vsub.f32 %v1825, %v2076
      %v2123 = vsub.f32 %v1829, %v2077
      %v2124 = vsub.f32 %v1831, %v2077
      %v2125 = vsub.f32 %v1835, %v2078
      %v2126 = vsub.f32 %v1837, %v2078
      %v2127 = vsub.f32 %v1841, %v2079
      %v2128 = vsub.f32 %v1843, %v2079
      %v2129 = vsub.f32 %v1847, %v2080
      %v2130 = vsub.f32 %v1849, %v2080
      %v2131 = vsub.f32 %v1853, %v2081
      %v2132 = vsub.f32 %v1855, %v2081
      %v2133 = vsub.f32 %v1859, %v2082
      %v2134 = vsub.f32 %v1861, %v2082
      %v2135 = vsub.f32 %v1865, %v2083
      %v2136 = vsub.f32 %v1867, %v2083
      %v2137 = vsub.f32 %v1871, %v2084
      %v2138 = vsub.f32 %v1873, %v2084
      %v2139 = vsub.f32 %v1877, %v2085
      %v2140 = vsub.f32 %v1879, %v2085
      %v2141 = vsub.f32 %v1883, %v2086
      %v2142 = vsub.f32 %v1885, %v2086
      %v2143 = vsub.f32 %v1889, %v2087
      %v2144 = vsub.f32 %v1891, %v2087
      %v2145 = vsub.f32 %v1895, %v2088
      %v2146 = vsub.f32 %v1897, %v2088
      %v2147 = vsub.f32 %v1901, %v2089
      %v2148 = vsub.f32 %v1903, %v2089
      %v2149 = vsub.f32 %v1907, %v2090
      %v2150 = vsub.f32 %v1909, %v2090
      %v2151 = vsub.f32 %v1913, %v2091
      %v2152 = vsub.f32 %v1915, %v2091
      %v2153 = vsub.f32 %v1919, %v2092
      %v2154 = vsub.f32 %v1921, %v2092
      %v2155 = vsub.f32 %v1925, %v2093
      %v2156 = vsub.f32 %v1927, %v2093
      %v2157 = vsub.f32 %v1931, %v2094
      %v2158 = vsub.f32 %v1933, %v2094
      %v2159 = vmul.f32 %v2095, 1.442695
      %v2160 = vpow.pop %v2159
      %v2161 = vmul.f32 %v2096, 1.442695
      %v2162 = vpow.pop %v2161
      %v2163 = vmul.f32 %v2097, 1.442695
      %v2164 = vpow.pop %v2163
      %v2165 = vmul.f32 %v2098, 1.442695
      %v2166 = vpow.pop %v2165
      %v2167 = vmul.f32 %v2099, 1.442695
      %v2168 = vpow.pop %v2167
      %v2169 = vmul.f32 %v2100, 1.442695
      %v2170 = vpow.pop %v2169
      %v2171 = vmul.f32 %v2101, 1.442695
      %v2172 = vpow.pop %v2171
      %v2173 = vmul.f32 %v2102, 1.442695
      %v2174 = vpow.pop %v2173
      %v2175 = vmul.f32 %v2103, 1.442695
      %v2176 = vpow.pop %v2175
      %v2177 = vmul.f32 %v2104, 1.442695
      %v2178 = vpow.pop %v2177
      %v2179 = vmul.f32 %v2105, 1.442695
      %v2180 = vpow.pop %v2179
      %v2181 = vmul.f32 %v2106, 1.442695
      %v2182 = vpow.pop %v2181
      %v2183 = vmul.f32 %v2107, 1.442695
      %v2184 = vpow.pop %v2183
      %v2185 = vmul.f32 %v2108, 1.442695
      %v2186 = vpow.pop %v2185
      %v2187 = vmul.f32 %v2109, 1.442695
      %v2188 = vpow.pop %v2187
      %v2189 = vmul.f32 %v2110, 1.442695
      %v2190 = vpow.pop %v2189
      %v2191 = vmul.f32 %v2111, 1.442695
      %v2192 = vpow.pop %v2191
      %v2193 = vmul.f32 %v2112, 1.442695
      %v2194 = vpow.pop %v2193
      %v2195 = vmul.f32 %v2113, 1.442695
      %v2196 = vpow.pop %v2195
      %v2197 = vmul.f32 %v2114, 1.442695
      %v2198 = vpow.pop %v2197
      %v2199 = vmul.f32 %v2115, 1.442695
      %v2200 = vpow.pop %v2199
      %v2201 = vmul.f32 %v2116, 1.442695
      %v2202 = vpow.pop %v2201
      %v2203 = vmul.f32 %v2117, 1.442695
      %v2204 = vpow.pop %v2203
      %v2205 = vmul.f32 %v2118, 1.442695
      %v2206 = vpow.pop %v2205
      %v2207 = vmul.f32 %v2119, 1.442695
      %v2208 = vpow.pop %v2207
      %v2209 = vmul.f32 %v2120, 1.442695
      %v2210 = vpow.pop %v2209
      %v2211 = vmul.f32 %v2121, 1.442695
      %v2212 = vpow.pop %v2211
      %v2213 = vmul.f32 %v2122, 1.442695
      %v2214 = vpow.pop %v2213
      %v2215 = vmul.f32 %v2123, 1.442695
      %v2216 = vpow.pop %v2215
      %v2217 = vmul.f32 %v2124, 1.442695
      %v2218 = vpow.pop %v2217
      %v2219 = vmul.f32 %v2125, 1.442695
      %v2220 = vpow.pop %v2219
      %v2221 = vmul.f32 %v2126, 1.442695
      %v2222 = vpow.pop %v2221
      %v2223 = vmul.f32 %v2127, 1.442695
      %v2224 = vpow.pop %v2223
      %v2225 = vmul.f32 %v2128, 1.442695
      %v2226 = vpow.pop %v2225
      %v2227 = vmul.f32 %v2129, 1.442695
      %v2228 = vpow.pop %v2227
      %v2229 = vmul.f32 %v2130, 1.442695
      %v2230 = vpow.pop %v2229
      %v2231 = vmul.f32 %v2131, 1.442695
      %v2232 = vpow.pop %v2231
      %v2233 = vmul.f32 %v2132, 1.442695
      %v2234 = vpow.pop %v2233
      %v2235 = vmul.f32 %v2133, 1.442695
      %v2236 = vpow.pop %v2235
      %v2237 = vmul.f32 %v2134, 1.442695
      %v2238 = vpow.pop %v2237
      %v2239 = vmul.f32 %v2135, 1.442695
      %v2240 = vpow.pop %v2239
      %v2241 = vmul.f32 %v2136, 1.442695
      %v2242 = vpow.pop %v2241
      %v2243 = vmul.f32 %v2137, 1.442695
      %v2244 = vpow.pop %v2243
      %v2245 = vmul.f32 %v2138, 1.442695
      %v2246 = vpow.pop %v2245
      %v2247 = vmul.f32 %v2139, 1.442695
      %v2248 = vpow.pop %v2247
      %v2249 = vmul.f32 %v2140, 1.442695
      %v2250 = vpow.pop %v2249
      %v2251 = vmul.f32 %v2141, 1.442695
      %v2252 = vpow.pop %v2251
      %v2253 = vmul.f32 %v2142, 1.442695
      %v2254 = vpow.pop %v2253
      %v2255 = vmul.f32 %v2143, 1.442695
      %v2256 = vpow.pop %v2255
      %v2257 = vmul.f32 %v2144, 1.442695
      %v2258 = vpow.pop %v2257
      %v2259 = vmul.f32 %v2145, 1.442695
      %v2260 = vpow.pop %v2259
      %v2261 = vmul.f32 %v2146, 1.442695
      %v2262 = vpow.pop %v2261
      %v2263 = vmul.f32 %v2147, 1.442695
      %v2264 = vpow.pop %v2263
      %v2265 = vmul.f32 %v2148, 1.442695
      %v2266 = vpow.pop %v2265
      %v2267 = vmul.f32 %v2149, 1.442695
      %v2268 = vpow.pop %v2267
      %v2269 = vmul.f32 %v2150, 1.442695
      %v2270 = vpow.pop %v2269
      %v2271 = vmul.f32 %v2151, 1.442695
      %v2272 = vpow.pop %v2271
      %v2273 = vmul.f32 %v2152, 1.442695
      %v2274 = vpow.pop %v2273
      %v2275 = vmul.f32 %v2153, 1.442695
      %v2276 = vpow.pop %v2275
      %v2277 = vmul.f32 %v2154, 1.442695
      %v2278 = vpow.pop %v2277
      %v2279 = vmul.f32 %v2155, 1.442695
      %v2280 = vpow.pop %v2279
      %v2281 = vmul.f32 %v2156, 1.442695
      %v2282 = vpow.pop %v2281
      %v2283 = vmul.f32 %v2157, 1.442695
      %v2284 = vpow.pop %v2283
      %v2285 = vmul.f32 %v2158, 1.442695
      %v2286 = vpow.pop %v2285
      %v2287 = vadd.f32 %v2160, %v2162
      %2288 = vadd.xlane.f32.xlu0 %v2287
      %v2289 = vpop.xlane.xlu0 %2288
      %v2290 = vadd.f32 %v2164, %v2166
      %2291 = vadd.xlane.f32.xlu0 %v2290
      %v2292 = vpop.xlane.xlu0 %2291
      %v2293 = vadd.f32 %v2168, %v2170
      %2294 = vadd.xlane.f32.xlu0 %v2293
      %v2295 = vpop.xlane.xlu0 %2294
      %v2296 = vadd.f32 %v2172, %v2174
      %2297 = vadd.xlane.f32.xlu0 %v2296
      %v2298 = vpop.xlane.xlu0 %2297
      %v2299 = vadd.f32 %v2176, %v2178
      %2300 = vadd.xlane.f32.xlu0 %v2299
      %v2301 = vpop.xlane.xlu0 %2300
      %v2302 = vadd.f32 %v2180, %v2182
      %2303 = vadd.xlane.f32.xlu0 %v2302
      %v2304 = vpop.xlane.xlu0 %2303
      %v2305 = vadd.f32 %v2184, %v2186
      %2306 = vadd.xlane.f32.xlu0 %v2305
      %v2307 = vpop.xlane.xlu0 %2306
      %v2308 = vadd.f32 %v2188, %v2190
      %2309 = vadd.xlane.f32.xlu0 %v2308
      %v2310 = vpop.xlane.xlu0 %2309
      %v2311 = vadd.f32 %v2192, %v2194
      %2312 = vadd.xlane.f32.xlu0 %v2311
      %v2313 = vpop.xlane.xlu0 %2312
      %v2314 = vadd.f32 %v2196, %v2198
      %2315 = vadd.xlane.f32.xlu0 %v2314
      %v2316 = vpop.xlane.xlu0 %2315
      %v2317 = vadd.f32 %v2200, %v2202
      %2318 = vadd.xlane.f32.xlu0 %v2317
      %v2319 = vpop.xlane.xlu0 %2318
      %v2320 = vadd.f32 %v2204, %v2206
      %2321 = vadd.xlane.f32.xlu0 %v2320
      %v2322 = vpop.xlane.xlu0 %2321
      %v2323 = vadd.f32 %v2208, %v2210
      %2324 = vadd.xlane.f32.xlu0 %v2323
      %v2325 = vpop.xlane.xlu0 %2324
      %v2326 = vadd.f32 %v2212, %v2214
      %2327 = vadd.xlane.f32.xlu0 %v2326
      %v2328 = vpop.xlane.xlu0 %2327
      %v2329 = vadd.f32 %v2216, %v2218
      %2330 = vadd.xlane.f32.xlu0 %v2329
      %v2331 = vpop.xlane.xlu0 %2330
      %v2332 = vadd.f32 %v2220, %v2222
      %2333 = vadd.xlane.f32.xlu0 %v2332
      %v2334 = vpop.xlane.xlu0 %2333
      %v2335 = vadd.f32 %v2224, %v2226
      %2336 = vadd.xlane.f32.xlu0 %v2335
      %v2337 = vpop.xlane.xlu0 %2336
      %v2338 = vadd.f32 %v2228, %v2230
      %2339 = vadd.xlane.f32.xlu0 %v2338
      %v2340 = vpop.xlane.xlu0 %2339
      %v2341 = vadd.f32 %v2232, %v2234
      %2342 = vadd.xlane.f32.xlu0 %v2341
      %v2343 = vpop.xlane.xlu0 %2342
      %v2344 = vadd.f32 %v2236, %v2238
      %2345 = vadd.xlane.f32.xlu0 %v2344
      %v2346 = vpop.xlane.xlu0 %2345
      %v2347 = vadd.f32 %v2240, %v2242
      %2348 = vadd.xlane.f32.xlu0 %v2347
      %v2349 = vpop.xlane.xlu0 %2348
      %v2350 = vadd.f32 %v2244, %v2246
      %2351 = vadd.xlane.f32.xlu0 %v2350
      %v2352 = vpop.xlane.xlu0 %2351
      %v2353 = vadd.f32 %v2248, %v2250
      %2354 = vadd.xlane.f32.xlu0 %v2353
      %v2355 = vpop.xlane.xlu0 %2354
      %v2356 = vadd.f32 %v2252, %v2254
      %2357 = vadd.xlane.f32.xlu0 %v2356
      %v2358 = vpop.xlane.xlu0 %2357
      %v2359 = vadd.f32 %v2256, %v2258
      %2360 = vadd.xlane.f32.xlu0 %v2359
      %v2361 = vpop.xlane.xlu0 %2360
      %v2362 = vadd.f32 %v2260, %v2262
      %2363 = vadd.xlane.f32.xlu0 %v2362
      %v2364 = vpop.xlane.xlu0 %2363
      %v2365 = vadd.f32 %v2264, %v2266
      %2366 = vadd.xlane.f32.xlu0 %v2365
      %v2367 = vpop.xlane.xlu0 %2366
      %v2368 = vadd.f32 %v2268, %v2270
      %2369 = vadd.xlane.f32.xlu0 %v2368
      %v2370 = vpop.xlane.xlu0 %2369
      %v2371 = vadd.f32 %v2272, %v2274
      %2372 = vadd.xlane.f32.xlu0 %v2371
      %v2373 = vpop.xlane.xlu0 %2372
      %v2374 = vadd.f32 %v2276, %v2278
      %2375 = vadd.xlane.f32.xlu0 %v2374
      %v2376 = vpop.xlane.xlu0 %2375
      %v2377 = vadd.f32 %v2280, %v2282
      %2378 = vadd.xlane.f32.xlu0 %v2377
      %v2379 = vpop.xlane.xlu0 %2378
      %v2380 = vadd.f32 %v2284, %v2286
      %2381 = vadd.xlane.f32.xlu0 %v2380
      %v2382 = vpop.xlane.xlu0 %2381
      %v2383 = vmul.f32 %v2160, %v2095
      %v2384 = vmul.f32 %v2162, %v2096
      %v2385 = vmul.f32 %v2164, %v2097
      %v2386 = vmul.f32 %v2166, %v2098
      %v2387 = vmul.f32 %v2168, %v2099
      %v2388 = vmul.f32 %v2170, %v2100
      %v2389 = vmul.f32 %v2172, %v2101
      %v2390 = vmul.f32 %v2174, %v2102
      %v2391 = vmul.f32 %v2176, %v2103
      %v2392 = vmul.f32 %v2178, %v2104
      %v2393 = vmul.f32 %v2180, %v2105
      %v2394 = vmul.f32 %v2182, %v2106
      %v2395 = vmul.f32 %v2184, %v2107
      %v2396 = vmul.f32 %v2186, %v2108
      %v2397 = vmul.f32 %v2188, %v2109
      %v2398 = vmul.f32 %v2190, %v2110
      %v2399 = vmul.f32 %v2192, %v2111
      %v2400 = vmul.f32 %v2194, %v2112
      %v2401 = vmul.f32 %v2196, %v2113
      %v2402 = vmul.f32 %v2198, %v2114
      %v2403 = vmul.f32 %v2200, %v2115
      %v2404 = vmul.f32 %v2202, %v2116
      %v2405 = vmul.f32 %v2204, %v2117
      %v2406 = vmul.f32 %v2206, %v2118
      %v2407 = vmul.f32 %v2208, %v2119
      %v2408 = vmul.f32 %v2210, %v2120
      %v2409 = vmul.f32 %v2212, %v2121
      %v2410 = vmul.f32 %v2214, %v2122
      %v2411 = vmul.f32 %v2216, %v2123
      %v2412 = vmul.f32 %v2218, %v2124
      %v2413 = vmul.f32 %v2220, %v2125
      %v2414 = vmul.f32 %v2222, %v2126
      %v2415 = vmul.f32 %v2224, %v2127
      %v2416 = vmul.f32 %v2226, %v2128
      %v2417 = vmul.f32 %v2228, %v2129
      %v2418 = vmul.f32 %v2230, %v2130
      %v2419 = vmul.f32 %v2232, %v2131
      %v2420 = vmul.f32 %v2234, %v2132
      %v2421 = vmul.f32 %v2236, %v2133
      %v2422 = vmul.f32 %v2238, %v2134
      %v2423 = vmul.f32 %v2240, %v2135
      %v2424 = vmul.f32 %v2242, %v2136
      %v2425 = vmul.f32 %v2244, %v2137
      %v2426 = vmul.f32 %v2246, %v2138
      %v2427 = vmul.f32 %v2248, %v2139
      %v2428 = vmul.f32 %v2250, %v2140
      %v2429 = vmul.f32 %v2252, %v2141
      %v2430 = vmul.f32 %v2254, %v2142
      %v2431 = vmul.f32 %v2256, %v2143
      %v2432 = vmul.f32 %v2258, %v2144
      %v2433 = vmul.f32 %v2260, %v2145
      %v2434 = vmul.f32 %v2262, %v2146
      %v2435 = vmul.f32 %v2264, %v2147
      %v2436 = vmul.f32 %v2266, %v2148
      %v2437 = vmul.f32 %v2268, %v2149
      %v2438 = vmul.f32 %v2270, %v2150
      %v2439 = vmul.f32 %v2272, %v2151
      %v2440 = vmul.f32 %v2274, %v2152
      %v2441 = vmul.f32 %v2276, %v2153
      %v2442 = vmul.f32 %v2278, %v2154
      %v2443 = vmul.f32 %v2280, %v2155
      %v2444 = vmul.f32 %v2282, %v2156
      %v2445 = vmul.f32 %v2284, %v2157
      %v2446 = vmul.f32 %v2286, %v2158
      %v2447 = vadd.f32 %v2383, %v2384
      %2448 = vadd.xlane.f32.xlu0 %v2447
      %v2449 = vpop.xlane.xlu0 %2448
      %v2450 = vadd.f32 %v2385, %v2386
      %2451 = vadd.xlane.f32.xlu0 %v2450
      %v2452 = vpop.xlane.xlu0 %2451
      %v2453 = vadd.f32 %v2387, %v2388
      %2454 = vadd.xlane.f32.xlu0 %v2453
      %v2455 = vpop.xlane.xlu0 %2454
      %v2456 = vadd.f32 %v2389, %v2390
      %2457 = vadd.xlane.f32.xlu0 %v2456
      %v2458 = vpop.xlane.xlu0 %2457
      %v2459 = vadd.f32 %v2391, %v2392
      %2460 = vadd.xlane.f32.xlu0 %v2459
      %v2461 = vpop.xlane.xlu0 %2460
      %v2462 = vadd.f32 %v2393, %v2394
      %2463 = vadd.xlane.f32.xlu0 %v2462
      %v2464 = vpop.xlane.xlu0 %2463
      %v2465 = vadd.f32 %v2395, %v2396
      %2466 = vadd.xlane.f32.xlu0 %v2465
      %v2467 = vpop.xlane.xlu0 %2466
      %v2468 = vadd.f32 %v2397, %v2398
      %2469 = vadd.xlane.f32.xlu0 %v2468
      %v2470 = vpop.xlane.xlu0 %2469
      %v2471 = vadd.f32 %v2399, %v2400
      %2472 = vadd.xlane.f32.xlu0 %v2471
      %v2473 = vpop.xlane.xlu0 %2472
      %v2474 = vadd.f32 %v2401, %v2402
      %2475 = vadd.xlane.f32.xlu0 %v2474
      %v2476 = vpop.xlane.xlu0 %2475
      %v2477 = vadd.f32 %v2403, %v2404
      %2478 = vadd.xlane.f32.xlu0 %v2477
      %v2479 = vpop.xlane.xlu0 %2478
      %v2480 = vadd.f32 %v2405, %v2406
      %2481 = vadd.xlane.f32.xlu0 %v2480
      %v2482 = vpop.xlane.xlu0 %2481
      %v2483 = vadd.f32 %v2407, %v2408
      %2484 = vadd.xlane.f32.xlu0 %v2483
      %v2485 = vpop.xlane.xlu0 %2484
      %v2486 = vadd.f32 %v2409, %v2410
      %2487 = vadd.xlane.f32.xlu0 %v2486
      %v2488 = vpop.xlane.xlu0 %2487
      %v2489 = vadd.f32 %v2411, %v2412
      %2490 = vadd.xlane.f32.xlu0 %v2489
      %v2491 = vpop.xlane.xlu0 %2490
      %v2492 = vadd.f32 %v2413, %v2414
      %2493 = vadd.xlane.f32.xlu0 %v2492
      %v2494 = vpop.xlane.xlu0 %2493
      %v2495 = vadd.f32 %v2415, %v2416
      %2496 = vadd.xlane.f32.xlu0 %v2495
      %v2497 = vpop.xlane.xlu0 %2496
      %v2498 = vadd.f32 %v2417, %v2418
      %2499 = vadd.xlane.f32.xlu0 %v2498
      %v2500 = vpop.xlane.xlu0 %2499
      %v2501 = vadd.f32 %v2419, %v2420
      %2502 = vadd.xlane.f32.xlu0 %v2501
      %v2503 = vpop.xlane.xlu0 %2502
      %v2504 = vadd.f32 %v2421, %v2422
      %2505 = vadd.xlane.f32.xlu0 %v2504
      %v2506 = vpop.xlane.xlu0 %2505
      %v2507 = vadd.f32 %v2423, %v2424
      %2508 = vadd.xlane.f32.xlu0 %v2507
      %v2509 = vpop.xlane.xlu0 %2508
      %v2510 = vadd.f32 %v2425, %v2426
      %2511 = vadd.xlane.f32.xlu0 %v2510
      %v2512 = vpop.xlane.xlu0 %2511
      %v2513 = vadd.f32 %v2427, %v2428
      %2514 = vadd.xlane.f32.xlu0 %v2513
      %v2515 = vpop.xlane.xlu0 %2514
      %v2516 = vadd.f32 %v2429, %v2430
      %2517 = vadd.xlane.f32.xlu0 %v2516
      %v2518 = vpop.xlane.xlu0 %2517
      %v2519 = vadd.f32 %v2431, %v2432
      %2520 = vadd.xlane.f32.xlu0 %v2519
      %v2521 = vpop.xlane.xlu0 %2520
      %v2522 = vadd.f32 %v2433, %v2434
      %2523 = vadd.xlane.f32.xlu0 %v2522
      %v2524 = vpop.xlane.xlu0 %2523
      %v2525 = vadd.f32 %v2435, %v2436
      %2526 = vadd.xlane.f32.xlu0 %v2525
      %v2527 = vpop.xlane.xlu0 %2526
      %v2528 = vadd.f32 %v2437, %v2438
      %2529 = vadd.xlane.f32.xlu0 %v2528
      %v2530 = vpop.xlane.xlu0 %2529
      %v2531 = vadd.f32 %v2439, %v2440
      %2532 = vadd.xlane.f32.xlu0 %v2531
      %v2533 = vpop.xlane.xlu0 %2532
      %v2534 = vadd.f32 %v2441, %v2442
      %2535 = vadd.xlane.f32.xlu0 %v2534
      %v2536 = vpop.xlane.xlu0 %2535
      %v2537 = vadd.f32 %v2443, %v2444
      %2538 = vadd.xlane.f32.xlu0 %v2537
      %v2539 = vpop.xlane.xlu0 %2538
      %v2540 = vadd.f32 %v2445, %v2446
      %2541 = vadd.xlane.f32.xlu0 %v2540
      %v2542 = vpop.xlane.xlu0 %2541
      %v2543 = vrcp.pop %v2289
      %v2544 = vrcp.pop %v2292
      %v2545 = vrcp.pop %v2295
      %v2546 = vrcp.pop %v2298
      %v2547 = vrcp.pop %v2301
      %v2548 = vrcp.pop %v2304
      %v2549 = vrcp.pop %v2307
      %v2550 = vrcp.pop %v2310
      %v2551 = vrcp.pop %v2313
      %v2552 = vrcp.pop %v2316
      %v2553 = vrcp.pop %v2319
      %v2554 = vrcp.pop %v2322
      %v2555 = vrcp.pop %v2325
      %v2556 = vrcp.pop %v2328
      %v2557 = vrcp.pop %v2331
      %v2558 = vrcp.pop %v2334
      %v2559 = vrcp.pop %v2337
      %v2560 = vrcp.pop %v2340
      %v2561 = vrcp.pop %v2343
      %v2562 = vrcp.pop %v2346
      %v2563 = vrcp.pop %v2349
      %v2564 = vrcp.pop %v2352
      %v2565 = vrcp.pop %v2355
      %v2566 = vrcp.pop %v2358
      %v2567 = vrcp.pop %v2361
      %v2568 = vrcp.pop %v2364
      %v2569 = vrcp.pop %v2367
      %v2570 = vrcp.pop %v2370
      %v2571 = vrcp.pop %v2373
      %v2572 = vrcp.pop %v2376
      %v2573 = vrcp.pop %v2379
      %v2574 = vrcp.pop %v2382
      %v2575 = vlaneseq
      %v2576 = vshrl.u32 %v2575, 7
      %v2577 = vadd.s32 %v2576, 8
      %v2578 = vadd.s32 %v2576, 16
      %v2579 = vadd.s32 %v2576, 24
      %v2580 = vadd.s32 %v2576, 32
      %v2581 = vadd.s32 %v2576, 40
      %v2582 = vadd.s32 %v2576, 48
      %v2583 = vadd.s32 %v2576, 56
      %v2584 = vadd.s32 %v2576, 64
      %v2585 = vadd.s32 %v2576, 72
      %v2586 = vadd.s32 %v2576, 80
      %v2587 = vadd.s32 %v2576, 88
      %v2588 = vadd.s32 %v2576, 96
      %v2589 = vadd.s32 %v2576, 104
      %v2590 = vadd.s32 %v2576, 112
      %v2591 = vadd.s32 %v2576, 120
      %v2592 = vadd.s32 %v2576, 128
      %v2593 = vadd.s32 %v2576, 136
      %v2594 = vadd.s32 %v2576, 144
      %v2595 = vadd.s32 %v2576, 152
      %v2596 = vadd.s32 %v2576, 160
      %v2597 = vadd.s32 %v2576, 168
      %v2598 = vadd.s32 %v2576, 176
      %v2599 = vadd.s32 %v2576, 184
      %v2600 = vadd.s32 %v2576, 192
      %v2601 = vadd.s32 %v2576, 200
      %v2602 = vadd.s32 %v2576, 208
      %v2603 = vadd.s32 %v2576, 216
      %v2604 = vadd.s32 %v2576, 224
      %v2605 = vadd.s32 %v2576, 232
      %v2606 = vadd.s32 %v2576, 240
      %v2607 = vadd.s32 %v2576, 248
      %s2608 = smul.u32 %s23, 256
      %v2609 = vstv %s2608
      %v2610 = vadd.s32 %v2576, %v2609
      %v2611 = vadd.s32 %v2577, %v2609
      %v2612 = vadd.s32 %v2578, %v2609
      %v2613 = vadd.s32 %v2579, %v2609
      %v2614 = vadd.s32 %v2580, %v2609
      %v2615 = vadd.s32 %v2581, %v2609
      %v2616 = vadd.s32 %v2582, %v2609
      %v2617 = vadd.s32 %v2583, %v2609
      %v2618 = vadd.s32 %v2584, %v2609
      %v2619 = vadd.s32 %v2585, %v2609
      %v2620 = vadd.s32 %v2586, %v2609
      %v2621 = vadd.s32 %v2587, %v2609
      %v2622 = vadd.s32 %v2588, %v2609
      %v2623 = vadd.s32 %v2589, %v2609
      %v2624 = vadd.s32 %v2590, %v2609
      %v2625 = vadd.s32 %v2591, %v2609
      %v2626 = vadd.s32 %v2592, %v2609
      %v2627 = vadd.s32 %v2593, %v2609
      %v2628 = vadd.s32 %v2594, %v2609
      %v2629 = vadd.s32 %v2595, %v2609
      %v2630 = vadd.s32 %v2596, %v2609
      %v2631 = vadd.s32 %v2597, %v2609
      %v2632 = vadd.s32 %v2598, %v2609
      %v2633 = vadd.s32 %v2599, %v2609
      %v2634 = vadd.s32 %v2600, %v2609
      %v2635 = vadd.s32 %v2601, %v2609
      %v2636 = vadd.s32 %v2602, %v2609
      %v2637 = vadd.s32 %v2603, %v2609
      %v2638 = vadd.s32 %v2604, %v2609
      %v2639 = vadd.s32 %v2605, %v2609
      %v2640 = vadd.s32 %v2606, %v2609
      %v2641 = vadd.s32 %v2607, %v2609
      %vm2642 = vcmp.lt.s32.totalorder %v2610, 648
      %vm2643 = vcmp.lt.s32.totalorder %v2611, 648
      %vm2644 = vcmp.lt.s32.totalorder %v2612, 648
      %vm2645 = vcmp.lt.s32.totalorder %v2613, 648
      %vm2646 = vcmp.lt.s32.totalorder %v2614, 648
      %vm2647 = vcmp.lt.s32.totalorder %v2615, 648
      %vm2648 = vcmp.lt.s32.totalorder %v2616, 648
      %vm2649 = vcmp.lt.s32.totalorder %v2617, 648
      %vm2650 = vcmp.lt.s32.totalorder %v2618, 648
      %vm2651 = vcmp.lt.s32.totalorder %v2619, 648
      %vm2652 = vcmp.lt.s32.totalorder %v2620, 648
      %vm2653 = vcmp.lt.s32.totalorder %v2621, 648
      %vm2654 = vcmp.lt.s32.totalorder %v2622, 648
      %vm2655 = vcmp.lt.s32.totalorder %v2623, 648
      %vm2656 = vcmp.lt.s32.totalorder %v2624, 648
      %vm2657 = vcmp.lt.s32.totalorder %v2625, 648
      %vm2658 = vcmp.lt.s32.totalorder %v2626, 648
      %vm2659 = vcmp.lt.s32.totalorder %v2627, 648
      %vm2660 = vcmp.lt.s32.totalorder %v2628, 648
      %vm2661 = vcmp.lt.s32.totalorder %v2629, 648
      %vm2662 = vcmp.lt.s32.totalorder %v2630, 648
      %vm2663 = vcmp.lt.s32.totalorder %v2631, 648
      %vm2664 = vcmp.lt.s32.totalorder %v2632, 648
      %vm2665 = vcmp.lt.s32.totalorder %v2633, 648
      %vm2666 = vcmp.lt.s32.totalorder %v2634, 648
      %vm2667 = vcmp.lt.s32.totalorder %v2635, 648
      %vm2668 = vcmp.lt.s32.totalorder %v2636, 648
      %vm2669 = vcmp.lt.s32.totalorder %v2637, 648
      %vm2670 = vcmp.lt.s32.totalorder %v2638, 648
      %vm2671 = vcmp.lt.s32.totalorder %v2639, 648
      %vm2672 = vcmp.lt.s32.totalorder %v2640, 648
      %vm2673 = vcmp.lt.s32.totalorder %v2641, 648
      %v2674 = vsel %vm2642, 1, 0
      %v2675 = vsel %vm2643, 1, 0
      %v2676 = vsel %vm2644, 1, 0
      %v2677 = vsel %vm2645, 1, 0
      %v2678 = vsel %vm2646, 1, 0
      %v2679 = vsel %vm2647, 1, 0
      %v2680 = vsel %vm2648, 1, 0
      %v2681 = vsel %vm2649, 1, 0
      %v2682 = vsel %vm2650, 1, 0
      %v2683 = vsel %vm2651, 1, 0
      %v2684 = vsel %vm2652, 1, 0
      %v2685 = vsel %vm2653, 1, 0
      %v2686 = vsel %vm2654, 1, 0
      %v2687 = vsel %vm2655, 1, 0
      %v2688 = vsel %vm2656, 1, 0
      %v2689 = vsel %vm2657, 1, 0
      %v2690 = vsel %vm2658, 1, 0
      %v2691 = vsel %vm2659, 1, 0
      %v2692 = vsel %vm2660, 1, 0
      %v2693 = vsel %vm2661, 1, 0
      %v2694 = vsel %vm2662, 1, 0
      %v2695 = vsel %vm2663, 1, 0
      %v2696 = vsel %vm2664, 1, 0
      %v2697 = vsel %vm2665, 1, 0
      %v2698 = vsel %vm2666, 1, 0
      %v2699 = vsel %vm2667, 1, 0
      %v2700 = vsel %vm2668, 1, 0
      %v2701 = vsel %vm2669, 1, 0
      %v2702 = vsel %vm2670, 1, 0
      %v2703 = vsel %vm2671, 1, 0
      %v2704 = vsel %vm2672, 1, 0
      %v2705 = vsel %vm2673, 1, 0
      %v2706 = vcvt.s32.f32 %v2674
      %v2707 = vcvt.s32.f32 %v2675
      %v2708 = vcvt.s32.f32 %v2676
      %v2709 = vcvt.s32.f32 %v2677
      %v2710 = vcvt.s32.f32 %v2678
      %v2711 = vcvt.s32.f32 %v2679
      %v2712 = vcvt.s32.f32 %v2680
      %v2713 = vcvt.s32.f32 %v2681
      %v2714 = vcvt.s32.f32 %v2682
      %v2715 = vcvt.s32.f32 %v2683
      %v2716 = vcvt.s32.f32 %v2684
      %v2717 = vcvt.s32.f32 %v2685
      %v2718 = vcvt.s32.f32 %v2686
      %v2719 = vcvt.s32.f32 %v2687
      %v2720 = vcvt.s32.f32 %v2688
      %v2721 = vcvt.s32.f32 %v2689
      %v2722 = vcvt.s32.f32 %v2690
      %v2723 = vcvt.s32.f32 %v2691
      %v2724 = vcvt.s32.f32 %v2692
      %v2725 = vcvt.s32.f32 %v2693
      %v2726 = vcvt.s32.f32 %v2694
      %v2727 = vcvt.s32.f32 %v2695
      %v2728 = vcvt.s32.f32 %v2696
      %v2729 = vcvt.s32.f32 %v2697
      %v2730 = vcvt.s32.f32 %v2698
      %v2731 = vcvt.s32.f32 %v2699
      %v2732 = vcvt.s32.f32 %v2700
      %v2733 = vcvt.s32.f32 %v2701
      %v2734 = vcvt.s32.f32 %v2702
      %v2735 = vcvt.s32.f32 %v2703
      %v2736 = vcvt.s32.f32 %v2704
      %v2737 = vcvt.s32.f32 %v2705
      %v2738 = vmul.f32 %v2543, %v2706
      %v2739 = vmul.f32 %v2544, %v2707
      %v2740 = vmul.f32 %v2545, %v2708
      %v2741 = vmul.f32 %v2546, %v2709
      %v2742 = vmul.f32 %v2547, %v2710
      %v2743 = vmul.f32 %v2548, %v2711
      %v2744 = vmul.f32 %v2549, %v2712
      %v2745 = vmul.f32 %v2550, %v2713
      %v2746 = vmul.f32 %v2551, %v2714
      %v2747 = vmul.f32 %v2552, %v2715
      %v2748 = vmul.f32 %v2553, %v2716
      %v2749 = vmul.f32 %v2554, %v2717
      %v2750 = vmul.f32 %v2555, %v2718
      %v2751 = vmul.f32 %v2556, %v2719
      %v2752 = vmul.f32 %v2557, %v2720
      %v2753 = vmul.f32 %v2558, %v2721
      %v2754 = vmul.f32 %v2559, %v2722
      %v2755 = vmul.f32 %v2560, %v2723
      %v2756 = vmul.f32 %v2561, %v2724
      %v2757 = vmul.f32 %v2562, %v2725
      %v2758 = vmul.f32 %v2563, %v2726
      %v2759 = vmul.f32 %v2564, %v2727
      %v2760 = vmul.f32 %v2565, %v2728
      %v2761 = vmul.f32 %v2566, %v2729
      %v2762 = vmul.f32 %v2567, %v2730
      %v2763 = vmul.f32 %v2568, %v2731
      %v2764 = vmul.f32 %v2569, %v2732
      %v2765 = vmul.f32 %v2570, %v2733
      %v2766 = vmul.f32 %v2571, %v2734
      %v2767 = vmul.f32 %v2572, %v2735
      %v2768 = vmul.f32 %v2573, %v2736
      %v2769 = vmul.f32 %v2574, %v2737
      %v2770 = vlog2.pop %v2289
      %v2771 = vmul.f32 %v2770, 0.6931472
      %v2772 = vlog2.pop %v2292
      %v2773 = vmul.f32 %v2772, 0.6931472
      %v2774 = vlog2.pop %v2295
      %v2775 = vmul.f32 %v2774, 0.6931472
      %v2776 = vlog2.pop %v2298
      %v2777 = vmul.f32 %v2776, 0.6931472
      %v2778 = vlog2.pop %v2301
      %v2779 = vmul.f32 %v2778, 0.6931472
      %v2780 = vlog2.pop %v2304
      %v2781 = vmul.f32 %v2780, 0.6931472
      %v2782 = vlog2.pop %v2307
      %v2783 = vmul.f32 %v2782, 0.6931472
      %v2784 = vlog2.pop %v2310
      %v2785 = vmul.f32 %v2784, 0.6931472
      %v2786 = vlog2.pop %v2313
      %v2787 = vmul.f32 %v2786, 0.6931472
      %v2788 = vlog2.pop %v2316
      %v2789 = vmul.f32 %v2788, 0.6931472
      %v2790 = vlog2.pop %v2319
      %v2791 = vmul.f32 %v2790, 0.6931472
      %v2792 = vlog2.pop %v2322
      %v2793 = vmul.f32 %v2792, 0.6931472
      %v2794 = vlog2.pop %v2325
      %v2795 = vmul.f32 %v2794, 0.6931472
      %v2796 = vlog2.pop %v2328
      %v2797 = vmul.f32 %v2796, 0.6931472
      %v2798 = vlog2.pop %v2331
      %v2799 = vmul.f32 %v2798, 0.6931472
      %v2800 = vlog2.pop %v2334
      %v2801 = vmul.f32 %v2800, 0.6931472
      %v2802 = vlog2.pop %v2337
      %v2803 = vmul.f32 %v2802, 0.6931472
      %v2804 = vlog2.pop %v2340
      %v2805 = vmul.f32 %v2804, 0.6931472
      %v2806 = vlog2.pop %v2343
      %v2807 = vmul.f32 %v2806, 0.6931472
      %v2808 = vlog2.pop %v2346
      %v2809 = vmul.f32 %v2808, 0.6931472
      %v2810 = vlog2.pop %v2349
      %v2811 = vmul.f32 %v2810, 0.6931472
      %v2812 = vlog2.pop %v2352
      %v2813 = vmul.f32 %v2812, 0.6931472
      %v2814 = vlog2.pop %v2355
      %v2815 = vmul.f32 %v2814, 0.6931472
      %v2816 = vlog2.pop %v2358
      %v2817 = vmul.f32 %v2816, 0.6931472
      %v2818 = vlog2.pop %v2361
      %v2819 = vmul.f32 %v2818, 0.6931472
      %v2820 = vlog2.pop %v2364
      %v2821 = vmul.f32 %v2820, 0.6931472
      %v2822 = vlog2.pop %v2367
      %v2823 = vmul.f32 %v2822, 0.6931472
      %v2824 = vlog2.pop %v2370
      %v2825 = vmul.f32 %v2824, 0.6931472
      %v2826 = vlog2.pop %v2373
      %v2827 = vmul.f32 %v2826, 0.6931472
      %v2828 = vlog2.pop %v2376
      %v2829 = vmul.f32 %v2828, 0.6931472
      %v2830 = vlog2.pop %v2379
      %v2831 = vmul.f32 %v2830, 0.6931472
      %v2832 = vlog2.pop %v2382
      %v2833 = vmul.f32 %v2832, 0.6931472
      %v2834 = vmul.f32 %v2543, %v2449
      %v2835 = vmul.f32 %v2544, %v2452
      %v2836 = vmul.f32 %v2545, %v2455
      %v2837 = vmul.f32 %v2546, %v2458
      %v2838 = vmul.f32 %v2547, %v2461
      %v2839 = vmul.f32 %v2548, %v2464
      %v2840 = vmul.f32 %v2549, %v2467
      %v2841 = vmul.f32 %v2550, %v2470
      %v2842 = vmul.f32 %v2551, %v2473
      %v2843 = vmul.f32 %v2552, %v2476
      %v2844 = vmul.f32 %v2553, %v2479
      %v2845 = vmul.f32 %v2554, %v2482
      %v2846 = vmul.f32 %v2555, %v2485
      %v2847 = vmul.f32 %v2556, %v2488
      %v2848 = vmul.f32 %v2557, %v2491
      %v2849 = vmul.f32 %v2558, %v2494
      %v2850 = vmul.f32 %v2559, %v2497
      %v2851 = vmul.f32 %v2560, %v2500
      %v2852 = vmul.f32 %v2561, %v2503
      %v2853 = vmul.f32 %v2562, %v2506
      %v2854 = vmul.f32 %v2563, %v2509
      %v2855 = vmul.f32 %v2564, %v2512
      %v2856 = vmul.f32 %v2565, %v2515
      %v2857 = vmul.f32 %v2566, %v2518
      %v2858 = vmul.f32 %v2567, %v2521
      %v2859 = vmul.f32 %v2568, %v2524
      %v2860 = vmul.f32 %v2569, %v2527
      %v2861 = vmul.f32 %v2570, %v2530
      %v2862 = vmul.f32 %v2571, %v2533
      %v2863 = vmul.f32 %v2572, %v2536
      %v2864 = vmul.f32 %v2573, %v2539
      %v2865 = vmul.f32 %v2574, %v2542
      %v2866 = vsub.f32 %v2771, %v2834
      %v2867 = vsub.f32 %v2773, %v2835
      %v2868 = vsub.f32 %v2775, %v2836
      %v2869 = vsub.f32 %v2777, %v2837
      %v2870 = vsub.f32 %v2779, %v2838
      %v2871 = vsub.f32 %v2781, %v2839
      %v2872 = vsub.f32 %v2783, %v2840
      %v2873 = vsub.f32 %v2785, %v2841
      %v2874 = vsub.f32 %v2787, %v2842
      %v2875 = vsub.f32 %v2789, %v2843
      %v2876 = vsub.f32 %v2791, %v2844
      %v2877 = vsub.f32 %v2793, %v2845
      %v2878 = vsub.f32 %v2795, %v2846
      %v2879 = vsub.f32 %v2797, %v2847
      %v2880 = vsub.f32 %v2799, %v2848
      %v2881 = vsub.f32 %v2801, %v2849
      %v2882 = vsub.f32 %v2803, %v2850
      %v2883 = vsub.f32 %v2805, %v2851
      %v2884 = vsub.f32 %v2807, %v2852
      %v2885 = vsub.f32 %v2809, %v2853
      %v2886 = vsub.f32 %v2811, %v2854
      %v2887 = vsub.f32 %v2813, %v2855
      %v2888 = vsub.f32 %v2815, %v2856
      %v2889 = vsub.f32 %v2817, %v2857
      %v2890 = vsub.f32 %v2819, %v2858
      %v2891 = vsub.f32 %v2821, %v2859
      %v2892 = vsub.f32 %v2823, %v2860
      %v2893 = vsub.f32 %v2825, %v2861
      %v2894 = vsub.f32 %v2827, %v2862
      %v2895 = vsub.f32 %v2829, %v2863
      %v2896 = vsub.f32 %v2831, %v2864
      %v2897 = vsub.f32 %v2833, %v2865
      %v2898 = vmul.f32 %v2866, %v2706
      %v2899 = vmul.f32 %v2867, %v2707
      %v2900 = vmul.f32 %v2868, %v2708
      %v2901 = vmul.f32 %v2869, %v2709
      %v2902 = vmul.f32 %v2870, %v2710
      %v2903 = vmul.f32 %v2871, %v2711
      %v2904 = vmul.f32 %v2872, %v2712
      %v2905 = vmul.f32 %v2873, %v2713
      %v2906 = vmul.f32 %v2874, %v2714
      %v2907 = vmul.f32 %v2875, %v2715
      %v2908 = vmul.f32 %v2876, %v2716
      %v2909 = vmul.f32 %v2877, %v2717
      %v2910 = vmul.f32 %v2878, %v2718
      %v2911 = vmul.f32 %v2879, %v2719
      %v2912 = vmul.f32 %v2880, %v2720
      %v2913 = vmul.f32 %v2881, %v2721
      %v2914 = vmul.f32 %v2882, %v2722
      %v2915 = vmul.f32 %v2883, %v2723
      %v2916 = vmul.f32 %v2884, %v2724
      %v2917 = vmul.f32 %v2885, %v2725
      %v2918 = vmul.f32 %v2886, %v2726
      %v2919 = vmul.f32 %v2887, %v2727
      %v2920 = vmul.f32 %v2888, %v2728
      %v2921 = vmul.f32 %v2889, %v2729
      %v2922 = vmul.f32 %v2890, %v2730
      %v2923 = vmul.f32 %v2891, %v2731
      %v2924 = vmul.f32 %v2892, %v2732
      %v2925 = vmul.f32 %v2893, %v2733
      %v2926 = vmul.f32 %v2894, %v2734
      %v2927 = vmul.f32 %v2895, %v2735
      %v2928 = vmul.f32 %v2896, %v2736
      %v2929 = vmul.f32 %v2897, %v2737
      %v2930 = vsel %vm1268, %v2898, 0.0
      %v2931 = vsel %vm1268, %v2899, 0.0
      %v2932 = vadd.f32 %v2930, %v2931
      %v2933 = vsel %vm1268, %v2900, 0.0
      %v2934 = vadd.f32 %v2932, %v2933
      %v2935 = vsel %vm1268, %v2901, 0.0
      %v2936 = vadd.f32 %v2934, %v2935
      %v2937 = vsel %vm1268, %v2902, 0.0
      %v2938 = vadd.f32 %v2936, %v2937
      %v2939 = vsel %vm1268, %v2903, 0.0
      %v2940 = vadd.f32 %v2938, %v2939
      %v2941 = vsel %vm1268, %v2904, 0.0
      %v2942 = vadd.f32 %v2940, %v2941
      %v2943 = vsel %vm1268, %v2905, 0.0
      %v2944 = vadd.f32 %v2942, %v2943
      %v2945 = vsel %vm1268, %v2906, 0.0
      %v2946 = vadd.f32 %v2944, %v2945
      %v2947 = vsel %vm1268, %v2907, 0.0
      %v2948 = vadd.f32 %v2946, %v2947
      %v2949 = vsel %vm1268, %v2908, 0.0
      %v2950 = vadd.f32 %v2948, %v2949
      %v2951 = vsel %vm1268, %v2909, 0.0
      %v2952 = vadd.f32 %v2950, %v2951
      %v2953 = vsel %vm1268, %v2910, 0.0
      %v2954 = vadd.f32 %v2952, %v2953
      %v2955 = vsel %vm1268, %v2911, 0.0
      %v2956 = vadd.f32 %v2954, %v2955
      %v2957 = vsel %vm1268, %v2912, 0.0
      %v2958 = vadd.f32 %v2956, %v2957
      %v2959 = vsel %vm1268, %v2913, 0.0
      %v2960 = vadd.f32 %v2958, %v2959
      %v2961 = vsel %vm1268, %v2914, 0.0
      %v2962 = vadd.f32 %v2960, %v2961
      %v2963 = vsel %vm1268, %v2915, 0.0
      %v2964 = vadd.f32 %v2962, %v2963
      %v2965 = vsel %vm1268, %v2916, 0.0
      %v2966 = vadd.f32 %v2964, %v2965
      %v2967 = vsel %vm1268, %v2917, 0.0
      %v2968 = vadd.f32 %v2966, %v2967
      %v2969 = vsel %vm1268, %v2918, 0.0
      %v2970 = vadd.f32 %v2968, %v2969
      %v2971 = vsel %vm1268, %v2919, 0.0
      %v2972 = vadd.f32 %v2970, %v2971
      %v2973 = vsel %vm1268, %v2920, 0.0
      %v2974 = vadd.f32 %v2972, %v2973
      %v2975 = vsel %vm1268, %v2921, 0.0
      %v2976 = vadd.f32 %v2974, %v2975
      %v2977 = vsel %vm1268, %v2922, 0.0
      %v2978 = vadd.f32 %v2976, %v2977
      %v2979 = vsel %vm1268, %v2923, 0.0
      %v2980 = vadd.f32 %v2978, %v2979
      %v2981 = vsel %vm1268, %v2924, 0.0
      %v2982 = vadd.f32 %v2980, %v2981
      %v2983 = vsel %vm1268, %v2925, 0.0
      %v2984 = vadd.f32 %v2982, %v2983
      %v2985 = vsel %vm1268, %v2926, 0.0
      %v2986 = vadd.f32 %v2984, %v2985
      %v2987 = vsel %vm1268, %v2927, 0.0
      %v2988 = vadd.f32 %v2986, %v2987
      %v2989 = vsel %vm1268, %v2928, 0.0
      %v2990 = vadd.f32 %v2988, %v2989
      %v2991 = vsel %vm1268, %v2929, 0.0
      %v2992 = vadd.f32 %v2990, %v2991
      %2993 = vadd.xlane.f32.xlu0 %v2992
      %v2994 = vpop.xlane.xlu0 %2993
      %v2995 = vrot.slane %v2994, 4
      %v2996 = vadd.f32 %v2994, %v2995
      %v2997 = vrot.slane %v2996, 2
      %v2998 = vadd.f32 %v2996, %v2997
      %v2999 = vrot.slane %v2998, 1
      %v3000 = vadd.f32 %v2998, %v2999
      %s3001 = vtos %v3000
      %v3002 = vstv %s3001
      %vm3003 = vcmask 0
      %3004 = vst.msk [vmem:[%s421] sm:$0x1] %vm3003, %v3002
      %v3005 = vmul.f32 %v2160, %v2738
      %v3006 = vmul.f32 %v2162, %v2738
      %v3007 = vmul.f32 %v2164, %v2739
      %v3008 = vmul.f32 %v2166, %v2739
      %v3009 = vmul.f32 %v2168, %v2740
      %v3010 = vmul.f32 %v2170, %v2740
      %v3011 = vmul.f32 %v2172, %v2741
      %v3012 = vmul.f32 %v2174, %v2741
      %v3013 = vmul.f32 %v2176, %v2742
      %v3014 = vmul.f32 %v2178, %v2742
      %v3015 = vmul.f32 %v2180, %v2743
      %v3016 = vmul.f32 %v2182, %v2743
      %v3017 = vmul.f32 %v2184, %v2744
      %v3018 = vmul.f32 %v2186, %v2744
      %v3019 = vmul.f32 %v2188, %v2745
      %v3020 = vmul.f32 %v2190, %v2745
      %v3021 = vmul.f32 %v2192, %v2746
      %v3022 = vmul.f32 %v2194, %v2746
      %v3023 = vmul.f32 %v2196, %v2747
      %v3024 = vmul.f32 %v2198, %v2747
      %v3025 = vmul.f32 %v2200, %v2748
      %v3026 = vmul.f32 %v2202, %v2748
      %v3027 = vmul.f32 %v2204, %v2749
      %v3028 = vmul.f32 %v2206, %v2749
      %v3029 = vmul.f32 %v2208, %v2750
      %v3030 = vmul.f32 %v2210, %v2750
      %v3031 = vmul.f32 %v2212, %v2751
      %v3032 = vmul.f32 %v2214, %v2751
      %v3033 = vmul.f32 %v2216, %v2752
      %v3034 = vmul.f32 %v2218, %v2752
      %v3035 = vmul.f32 %v2220, %v2753
      %v3036 = vmul.f32 %v2222, %v2753
      %v3037 = vmul.f32 %v2224, %v2754
      %v3038 = vmul.f32 %v2226, %v2754
      %v3039 = vmul.f32 %v2228, %v2755
      %v3040 = vmul.f32 %v2230, %v2755
      %v3041 = vmul.f32 %v2232, %v2756
      %v3042 = vmul.f32 %v2234, %v2756
      %v3043 = vmul.f32 %v2236, %v2757
      %v3044 = vmul.f32 %v2238, %v2757
      %v3045 = vmul.f32 %v2240, %v2758
      %v3046 = vmul.f32 %v2242, %v2758
      %v3047 = vmul.f32 %v2244, %v2759
      %v3048 = vmul.f32 %v2246, %v2759
      %v3049 = vmul.f32 %v2248, %v2760
      %v3050 = vmul.f32 %v2250, %v2760
      %v3051 = vmul.f32 %v2252, %v2761
      %v3052 = vmul.f32 %v2254, %v2761
      %v3053 = vmul.f32 %v2256, %v2762
      %v3054 = vmul.f32 %v2258, %v2762
      %v3055 = vmul.f32 %v2260, %v2763
      %v3056 = vmul.f32 %v2262, %v2763
      %v3057 = vmul.f32 %v2264, %v2764
      %v3058 = vmul.f32 %v2266, %v2764
      %v3059 = vmul.f32 %v2268, %v2765
      %v3060 = vmul.f32 %v2270, %v2765
      %v3061 = vmul.f32 %v2272, %v2766
      %v3062 = vmul.f32 %v2274, %v2766
      %v3063 = vmul.f32 %v2276, %v2767
      %v3064 = vmul.f32 %v2278, %v2767
      %v3065 = vmul.f32 %v2280, %v2768
      %v3066 = vmul.f32 %v2282, %v2768
      %v3067 = vmul.f32 %v2284, %v2769
      %v3068 = vmul.f32 %v2286, %v2769
      %v3069 = vadd.f32 %v3005, %v3007
      %v3070 = vadd.f32 %v3069, %v3009
      %v3071 = vadd.f32 %v3070, %v3011
      %v3072 = vadd.f32 %v3071, %v3013
      %v3073 = vadd.f32 %v3072, %v3015
      %v3074 = vadd.f32 %v3073, %v3017
      %v3075 = vadd.f32 %v3074, %v3019
      %v3076 = vadd.f32 %v3075, %v3021
      %v3077 = vadd.f32 %v3076, %v3023
      %v3078 = vadd.f32 %v3077, %v3025
      %v3079 = vadd.f32 %v3078, %v3027
      %v3080 = vadd.f32 %v3079, %v3029
      %v3081 = vadd.f32 %v3080, %v3031
      %v3082 = vadd.f32 %v3081, %v3033
      %v3083 = vadd.f32 %v3082, %v3035
      %v3084 = vadd.f32 %v3083, %v3037
      %v3085 = vadd.f32 %v3084, %v3039
      %v3086 = vadd.f32 %v3085, %v3041
      %v3087 = vadd.f32 %v3086, %v3043
      %v3088 = vadd.f32 %v3087, %v3045
      %v3089 = vadd.f32 %v3088, %v3047
      %v3090 = vadd.f32 %v3089, %v3049
      %v3091 = vadd.f32 %v3090, %v3051
      %v3092 = vadd.f32 %v3091, %v3053
      %v3093 = vadd.f32 %v3092, %v3055
      %v3094 = vadd.f32 %v3093, %v3057
      %v3095 = vadd.f32 %v3094, %v3059
      %v3096 = vadd.f32 %v3095, %v3061
      %v3097 = vadd.f32 %v3096, %v3063
      %v3098 = vadd.f32 %v3097, %v3065
      %v3099 = vadd.f32 %v3098, %v3067
      %v3100 = vrot.slane %v3099, 4
      %v3101 = vadd.f32 %v3099, %v3100
      %v3102 = vrot.slane %v3101, 2
      %v3103 = vadd.f32 %v3101, %v3102
      %v3104 = vrot.slane %v3103, 1
      %v3105 = vadd.f32 %v3103, %v3104
      %v3106 = vadd.f32 %v3006, %v3008
      %v3107 = vadd.f32 %v3106, %v3010
      %v3108 = vadd.f32 %v3107, %v3012
      %v3109 = vadd.f32 %v3108, %v3014
      %v3110 = vadd.f32 %v3109, %v3016
      %v3111 = vadd.f32 %v3110, %v3018
      %v3112 = vadd.f32 %v3111, %v3020
      %v3113 = vadd.f32 %v3112, %v3022
      %v3114 = vadd.f32 %v3113, %v3024
      %v3115 = vadd.f32 %v3114, %v3026
      %v3116 = vadd.f32 %v3115, %v3028
      %v3117 = vadd.f32 %v3116, %v3030
      %v3118 = vadd.f32 %v3117, %v3032
      %v3119 = vadd.f32 %v3118, %v3034
      %v3120 = vadd.f32 %v3119, %v3036
      %v3121 = vadd.f32 %v3120, %v3038
      %v3122 = vadd.f32 %v3121, %v3040
      %v3123 = vadd.f32 %v3122, %v3042
      %v3124 = vadd.f32 %v3123, %v3044
      %v3125 = vadd.f32 %v3124, %v3046
      %v3126 = vadd.f32 %v3125, %v3048
      %v3127 = vadd.f32 %v3126, %v3050
      %v3128 = vadd.f32 %v3127, %v3052
      %v3129 = vadd.f32 %v3128, %v3054
      %v3130 = vadd.f32 %v3129, %v3056
      %v3131 = vadd.f32 %v3130, %v3058
      %v3132 = vadd.f32 %v3131, %v3060
      %v3133 = vadd.f32 %v3132, %v3062
      %v3134 = vadd.f32 %v3133, %v3064
      %v3135 = vadd.f32 %v3134, %v3066
      %v3136 = vadd.f32 %v3135, %v3068
      %v3137 = vrot.slane %v3136, 4
      %v3138 = vadd.f32 %v3136, %v3137
      %v3139 = vrot.slane %v3138, 2
      %v3140 = vadd.f32 %v3138, %v3139
      %v3141 = vrot.slane %v3140, 1
      %v3142 = vadd.f32 %v3140, %v3141
      %v3145 = vcombine.low %v3105, %v3142
      %v3147 = vunpack.c.l.s4 1966171168
      %v3148 = vunpack.c.0.s8 %v3147
      %v3149 = vlaneseq
      %v3150 = vshrl.u32 %v3149, 7
      %v3151 = vsub.s32 %v3148, %v3150
      %v3152 = vrot.slane %v3145, %v3151
      %v3154 = vunpack.c.l.s4 1966171168
      %v3155 = vunpack.c.0.s8 %v3154
      %v3156 = vlaneseq
      %v3157 = vshrl.u32 %v3156, 7
      %v3158 = vsub.s32 %v3155, %v3157
      %v3159 = vrot.slane %v3152, %v3158
      %v3161 = vlaneseq
      %vm3162 = vcmp.ge.s32.totalorder %v3161, 0
      %vm3163 = vcmp.lt.s32.totalorder %v3161, 256
      %vm3164 = vmand %vm3162, %vm3163
      %3165 = vst.msk [vmem:[%s418] sm:$0x3] %vm3164, %v3159
      %s3166 = smul.u32 32, %s23
      %p3167 = scmp.lt.s32.totalorder %s3166, 95
      %s3168 = scalar_select %p3167, %s3166, 95
      %s3169 = smul.addr %s3168, 8
      %s3170 = scalar_lea.vmem %s8, %s3169
      %s3171 = smul.u32 32, %s23
      %p3172 = scmp.lt.s32.totalorder %s3171, 95
      %s3173 = scalar_select %p3172, %s3171, 95
      %s3174 = smul.addr %s3173, 8
      %s3175 = scalar_lea.vmem %s9, %s3174
      %p3176 = scmp.lt.s32.totalorder %s23, 2
      %s3177 = scalar_select %p3176, %s23, 2
      %s3178 = smul.addr %s3177, 2
      %s3179 = scalar_lea.vmem %s10, %s3178
      %p3180 = scmp.lt.s32.totalorder %s23, 2
      %s3181 = scalar_select %p3180, %s23, 2
      %s3182 = scalar_lea.vmem %s11, %s3181
      // Predicated region
      $region53: #{lfq_forward.1} parent=51 // pred_check
        %p3183 = pneg %p214
      $region54: #{lfq_forward.1} parent=51 // pred_check_branch
        %3185 = sbr.rel (%p3183) target = $region56
      $region55: #{lfq_forward.1} parent=51 // pred_region
        %s3186 = smul.u32 32, %s23
      $region56: #{lfq_forward.1} parent=51 // pred_fallthru
        _
      // Predicated region
      $region57: #{lfq_forward.1} parent=51 // pred_check
        %p3187 = pneg %p240
      $region58: #{lfq_forward.1} parent=51 // pred_check_branch
        %3189 = sbr.rel (%p3187) target = $region60
      $region59: #{lfq_forward.1} parent=51 // pred_region
        %s3190 = smul.u32 32, %s23
      $region60: #{lfq_forward.1} parent=51 // pred_fallthru
        _
      // Predicated region
      $region61: #{lfq_forward.1} parent=51 // pred_check
        %p3191 = pneg %p266
      $region62: #{lfq_forward.1} parent=51 // pred_check_branch
        %3193 = sbr.rel (%p3191) target = $region64
      $region63: #{lfq_forward.1} parent=51 // pred_region
        _
      $region64: #{lfq_forward.1} parent=51 // pred_fallthru
        _
      // Predicated region
      $region65: #{lfq_forward.1} parent=51 // pred_check
        %p3194 = pneg %p292
      $region66: #{lfq_forward.1} parent=51 // pred_check_branch
        %3196 = sbr.rel (%p3194) target = $region68
      $region67: #{lfq_forward.1} parent=51 // pred_region
        _
      $region68: #{lfq_forward.1} parent=51 // pred_fallthru
        _
    $region52: #{lfq_forward.1} parent=5 // pred_fallthru
      _
    %p3197 = scmp.le.s32.totalorder 2, %s18
    // Predicated region
    $region69: #{lfq_forward.1} parent=5 // pred_check
      %p3198 = pneg %p3197
    $region70: #{lfq_forward.1} parent=5 // pred_check_branch
      %3200 = sbr.rel (%p3198) target = $region72
    $region71: #{lfq_forward.1} parent=5 // pred_region
      %s3201 = ssub.s32 %s18, 2
      // Predicated region
      $region73: #{lfq_forward.1} parent=71 // pred_check
        %p3202 = pneg %p220
      $region74: #{lfq_forward.1} parent=71 // pred_check_branch
        %3204 = sbr.rel (%p3202) target = $region76
      $region75: #{lfq_forward.1} parent=71 // pred_region
        %s3205 = smul.u32 32, %s24
        %p3206 = scmp.lt.s32.totalorder %s3205, 95
        %s3207 = scalar_select %p3206, %s3205, 95
        %s3208 = smul.addr %s3207, 8
        %s3209 = scalar_lea.vmem %s8, %s3208
      $region76: #{lfq_forward.1} parent=71 // pred_fallthru
        _
      // Predicated region
      $region77: #{lfq_forward.1} parent=71 // pred_check
        %p3210 = pneg %p246
      $region78: #{lfq_forward.1} parent=71 // pred_check_branch
        %3212 = sbr.rel (%p3210) target = $region80
      $region79: #{lfq_forward.1} parent=71 // pred_region
        %s3213 = smul.u32 32, %s24
        %p3214 = scmp.lt.s32.totalorder %s3213, 95
        %s3215 = scalar_select %p3214, %s3213, 95
        %s3216 = smul.addr %s3215, 8
        %s3217 = scalar_lea.vmem %s9, %s3216
      $region80: #{lfq_forward.1} parent=71 // pred_fallthru
        _
      // Predicated region
      $region81: #{lfq_forward.1} parent=71 // pred_check
        %p3218 = pneg %p272
      $region82: #{lfq_forward.1} parent=71 // pred_check_branch
        %3220 = sbr.rel (%p3218) target = $region84
      $region83: #{lfq_forward.1} parent=71 // pred_region
        %p3221 = scmp.lt.s32.totalorder %s24, 2
        %s3222 = scalar_select %p3221, %s24, 2
        %s3223 = smul.addr %s3222, 2
        %s3224 = scalar_lea.vmem %s10, %s3223
      $region84: #{lfq_forward.1} parent=71 // pred_fallthru
        _
      // Predicated region
      $region85: #{lfq_forward.1} parent=71 // pred_check
        %p3225 = pneg %p298
      $region86: #{lfq_forward.1} parent=71 // pred_check_branch
        %3227 = sbr.rel (%p3225) target = $region88
      $region87: #{lfq_forward.1} parent=71 // pred_region
        %p3228 = scmp.lt.s32.totalorder %s24, 2
        %s3229 = scalar_select %p3228, %s24, 2
        %s3230 = scalar_lea.vmem %s11, %s3229
      $region88: #{lfq_forward.1} parent=71 // pred_fallthru
        _
    $region72: #{lfq_forward.1} parent=5 // pred_fallthru
      _
  $region6: #{lfq_forward.1} parent=0 // loop_footer
    %s22 = sadd.s32 1, %s18
  $region7: #{lfq_forward.1} parent=0 // loop_footer_branch
    %17 = sbr.rel target = $region3
  $region8: #{lfq_forward.1} parent=0 // loop_exit
    _

</llo_original>
